<compile_context>
chip_gen: v7x
topology: tpu7x:2x2x1
jax: 0.10.0
libtpu: 0.0.40
codegen_flags: <defaults>
</compile_context>

<pallas_src>
import functools
import math

import jax
import jax.numpy as jnp
from jax.experimental import pallas as pl
from jax.experimental.pallas import tpu as pltpu

_SUBLANE = 8
_LANE = 128
_CHUNK_VMEM_BUDGET = 8 << 20   # budget for per-chunk scratch (xproj + hseq + x block)
_MAX_CHUNK = 256               # cap timesteps per grid step
_UNROLL = 8                    # partial unroll of the per-chunk time loop


def _round_up(x, m):
    return (x + m - 1) // m * m


# ------------------------------ fused forward kernel ------------------------------

def _make_kernel(num_layers, seq_len, chunk, bt, hp, mxu_dtype, mask_tail):
    """kernel(x, (wih_t, whh_t, bias)*L, fc_w, fc_b, out, xproj, hseq, (h, c)*L)."""
    n_in = 1 + 3 * num_layers + 2

    def kernel(*refs):
        x_ref = refs[0]                          # (chunk, bt, In)  mxu dtype
        layer_refs = refs[1:1 + 3 * num_layers]
        fc_w_ref = refs[1 + 3 * num_layers]      # (hp, op)         mxu dtype
        fc_b_ref = refs[2 + 3 * num_layers]      # (1, op)          f32
        o_ref = refs[n_in]                       # (bt, op)         f32
        xproj = refs[n_in + 1]                   # (chunk*bt, 4*hp) f32 scratch
        hseq = refs[n_in + 2]                    # (chunk*bt, hp)   mxu-dtype scratch
        state_refs = refs[n_in + 3:]             # per layer: h (bt,hp) f32, c (bt,hp) f32

        ti = pl.program_id(1)

        # New batch tile / start of sequence: zero all h/c carries.
        @pl.when(ti == 0)
        def _():
            for s in state_refs:
                s[...] = jnp.zeros_like(s)

        # Chunk of the input sequence, time-major rows: timestep t is rows [t*bt, (t+1)*bt).
        x_chunk = x_ref[...].reshape(chunk * bt, x_ref.shape[-1])

        for layer in range(num_layers):
            wih_ref = layer_refs[3 * layer]
            whh_ref = layer_refs[3 * layer + 1]
            b_ref = layer_refs[3 * layer + 2]
            h_ref = state_refs[2 * layer]
            c_ref = state_refs[2 * layer + 1]

            # Layer l>0 consumes the hidden chunk written by layer l-1 in this same grid
            # step (hseq is fully written for all chunk*bt rows before it is read here).
            src = x_chunk if layer == 0 else hseq[...]

            # Hoisted input projection + folded bias for the whole chunk: one MXU matmul.
            xproj[...] = (
                jnp.dot(src, wih_ref[...], preferred_element_type=jnp.float32)
                + b_ref[...]
            )

            whh = whh_ref[...]
            write_hseq = layer < num_layers - 1

            def step(t, carry, _whh=whh, _write=write_hseq):
                h, c = carry
                row = pl.multiple_of(t * bt, bt)          # sublane-aligned row offset
                gates = xproj[pl.ds(row, bt), :] + jnp.dot(
                    h.astype(mxu_dtype), _whh, preferred_element_type=jnp.float32)
                # Gate order permuted host-side to [i | f | o | g]: one sigmoid over the
                # contiguous first 3*hp lanes, one tanh over the last hp lanes.
                sig = jax.nn.sigmoid(gates[:, :3 * hp])
                i_g = sig[:, 0 * hp:1 * hp]
                f_g = sig[:, 1 * hp:2 * hp]
                o_g = sig[:, 2 * hp:3 * hp]
                g_g = jnp.tanh(gates[:, 3 * hp:4 * hp])
                c_new = f_g * c + i_g * g_g
                h_new = o_g * jnp.tanh(c_new)
                if mask_tail:
                    # Time axis padded to a multiple of `chunk`: freeze state on pad steps.
                    valid = (ti * chunk + t) < seq_len
                    h_new = jnp.where(valid, h_new, h)
                    c_new = jnp.where(valid, c_new, c)
                if _write:                                # last layer: only final h needed
                    hseq[pl.ds(row, bt), :] = h_new.astype(hseq.dtype)
                return (h_new, c_new)

            h_last, c_last = jax.lax.fori_loop(
                0, chunk, step, (h_ref[...], c_ref[...]),
                unroll=min(_UNROLL, chunk))
            h_ref[...] = h_last
            c_ref[...] = c_last

        # FC head on the last layer's final hidden state; lane-dense output block.
        # nn.Dropout before fc is identity in eval mode.
        @pl.when(ti == pl.num_programs(1) - 1)
        def _():
            h_top = state_refs[2 * (num_layers - 1)][...]
            o_ref[...] = (
                jnp.dot(h_top.astype(mxu_dtype), fc_w_ref[...],
                        preferred_element_type=jnp.float32)
                + fc_b_ref[...]
            ).astype(o_ref.dtype)

    return kernel


# --------------------------------- weight prep ---------------------------------

def _prep_params(params, hp, op, mxu_dtype):
    """Permute PyTorch gate rows [i|f|g|o] -> [i|f|o|g], pad each gate (and the hidden
    input dim of layers > 0) to hp lanes, fold b_ih + b_hh, transpose for right-multiply,
    and cast MXU operands to mxu_dtype. Padded lanes/rows are zero, so padded hidden
    lanes stay exactly zero through the recurrence and never contaminate real lanes."""
    lstm_ws = []
    for layer, (w_ih, w_hh, b_ih, b_hh) in enumerate(params["lstm"]):
        H = w_hh.shape[1]
        in_sz = w_ih.shape[1]
        in_rows = in_sz if layer == 0 else hp   # layer>0 consumes the hp-padded hidden seq

        def gate_blocks(w, _H=H):
            # PyTorch row order [i; f; g; o] -> permuted order [i, f, o, g]
            return (w[0:_H], w[_H:2 * _H], w[3 * _H:4 * _H], w[2 * _H:3 * _H])

        def pack(w, rows, _H=H):
            cols = []
            for blk in gate_blocks(w, _H):
                blk_t = jnp.pad(blk.T, ((0, rows - blk.shape[1]), (0, hp - _H)))
                cols.append(blk_t)
            return jnp.concatenate(cols, axis=1).astype(mxu_dtype)   # (rows, 4*hp)

        wih_p = pack(w_ih, in_rows)
        whh_p = pack(w_hh, hp)
        b = b_ih + b_hh
        bias_p = jnp.concatenate(
            [jnp.pad(blk, (0, hp - H)) for blk in gate_blocks(b)]
        ).reshape(1, 4 * hp).astype(jnp.float32)
        lstm_ws += [wih_p, whh_p, bias_p]

    O, H = params["fc_w"].shape
    fc_w = jnp.pad(params["fc_w"].T, ((0, hp - H), (0, op - O))).astype(mxu_dtype)
    fc_b = jnp.pad(params["fc_b"], (0, op - O)).reshape(1, op).astype(jnp.float32)
    return lstm_ws, fc_w, fc_b


# --------------------------------- wrapper / glue ---------------------------------

def music_rnn_forward(x, params, mxu_dtype=jnp.bfloat16):
    """x: (B, T, input_size), batch_first like the PyTorch module. Returns (B, output_size)."""
    B, T, In = x.shape
    num_layers = len(params["lstm"])
    H = params["lstm"][0][1].shape[1]           # w_hh: (4H, H)
    O = params["fc_w"].shape[0]

    hp = _round_up(H, _LANE)                    # lane-dense per-gate / hidden width
    op = _round_up(O, _LANE)                    # lane-dense FC output
    mxu_bytes = jnp.dtype(mxu_dtype).itemsize

    # Batch tiling: one sublane-aligned tile for small batches, 128-row tiles (full MXU
    # row dim) for large ones; the batch-tile grid axis is "parallel" (v7x megacore).
    if B <= _LANE:
        bt = _round_up(B, _SUBLANE)
        bp = bt
    else:
        bt = _LANE
        bp = _round_up(B, _LANE)
    nb = bp // bt

    # Time chunking: per-chunk scratch bounded -> VMEM footprint is T-independent and the
    # x-chunk DMA pipelines against the recurrence.
    per_step = bt * (4 * hp * 4 + hp * mxu_bytes + 2 * In * mxu_bytes)
    chunk = int(max(1, min(T, _MAX_CHUNK, _CHUNK_VMEM_BUDGET // per_step)))
    t_pad = _round_up(T, chunk)
    nt = t_pad // chunk
    mask_tail = t_pad != T

    # Time-major, batch/time zero-padded: one (chunk, bt, In) block per grid step.
    x_tm = jnp.transpose(x, (1, 0, 2)).astype(mxu_dtype)
    x_tm = jnp.pad(x_tm, ((0, t_pad - T), (0, bp - B), (0, 0)))

    lstm_ws, fc_w, fc_b = _prep_params(params, hp, op, mxu_dtype)

    def const_spec(shape):
        return pl.BlockSpec(shape, lambda bi, ti: (0, 0))

    in_specs = [pl.BlockSpec((chunk, bt, In), lambda bi, ti: (ti, bi, 0))]
    in_specs += [const_spec(w.shape) for w in lstm_ws]
    in_specs += [const_spec(fc_w.shape), const_spec(fc_b.shape)]

    # Explicit VMEM budget (resident weights + double-buffered x chunk + scratch + out).
    vmem_bytes = (
        sum(int(w.size) * w.dtype.itemsize for w in lstm_ws)
        + int(fc_w.size) * fc_w.dtype.itemsize + int(fc_b.size) * 4
        + 2 * chunk * bt * In * mxu_bytes        # double-buffered x chunk
        + 2 * bt * op * 4                        # output block
        + chunk * bt * 4 * hp * 4                # xproj scratch (f32)
        + chunk * bt * hp * mxu_bytes            # layer-to-layer hidden chunk
        + 2 * num_layers * bt * hp * 4           # per-layer h/c carries
    )
    vmem_limit = int(min(64 << 20, max(16 << 20, int(1.5 * vmem_bytes) + (2 << 20))))

    out = pl.pallas_call(
        _make_kernel(num_layers, T, chunk, bt, hp, mxu_dtype, mask_tail),
        out_shape=jax.ShapeDtypeStruct((bp, op), jnp.float32),
        grid_spec=pltpu.PrefetchScalarGridSpec(
            num_scalar_prefetch=0,
            grid=(nb, nt),
            in_specs=in_specs,
            out_specs=pl.BlockSpec((bt, op), lambda bi, ti: (bi, 0)),
            scratch_shapes=[
                pltpu.VMEM((chunk * bt, 4 * hp), jnp.float32),   # hoisted x-projection
                pltpu.VMEM((chunk * bt, hp), mxu_dtype),         # layer-to-layer hidden chunk
            ] + [pltpu.VMEM((bt, hp), jnp.float32)
                 for _ in range(2 * num_layers)],                # per-layer h, c carries
        ),
        compiler_params=pltpu.CompilerParams(
            dimension_semantics=("parallel", "arbitrary"),
            vmem_limit_bytes=vmem_limit,
        ),
    )(x_tm, *lstm_ws, fc_w, fc_b)

    # Padded batch rows / output lanes are sliced off; LSTM inter-layer dropout and
    # self.dropout are identity in eval mode.
    # TODO(synk): training-mode dropout (inverted-dropout mask via pltpu.prng_*) not implemented.
    return out[:B, :O]


# --------------------------------- init & reference ---------------------------------

def init_params(key, input_size, hidden_size, output_size, num_layers):
    """PyTorch-layout params with U(-1/sqrt(H), 1/sqrt(H)) init."""
    k = 1.0 / math.sqrt(hidden_size)
    params = {"lstm": []}
    for layer in range(num_layers):
        in_sz = input_size if layer == 0 else hidden_size
        key, k1, k2, k3, k4 = jax.random.split(key, 5)
        w_ih = jax.random.uniform(k1, (4 * hidden_size, in_sz), jnp.float32, -k, k)
        w_hh = jax.random.uniform(k2, (4 * hidden_size, hidden_size), jnp.float32, -k, k)
        b_ih = jax.random.uniform(k3, (4 * hidden_size,), jnp.float32, -k, k)
        b_hh = jax.random.uniform(k4, (4 * hidden_size,), jnp.float32, -k, k)
        params["lstm"].append((w_ih, w_hh, b_ih, b_hh))
    key, k5, k6 = jax.random.split(key, 3)
    params["fc_w"] = jax.random.uniform(k5, (output_size, hidden_size), jnp.float32, -k, k)
    params["fc_b"] = jax.random.uniform(k6, (output_size,), jnp.float32, -k, k)
    return params


def music_rnn_reference(x, params):
    """Pure-JAX f32 reference with PyTorch LSTM math (sanity check)."""
    B, T, _ = x.shape
    h_seq = jnp.transpose(x, (1, 0, 2)).astype(jnp.float32)
    h = None
    for (w_ih, w_hh, b_ih, b_hh) in params["lstm"]:
        H = w_hh.shape[1]
        wih_t, whh_t, b = w_ih.T, w_hh.T, (b_ih + b_hh)[None, :]

        def step(carry, x_t, _wih=wih_t, _whh=whh_t, _b=b, _H=H):
            h, c = carry
            gates = x_t @ _wih + h @ _whh + _b
            i_g = jax.nn.sigmoid(gates[:, :_H])
            f_g = jax.nn.sigmoid(gates[:, _H:2 * _H])
            g_g = jnp.tanh(gates[:, 2 * _H:3 * _H])
            o_g = jax.nn.sigmoid(gates[:, 3 * _H:])
            c = f_g * c + i_g * g_g
            h = o_g * jnp.tanh(c)
            return (h, c), h

        (h, _), hs = jax.lax.scan(
            step,
            (jnp.zeros((B, H), jnp.float32), jnp.zeros((B, H), jnp.float32)),
            h_seq)
        h_seq = hs
    return h @ params["fc_w"].T + params["fc_b"][None, :]


if __name__ == "__main__":
    INPUT_SIZE, HIDDEN_SIZE, OUTPUT_SIZE, NUM_LAYERS = 16, 32, 10, 2
    BATCH, SEQ = 2, 8

    key = jax.random.PRNGKey(0)
    key, pkey, xkey = jax.random.split(key, 3)
    params = init_params(pkey, INPUT_SIZE, HIDDEN_SIZE, OUTPUT_SIZE, NUM_LAYERS)
    x = jax.random.normal(xkey, (BATCH, SEQ, INPUT_SIZE), jnp.float32)

    ref = jax.block_until_ready(music_rnn_reference(x, params))

    # f32 MXU-operand path: tight tolerance (layout/padding bugs must show).
    fwd_f32 = jax.jit(functools.partial(music_rnn_forward, mxu_dtype=jnp.float32))
    out_f32 = jax.block_until_ready(fwd_f32(x, params))
    assert out_f32.shape == (BATCH, OUTPUT_SIZE), out_f32.shape
    err_f32 = float(jnp.max(jnp.abs(out_f32 - ref)))
    assert err_f32 < 3e-4, f"f32 path mismatch vs reference: max abs err {err_f32}"

    # bf16 MXU-operand path (f32 accumulate + f32 elementwise): looser tolerance.
    fwd_bf16 = jax.jit(functools.partial(music_rnn_forward, mxu_dtype=jnp.bfloat16))
    out_bf16 = jax.block_until_ready(fwd_bf16(x, params))
    err_bf16 = float(jnp.max(jnp.abs(out_bf16 - ref)))
    assert err_bf16 < 5e-2, f"bf16 path mismatch vs reference: max abs err {err_bf16}"

    print("KERNEL_OK")
</pallas_src>

<mosaic_0001>
module attributes {stable_mosaic.version = 11 : i64} {
  func.func @kernel(%arg0: i32, %arg1: i32, %arg2: memref<8x8x16xf32, #tpu.memory_space<vmem>>, %arg3: memref<16x512xf32, #tpu.memory_space<vmem>>, %arg4: memref<128x512xf32, #tpu.memory_space<vmem>>, %arg5: memref<1x512xf32, #tpu.memory_space<vmem>>, %arg6: memref<128x512xf32, #tpu.memory_space<vmem>>, %arg7: memref<128x512xf32, #tpu.memory_space<vmem>>, %arg8: memref<1x512xf32, #tpu.memory_space<vmem>>, %arg9: memref<128x128xf32, #tpu.memory_space<vmem>>, %arg10: memref<1x128xf32, #tpu.memory_space<vmem>>, %arg11: memref<8x128xf32, #tpu.memory_space<vmem>>, %arg12: memref<64x512xf32, #tpu.memory_space<vmem>>, %arg13: memref<64x128xf32, #tpu.memory_space<vmem>>, %arg14: memref<8x128xf32, #tpu.memory_space<vmem>>, %arg15: memref<8x128xf32, #tpu.memory_space<vmem>>, %arg16: memref<8x128xf32, #tpu.memory_space<vmem>>, %arg17: memref<8x128xf32, #tpu.memory_space<vmem>>) attributes {dimension_semantics = [#tpu.dimension_semantics<parallel>, #tpu.dimension_semantics<arbitrary>], iteration_bounds = array<i64: 1, 1>, scalar_prefetch = 0 : i64, scratch_operands = 6 : i64, tpu.core_type = #tpu.core_type<tc>, window_params = [{transform_indices = @transform_0, window_bounds = array<i64: 8, 8, 16>}, {pipeline_mode = #tpu.pipeline_mode<synchronous>, transform_indices = @transform_1, window_bounds = array<i64: 16, 512>}, {pipeline_mode = #tpu.pipeline_mode<synchronous>, transform_indices = @transform_2, window_bounds = array<i64: 128, 512>}, {pipeline_mode = #tpu.pipeline_mode<synchronous>, transform_indices = @transform_3, window_bounds = array<i64: 1, 512>}, {pipeline_mode = #tpu.pipeline_mode<synchronous>, transform_indices = @transform_4, window_bounds = array<i64: 128, 512>}, {pipeline_mode = #tpu.pipeline_mode<synchronous>, transform_indices = @transform_5, window_bounds = array<i64: 128, 512>}, {pipeline_mode = #tpu.pipeline_mode<synchronous>, transform_indices = @transform_6, window_bounds = array<i64: 1, 512>}, {pipeline_mode = #tpu.pipeline_mode<synchronous>, transform_indices = @transform_7, window_bounds = array<i64: 128, 128>}, {pipeline_mode = #tpu.pipeline_mode<synchronous>, transform_indices = @transform_8, window_bounds = array<i64: 1, 128>}, {transform_indices = @transform_9, window_bounds = array<i64: 8, 128>}]} {
    %c0_i32 = arith.constant 0 : i32
    %0 = arith.cmpi eq, %arg1, %c0_i32 : i32
    %1 = arith.extui %0 : i1 to i32
    %c0_i32_0 = arith.constant 0 : i32
    %2 = arith.cmpi ne, %1, %c0_i32_0 : i32
    scf.if %2 {
      %cst_122 = arith.constant 0.000000e+00 : f32
      %399 = vector.broadcast %cst_122 : f32 to vector<8x128xf32>
      %c0_123 = arith.constant 0 : index
      %c0_124 = arith.constant 0 : index
      %400 = vector.load %arg14[%c0_123, %c0_124] : memref<8x128xf32, #tpu.memory_space<vmem>>, vector<8x128xf32>
      tpu.vector_store %arg14[%c0_123, %c0_124], %399 {strides = array<i32>} : memref<8x128xf32, #tpu.memory_space<vmem>>, vector<8x128xf32>,
      %cst_125 = arith.constant 0.000000e+00 : f32
      %401 = vector.broadcast %cst_125 : f32 to vector<8x128xf32>
      %c0_126 = arith.constant 0 : index
      %c0_127 = arith.constant 0 : index
      %402 = vector.load %arg15[%c0_126, %c0_127] : memref<8x128xf32, #tpu.memory_space<vmem>>, vector<8x128xf32>
      tpu.vector_store %arg15[%c0_126, %c0_127], %401 {strides = array<i32>} : memref<8x128xf32, #tpu.memory_space<vmem>>, vector<8x128xf32>,
      %cst_128 = arith.constant 0.000000e+00 : f32
      %403 = vector.broadcast %cst_128 : f32 to vector<8x128xf32>
      %c0_129 = arith.constant 0 : index
      %c0_130 = arith.constant 0 : index
      %404 = vector.load %arg16[%c0_129, %c0_130] : memref<8x128xf32, #tpu.memory_space<vmem>>, vector<8x128xf32>
      tpu.vector_store %arg16[%c0_129, %c0_130], %403 {strides = array<i32>} : memref<8x128xf32, #tpu.memory_space<vmem>>, vector<8x128xf32>,
      %cst_131 = arith.constant 0.000000e+00 : f32
      %405 = vector.broadcast %cst_131 : f32 to vector<8x128xf32>
      %c0_132 = arith.constant 0 : index
      %c0_133 = arith.constant 0 : index
      %406 = vector.load %arg17[%c0_132, %c0_133] : memref<8x128xf32, #tpu.memory_space<vmem>>, vector<8x128xf32>
      tpu.vector_store %arg17[%c0_132, %c0_133], %405 {strides = array<i32>} : memref<8x128xf32, #tpu.memory_space<vmem>>, vector<8x128xf32>,
    } else {
    }
    %c0 = arith.constant 0 : index
    %c0_1 = arith.constant 0 : index
    %c0_2 = arith.constant 0 : index
    %3 = vector.load %arg2[%c0, %c0_1, %c0_2] : memref<8x8x16xf32, #tpu.memory_space<vmem>>, vector<8x8x16xf32>
    %4 = vector.shape_cast %3 : vector<8x8x16xf32> to vector<64x16xf32>
    %c0_3 = arith.constant 0 : index
    %c0_4 = arith.constant 0 : index
    %5 = vector.load %arg3[%c0_3, %c0_4] : memref<16x512xf32, #tpu.memory_space<vmem>>, vector<16x512xf32>
    %cst = arith.constant dense<0.000000e+00> : vector<64x512xf32>
    %6 = tpu.matmul %4, %5, %cst {dimension_numbers = #tpu.dot_dimension_numbers<[1], [0], [0], [1], [0, 0, 1, 1], [], []>} : vector<64x16xf32>, vector<16x512xf32>, vector<64x512xf32> -> vector<64x512xf32>
    %c0_5 = arith.constant 0 : index
    %c0_6 = arith.constant 0 : index
    %7 = vector.load %arg5[%c0_5, %c0_6] : memref<1x512xf32, #tpu.memory_space<vmem>>, vector<1x512xf32>
    %8 = vector.broadcast %7 : vector<1x512xf32> to vector<64x512xf32>
    %9 = arith.addf %6, %8 : vector<64x512xf32>
    %c0_7 = arith.constant 0 : index
    %c0_8 = arith.constant 0 : index
    %10 = vector.load %arg12[%c0_7, %c0_8] : memref<64x512xf32, #tpu.memory_space<vmem>>, vector<64x512xf32>
    tpu.vector_store %arg12[%c0_7, %c0_8], %9 {strides = array<i32>} : memref<64x512xf32, #tpu.memory_space<vmem>>, vector<64x512xf32>,
    %c0_9 = arith.constant 0 : index
    %c0_10 = arith.constant 0 : index
    %11 = vector.load %arg4[%c0_9, %c0_10] : memref<128x512xf32, #tpu.memory_space<vmem>>, vector<128x512xf32>
    %c0_11 = arith.constant 0 : index
    %c0_12 = arith.constant 0 : index
    %12 = vector.load %arg14[%c0_11, %c0_12] : memref<8x128xf32, #tpu.memory_space<vmem>>, vector<8x128xf32>
    %c0_13 = arith.constant 0 : index
    %c0_14 = arith.constant 0 : index
    %13 = vector.load %arg15[%c0_13, %c0_14] : memref<8x128xf32, #tpu.memory_space<vmem>>, vector<8x128xf32>
    %c0_i32_15 = arith.constant 0 : i32
    %c8_i32 = arith.constant 8 : i32
    %14 = arith.muli %c0_i32_15, %c8_i32 : i32
    %15 = tpu.assume_multiple %14, 8 : i32
    %16 = arith.index_cast %15 : i32 to index
    %c0_16 = arith.constant 0 : index
    %17 = vector.load %arg12[%16, %c0_16] : memref<64x512xf32, #tpu.memory_space<vmem>>, vector<8x512xf32>
    %cst_17 = arith.constant dense<0.000000e+00> : vector<8x512xf32>
    %18 = tpu.matmul %12, %11, %cst_17 {dimension_numbers = #tpu.dot_dimension_numbers<[1], [0], [0], [1], [0, 0, 1, 1], [], []>} : vector<8x128xf32>, vector<128x512xf32>, vector<8x512xf32> -> vector<8x512xf32>
    %19 = arith.addf %17, %18 : vector<8x512xf32>
    %20 = vector.extract_strided_slice %19 {offsets = [0, 0], sizes = [8, 384], strides = [1, 1]} : vector<8x512xf32> to vector<8x384xf32>
    %21 = arith.negf %20 : vector<8x384xf32>
    %22 = math.exp %21 : vector<8x384xf32>
    %cst_18 = arith.constant 1.000000e+00 : f32
    %23 = vector.broadcast %cst_18 : f32 to vector<8x384xf32>
    %24 = arith.addf %23, %22 : vector<8x384xf32>
    %25 = arith.divf %23, %24 : vector<8x384xf32>
    %26 = vector.extract_strided_slice %25 {offsets = [0, 0], sizes = [8, 128], strides = [1, 1]} : vector<8x384xf32> to vector<8x128xf32>
    %27 = vector.extract_strided_slice %25 {offsets = [0, 128], sizes = [8, 128], strides = [1, 1]} : vector<8x384xf32> to vector<8x128xf32>
    %28 = vector.extract_strided_slice %25 {offsets = [0, 256], sizes = [8, 128], strides = [1, 1]} : vector<8x384xf32> to vector<8x128xf32>
    %29 = vector.extract_strided_slice %19 {offsets = [0, 384], sizes = [8, 128], strides = [1, 1]} : vector<8x512xf32> to vector<8x128xf32>
    %30 = math.tanh %29 : vector<8x128xf32>
    %31 = arith.mulf %27, %13 : vector<8x128xf32>
    %32 = arith.mulf %26, %30 : vector<8x128xf32>
    %33 = arith.addf %31, %32 : vector<8x128xf32>
    %34 = math.tanh %33 : vector<8x128xf32>
    %35 = arith.mulf %28, %34 : vector<8x128xf32>
    %36 = arith.index_cast %15 : i32 to index
    %c0_19 = arith.constant 0 : index
    %37 = vector.load %arg13[%36, %c0_19] : memref<64x128xf32, #tpu.memory_space<vmem>>, vector<8x128xf32>
    tpu.vector_store %arg13[%36, %c0_19], %35 {strides = array<i32>} : memref<64x128xf32, #tpu.memory_space<vmem>>, vector<8x128xf32>,
    %c1_i32 = arith.constant 1 : i32
    %c8_i32_20 = arith.constant 8 : i32
    %38 = arith.muli %c1_i32, %c8_i32_20 : i32
    %39 = tpu.assume_multiple %38, 8 : i32
    %40 = arith.index_cast %39 : i32 to index
    %c0_21 = arith.constant 0 : index
    %41 = vector.load %arg12[%40, %c0_21] : memref<64x512xf32, #tpu.memory_space<vmem>>, vector<8x512xf32>
    %cst_22 = arith.constant dense<0.000000e+00> : vector<8x512xf32>
    %42 = tpu.matmul %35, %11, %cst_22 {dimension_numbers = #tpu.dot_dimension_numbers<[1], [0], [0], [1], [0, 0, 1, 1], [], []>} : vector<8x128xf32>, vector<128x512xf32>, vector<8x512xf32> -> vector<8x512xf32>
    %43 = arith.addf %41, %42 : vector<8x512xf32>
    %44 = vector.extract_strided_slice %43 {offsets = [0, 0], sizes = [8, 384], strides = [1, 1]} : vector<8x512xf32> to vector<8x384xf32>
    %45 = arith.negf %44 : vector<8x384xf32>
    %46 = math.exp %45 : vector<8x384xf32>
    %cst_23 = arith.constant 1.000000e+00 : f32
    %47 = vector.broadcast %cst_23 : f32 to vector<8x384xf32>
    %48 = arith.addf %47, %46 : vector<8x384xf32>
    %49 = arith.divf %47, %48 : vector<8x384xf32>
    %50 = vector.extract_strided_slice %49 {offsets = [0, 0], sizes = [8, 128], strides = [1, 1]} : vector<8x384xf32> to vector<8x128xf32>
    %51 = vector.extract_strided_slice %49 {offsets = [0, 128], sizes = [8, 128], strides = [1, 1]} : vector<8x384xf32> to vector<8x128xf32>
    %52 = vector.extract_strided_slice %49 {offsets = [0, 256], sizes = [8, 128], strides = [1, 1]} : vector<8x384xf32> to vector<8x128xf32>
    %53 = vector.extract_strided_slice %43 {offsets = [0, 384], sizes = [8, 128], strides = [1, 1]} : vector<8x512xf32> to vector<8x128xf32>
    %54 = math.tanh %53 : vector<8x128xf32>
    %55 = arith.mulf %51, %33 : vector<8x128xf32>
    %56 = arith.mulf %50, %54 : vector<8x128xf32>
    %57 = arith.addf %55, %56 : vector<8x128xf32>
    %58 = math.tanh %57 : vector<8x128xf32>
    %59 = arith.mulf %52, %58 : vector<8x128xf32>
    %60 = arith.index_cast %39 : i32 to index
    %c0_24 = arith.constant 0 : index
    %61 = vector.load %arg13[%60, %c0_24] : memref<64x128xf32, #tpu.memory_space<vmem>>, vector<8x128xf32>
    tpu.vector_store %arg13[%60, %c0_24], %59 {strides = array<i32>} : memref<64x128xf32, #tpu.memory_space<vmem>>, vector<8x128xf32>,
    %c2_i32 = arith.constant 2 : i32
    %c8_i32_25 = arith.constant 8 : i32
    %62 = arith.muli %c2_i32, %c8_i32_25 : i32
    %63 = tpu.assume_multiple %62, 8 : i32
    %64 = arith.index_cast %63 : i32 to index
    %c0_26 = arith.constant 0 : index
    %65 = vector.load %arg12[%64, %c0_26] : memref<64x512xf32, #tpu.memory_space<vmem>>, vector<8x512xf32>
    %cst_27 = arith.constant dense<0.000000e+00> : vector<8x512xf32>
    %66 = tpu.matmul %59, %11, %cst_27 {dimension_numbers = #tpu.dot_dimension_numbers<[1], [0], [0], [1], [0, 0, 1, 1], [], []>} : vector<8x128xf32>, vector<128x512xf32>, vector<8x512xf32> -> vector<8x512xf32>
    %67 = arith.addf %65, %66 : vector<8x512xf32>
    %68 = vector.extract_strided_slice %67 {offsets = [0, 0], sizes = [8, 384], strides = [1, 1]} : vector<8x512xf32> to vector<8x384xf32>
    %69 = arith.negf %68 : vector<8x384xf32>
    %70 = math.exp %69 : vector<8x384xf32>
    %cst_28 = arith.constant 1.000000e+00 : f32
    %71 = vector.broadcast %cst_28 : f32 to vector<8x384xf32>
    %72 = arith.addf %71, %70 : vector<8x384xf32>
    %73 = arith.divf %71, %72 : vector<8x384xf32>
    %74 = vector.extract_strided_slice %73 {offsets = [0, 0], sizes = [8, 128], strides = [1, 1]} : vector<8x384xf32> to vector<8x128xf32>
    %75 = vector.extract_strided_slice %73 {offsets = [0, 128], sizes = [8, 128], strides = [1, 1]} : vector<8x384xf32> to vector<8x128xf32>
    %76 = vector.extract_strided_slice %73 {offsets = [0, 256], sizes = [8, 128], strides = [1, 1]} : vector<8x384xf32> to vector<8x128xf32>
    %77 = vector.extract_strided_slice %67 {offsets = [0, 384], sizes = [8, 128], strides = [1, 1]} : vector<8x512xf32> to vector<8x128xf32>
    %78 = math.tanh %77 : vector<8x128xf32>
    %79 = arith.mulf %75, %57 : vector<8x128xf32>
    %80 = arith.mulf %74, %78 : vector<8x128xf32>
    %81 = arith.addf %79, %80 : vector<8x128xf32>
    %82 = math.tanh %81 : vector<8x128xf32>
    %83 = arith.mulf %76, %82 : vector<8x128xf32>
    %84 = arith.index_cast %63 : i32 to index
    %c0_29 = arith.constant 0 : index
    %85 = vector.load %arg13[%84, %c0_29] : memref<64x128xf32, #tpu.memory_space<vmem>>, vector<8x128xf32>
    tpu.vector_store %arg13[%84, %c0_29], %83 {strides = array<i32>} : memref<64x128xf32, #tpu.memory_space<vmem>>, vector<8x128xf32>,
    %c3_i32 = arith.constant 3 : i32
    %c8_i32_30 = arith.constant 8 : i32
    %86 = arith.muli %c3_i32, %c8_i32_30 : i32
    %87 = tpu.assume_multiple %86, 8 : i32
    %88 = arith.index_cast %87 : i32 to index
    %c0_31 = arith.constant 0 : index
    %89 = vector.load %arg12[%88, %c0_31] : memref<64x512xf32, #tpu.memory_space<vmem>>, vector<8x512xf32>
    %cst_32 = arith.constant dense<0.000000e+00> : vector<8x512xf32>
    %90 = tpu.matmul %83, %11, %cst_32 {dimension_numbers = #tpu.dot_dimension_numbers<[1], [0], [0], [1], [0, 0, 1, 1], [], []>} : vector<8x128xf32>, vector<128x512xf32>, vector<8x512xf32> -> vector<8x512xf32>
    %91 = arith.addf %89, %90 : vector<8x512xf32>
    %92 = vector.extract_strided_slice %91 {offsets = [0, 0], sizes = [8, 384], strides = [1, 1]} : vector<8x512xf32> to vector<8x384xf32>
    %93 = arith.negf %92 : vector<8x384xf32>
    %94 = math.exp %93 : vector<8x384xf32>
    %cst_33 = arith.constant 1.000000e+00 : f32
    %95 = vector.broadcast %cst_33 : f32 to vector<8x384xf32>
    %96 = arith.addf %95, %94 : vector<8x384xf32>
    %97 = arith.divf %95, %96 : vector<8x384xf32>
    %98 = vector.extract_strided_slice %97 {offsets = [0, 0], sizes = [8, 128], strides = [1, 1]} : vector<8x384xf32> to vector<8x128xf32>
    %99 = vector.extract_strided_slice %97 {offsets = [0, 128], sizes = [8, 128], strides = [1, 1]} : vector<8x384xf32> to vector<8x128xf32>
    %100 = vector.extract_strided_slice %97 {offsets = [0, 256], sizes = [8, 128], strides = [1, 1]} : vector<8x384xf32> to vector<8x128xf32>
    %101 = vector.extract_strided_slice %91 {offsets = [0, 384], sizes = [8, 128], strides = [1, 1]} : vector<8x512xf32> to vector<8x128xf32>
    %102 = math.tanh %101 : vector<8x128xf32>
    %103 = arith.mulf %99, %81 : vector<8x128xf32>
    %104 = arith.mulf %98, %102 : vector<8x128xf32>
    %105 = arith.addf %103, %104 : vector<8x128xf32>
    %106 = math.tanh %105 : vector<8x128xf32>
    %107 = arith.mulf %100, %106 : vector<8x128xf32>
    %108 = arith.index_cast %87 : i32 to index
    %c0_34 = arith.constant 0 : index
    %109 = vector.load %arg13[%108, %c0_34] : memref<64x128xf32, #tpu.memory_space<vmem>>, vector<8x128xf32>
    tpu.vector_store %arg13[%108, %c0_34], %107 {strides = array<i32>} : memref<64x128xf32, #tpu.memory_space<vmem>>, vector<8x128xf32>,
    %c4_i32 = arith.constant 4 : i32
    %c8_i32_35 = arith.constant 8 : i32
    %110 = arith.muli %c4_i32, %c8_i32_35 : i32
    %111 = tpu.assume_multiple %110, 8 : i32
    %112 = arith.index_cast %111 : i32 to index
    %c0_36 = arith.constant 0 : index
    %113 = vector.load %arg12[%112, %c0_36] : memref<64x512xf32, #tpu.memory_space<vmem>>, vector<8x512xf32>
    %cst_37 = arith.constant dense<0.000000e+00> : vector<8x512xf32>
    %114 = tpu.matmul %107, %11, %cst_37 {dimension_numbers = #tpu.dot_dimension_numbers<[1], [0], [0], [1], [0, 0, 1, 1], [], []>} : vector<8x128xf32>, vector<128x512xf32>, vector<8x512xf32> -> vector<8x512xf32>
    %115 = arith.addf %113, %114 : vector<8x512xf32>
    %116 = vector.extract_strided_slice %115 {offsets = [0, 0], sizes = [8, 384], strides = [1, 1]} : vector<8x512xf32> to vector<8x384xf32>
    %117 = arith.negf %116 : vector<8x384xf32>
    %118 = math.exp %117 : vector<8x384xf32>
    %cst_38 = arith.constant 1.000000e+00 : f32
    %119 = vector.broadcast %cst_38 : f32 to vector<8x384xf32>
    %120 = arith.addf %119, %118 : vector<8x384xf32>
    %121 = arith.divf %119, %120 : vector<8x384xf32>
    %122 = vector.extract_strided_slice %121 {offsets = [0, 0], sizes = [8, 128], strides = [1, 1]} : vector<8x384xf32> to vector<8x128xf32>
    %123 = vector.extract_strided_slice %121 {offsets = [0, 128], sizes = [8, 128], strides = [1, 1]} : vector<8x384xf32> to vector<8x128xf32>
    %124 = vector.extract_strided_slice %121 {offsets = [0, 256], sizes = [8, 128], strides = [1, 1]} : vector<8x384xf32> to vector<8x128xf32>
    %125 = vector.extract_strided_slice %115 {offsets = [0, 384], sizes = [8, 128], strides = [1, 1]} : vector<8x512xf32> to vector<8x128xf32>
    %126 = math.tanh %125 : vector<8x128xf32>
    %127 = arith.mulf %123, %105 : vector<8x128xf32>
    %128 = arith.mulf %122, %126 : vector<8x128xf32>
    %129 = arith.addf %127, %128 : vector<8x128xf32>
    %130 = math.tanh %129 : vector<8x128xf32>
    %131 = arith.mulf %124, %130 : vector<8x128xf32>
    %132 = arith.index_cast %111 : i32 to index
    %c0_39 = arith.constant 0 : index
    %133 = vector.load %arg13[%132, %c0_39] : memref<64x128xf32, #tpu.memory_space<vmem>>, vector<8x128xf32>
    tpu.vector_store %arg13[%132, %c0_39], %131 {strides = array<i32>} : memref<64x128xf32, #tpu.memory_space<vmem>>, vector<8x128xf32>,
    %c5_i32 = arith.constant 5 : i32
    %c8_i32_40 = arith.constant 8 : i32
    %134 = arith.muli %c5_i32, %c8_i32_40 : i32
    %135 = tpu.assume_multiple %134, 8 : i32
    %136 = arith.index_cast %135 : i32 to index
    %c0_41 = arith.constant 0 : index
    %137 = vector.load %arg12[%136, %c0_41] : memref<64x512xf32, #tpu.memory_space<vmem>>, vector<8x512xf32>
    %cst_42 = arith.constant dense<0.000000e+00> : vector<8x512xf32>
    %138 = tpu.matmul %131, %11, %cst_42 {dimension_numbers = #tpu.dot_dimension_numbers<[1], [0], [0], [1], [0, 0, 1, 1], [], []>} : vector<8x128xf32>, vector<128x512xf32>, vector<8x512xf32> -> vector<8x512xf32>
    %139 = arith.addf %137, %138 : vector<8x512xf32>
    %140 = vector.extract_strided_slice %139 {offsets = [0, 0], sizes = [8, 384], strides = [1, 1]} : vector<8x512xf32> to vector<8x384xf32>
    %141 = arith.negf %140 : vector<8x384xf32>
    %142 = math.exp %141 : vector<8x384xf32>
    %cst_43 = arith.constant 1.000000e+00 : f32
    %143 = vector.broadcast %cst_43 : f32 to vector<8x384xf32>
    %144 = arith.addf %143, %142 : vector<8x384xf32>
    %145 = arith.divf %143, %144 : vector<8x384xf32>
    %146 = vector.extract_strided_slice %145 {offsets = [0, 0], sizes = [8, 128], strides = [1, 1]} : vector<8x384xf32> to vector<8x128xf32>
    %147 = vector.extract_strided_slice %145 {offsets = [0, 128], sizes = [8, 128], strides = [1, 1]} : vector<8x384xf32> to vector<8x128xf32>
    %148 = vector.extract_strided_slice %145 {offsets = [0, 256], sizes = [8, 128], strides = [1, 1]} : vector<8x384xf32> to vector<8x128xf32>
    %149 = vector.extract_strided_slice %139 {offsets = [0, 384], sizes = [8, 128], strides = [1, 1]} : vector<8x512xf32> to vector<8x128xf32>
    %150 = math.tanh %149 : vector<8x128xf32>
    %151 = arith.mulf %147, %129 : vector<8x128xf32>
    %152 = arith.mulf %146, %150 : vector<8x128xf32>
    %153 = arith.addf %151, %152 : vector<8x128xf32>
    %154 = math.tanh %153 : vector<8x128xf32>
    %155 = arith.mulf %148, %154 : vector<8x128xf32>
    %156 = arith.index_cast %135 : i32 to index
    %c0_44 = arith.constant 0 : index
    %157 = vector.load %arg13[%156, %c0_44] : memref<64x128xf32, #tpu.memory_space<vmem>>, vector<8x128xf32>
    tpu.vector_store %arg13[%156, %c0_44], %155 {strides = array<i32>} : memref<64x128xf32, #tpu.memory_space<vmem>>, vector<8x128xf32>,
    %c6_i32 = arith.constant 6 : i32
    %c8_i32_45 = arith.constant 8 : i32
    %158 = arith.muli %c6_i32, %c8_i32_45 : i32
    %159 = tpu.assume_multiple %158, 8 : i32
    %160 = arith.index_cast %159 : i32 to index
    %c0_46 = arith.constant 0 : index
    %161 = vector.load %arg12[%160, %c0_46] : memref<64x512xf32, #tpu.memory_space<vmem>>, vector<8x512xf32>
    %cst_47 = arith.constant dense<0.000000e+00> : vector<8x512xf32>
    %162 = tpu.matmul %155, %11, %cst_47 {dimension_numbers = #tpu.dot_dimension_numbers<[1], [0], [0], [1], [0, 0, 1, 1], [], []>} : vector<8x128xf32>, vector<128x512xf32>, vector<8x512xf32> -> vector<8x512xf32>
    %163 = arith.addf %161, %162 : vector<8x512xf32>
    %164 = vector.extract_strided_slice %163 {offsets = [0, 0], sizes = [8, 384], strides = [1, 1]} : vector<8x512xf32> to vector<8x384xf32>
    %165 = arith.negf %164 : vector<8x384xf32>
    %166 = math.exp %165 : vector<8x384xf32>
    %cst_48 = arith.constant 1.000000e+00 : f32
    %167 = vector.broadcast %cst_48 : f32 to vector<8x384xf32>
    %168 = arith.addf %167, %166 : vector<8x384xf32>
    %169 = arith.divf %167, %168 : vector<8x384xf32>
    %170 = vector.extract_strided_slice %169 {offsets = [0, 0], sizes = [8, 128], strides = [1, 1]} : vector<8x384xf32> to vector<8x128xf32>
    %171 = vector.extract_strided_slice %169 {offsets = [0, 128], sizes = [8, 128], strides = [1, 1]} : vector<8x384xf32> to vector<8x128xf32>
    %172 = vector.extract_strided_slice %169 {offsets = [0, 256], sizes = [8, 128], strides = [1, 1]} : vector<8x384xf32> to vector<8x128xf32>
    %173 = vector.extract_strided_slice %163 {offsets = [0, 384], sizes = [8, 128], strides = [1, 1]} : vector<8x512xf32> to vector<8x128xf32>
    %174 = math.tanh %173 : vector<8x128xf32>
    %175 = arith.mulf %171, %153 : vector<8x128xf32>
    %176 = arith.mulf %170, %174 : vector<8x128xf32>
    %177 = arith.addf %175, %176 : vector<8x128xf32>
    %178 = math.tanh %177 : vector<8x128xf32>
    %179 = arith.mulf %172, %178 : vector<8x128xf32>
    %180 = arith.index_cast %159 : i32 to index
    %c0_49 = arith.constant 0 : index
    %181 = vector.load %arg13[%180, %c0_49] : memref<64x128xf32, #tpu.memory_space<vmem>>, vector<8x128xf32>
    tpu.vector_store %arg13[%180, %c0_49], %179 {strides = array<i32>} : memref<64x128xf32, #tpu.memory_space<vmem>>, vector<8x128xf32>,
    %c7_i32 = arith.constant 7 : i32
    %c8_i32_50 = arith.constant 8 : i32
    %182 = arith.muli %c7_i32, %c8_i32_50 : i32
    %183 = tpu.assume_multiple %182, 8 : i32
    %184 = arith.index_cast %183 : i32 to index
    %c0_51 = arith.constant 0 : index
    %185 = vector.load %arg12[%184, %c0_51] : memref<64x512xf32, #tpu.memory_space<vmem>>, vector<8x512xf32>
    %cst_52 = arith.constant dense<0.000000e+00> : vector<8x512xf32>
    %186 = tpu.matmul %179, %11, %cst_52 {dimension_numbers = #tpu.dot_dimension_numbers<[1], [0], [0], [1], [0, 0, 1, 1], [], []>} : vector<8x128xf32>, vector<128x512xf32>, vector<8x512xf32> -> vector<8x512xf32>
    %187 = arith.addf %185, %186 : vector<8x512xf32>
    %188 = vector.extract_strided_slice %187 {offsets = [0, 0], sizes = [8, 384], strides = [1, 1]} : vector<8x512xf32> to vector<8x384xf32>
    %189 = arith.negf %188 : vector<8x384xf32>
    %190 = math.exp %189 : vector<8x384xf32>
    %cst_53 = arith.constant 1.000000e+00 : f32
    %191 = vector.broadcast %cst_53 : f32 to vector<8x384xf32>
    %192 = arith.addf %191, %190 : vector<8x384xf32>
    %193 = arith.divf %191, %192 : vector<8x384xf32>
    %194 = vector.extract_strided_slice %193 {offsets = [0, 0], sizes = [8, 128], strides = [1, 1]} : vector<8x384xf32> to vector<8x128xf32>
    %195 = vector.extract_strided_slice %193 {offsets = [0, 128], sizes = [8, 128], strides = [1, 1]} : vector<8x384xf32> to vector<8x128xf32>
    %196 = vector.extract_strided_slice %193 {offsets = [0, 256], sizes = [8, 128], strides = [1, 1]} : vector<8x384xf32> to vector<8x128xf32>
    %197 = vector.extract_strided_slice %187 {offsets = [0, 384], sizes = [8, 128], strides = [1, 1]} : vector<8x512xf32> to vector<8x128xf32>
    %198 = math.tanh %197 : vector<8x128xf32>
    %199 = arith.mulf %195, %177 : vector<8x128xf32>
    %200 = arith.mulf %194, %198 : vector<8x128xf32>
    %201 = arith.addf %199, %200 : vector<8x128xf32>
    %202 = math.tanh %201 : vector<8x128xf32>
    %203 = arith.mulf %196, %202 : vector<8x128xf32>
    %204 = arith.index_cast %183 : i32 to index
    %c0_54 = arith.constant 0 : index
    %205 = vector.load %arg13[%204, %c0_54] : memref<64x128xf32, #tpu.memory_space<vmem>>, vector<8x128xf32>
    tpu.vector_store %arg13[%204, %c0_54], %203 {strides = array<i32>} : memref<64x128xf32, #tpu.memory_space<vmem>>, vector<8x128xf32>,
    %c8_i32_55 = arith.constant 8 : i32
    %c0_56 = arith.constant 0 : index
    %c0_57 = arith.constant 0 : index
    %206 = vector.load %arg14[%c0_56, %c0_57] : memref<8x128xf32, #tpu.memory_space<vmem>>, vector<8x128xf32>
    tpu.vector_store %arg14[%c0_56, %c0_57], %203 {strides = array<i32>} : memref<8x128xf32, #tpu.memory_space<vmem>>, vector<8x128xf32>,
    %c0_58 = arith.constant 0 : index
    %c0_59 = arith.constant 0 : index
    %207 = vector.load %arg15[%c0_58, %c0_59] : memref<8x128xf32, #tpu.memory_space<vmem>>, vector<8x128xf32>
    tpu.vector_store %arg15[%c0_58, %c0_59], %201 {strides = array<i32>} : memref<8x128xf32, #tpu.memory_space<vmem>>, vector<8x128xf32>,
    %c0_60 = arith.constant 0 : index
    %c0_61 = arith.constant 0 : index
    %208 = vector.load %arg13[%c0_60, %c0_61] : memref<64x128xf32, #tpu.memory_space<vmem>>, vector<64x128xf32>
    %c0_62 = arith.constant 0 : index
    %c0_63 = arith.constant 0 : index
    %209 = vector.load %arg6[%c0_62, %c0_63] : memref<128x512xf32, #tpu.memory_space<vmem>>, vector<128x512xf32>
    %cst_64 = arith.constant dense<0.000000e+00> : vector<64x512xf32>
    %210 = tpu.matmul %208, %209, %cst_64 {dimension_numbers = #tpu.dot_dimension_numbers<[1], [0], [0], [1], [0, 0, 1, 1], [], []>} : vector<64x128xf32>, vector<128x512xf32>, vector<64x512xf32> -> vector<64x512xf32>
    %c0_65 = arith.constant 0 : index
    %c0_66 = arith.constant 0 : index
    %211 = vector.load %arg8[%c0_65, %c0_66] : memref<1x512xf32, #tpu.memory_space<vmem>>, vector<1x512xf32>
    %212 = vector.broadcast %211 : vector<1x512xf32> to vector<64x512xf32>
    %213 = arith.addf %210, %212 : vector<64x512xf32>
    %c0_67 = arith.constant 0 : index
    %c0_68 = arith.constant 0 : index
    %214 = vector.load %arg12[%c0_67, %c0_68] : memref<64x512xf32, #tpu.memory_space<vmem>>, vector<64x512xf32>
    tpu.vector_store %arg12[%c0_67, %c0_68], %213 {strides = array<i32>} : memref<64x512xf32, #tpu.memory_space<vmem>>, vector<64x512xf32>,
    %c0_69 = arith.constant 0 : index
    %c0_70 = arith.constant 0 : index
    %215 = vector.load %arg7[%c0_69, %c0_70] : memref<128x512xf32, #tpu.memory_space<vmem>>, vector<128x512xf32>
    %c0_71 = arith.constant 0 : index
    %c0_72 = arith.constant 0 : index
    %216 = vector.load %arg16[%c0_71, %c0_72] : memref<8x128xf32, #tpu.memory_space<vmem>>, vector<8x128xf32>
    %c0_73 = arith.constant 0 : index
    %c0_74 = arith.constant 0 : index
    %217 = vector.load %arg17[%c0_73, %c0_74] : memref<8x128xf32, #tpu.memory_space<vmem>>, vector<8x128xf32>
    %c0_i32_75 = arith.constant 0 : i32
    %c8_i32_76 = arith.constant 8 : i32
    %218 = arith.muli %c0_i32_75, %c8_i32_76 : i32
    %219 = tpu.assume_multiple %218, 8 : i32
    %220 = arith.index_cast %219 : i32 to index
    %c0_77 = arith.constant 0 : index
    %221 = vector.load %arg12[%220, %c0_77] : memref<64x512xf32, #tpu.memory_space<vmem>>, vector<8x512xf32>
    %cst_78 = arith.constant dense<0.000000e+00> : vector<8x512xf32>
    %222 = tpu.matmul %216, %215, %cst_78 {dimension_numbers = #tpu.dot_dimension_numbers<[1], [0], [0], [1], [0, 0, 1, 1], [], []>} : vector<8x128xf32>, vector<128x512xf32>, vector<8x512xf32> -> vector<8x512xf32>
    %223 = arith.addf %221, %222 : vector<8x512xf32>
    %224 = vector.extract_strided_slice %223 {offsets = [0, 0], sizes = [8, 384], strides = [1, 1]} : vector<8x512xf32> to vector<8x384xf32>
    %225 = arith.negf %224 : vector<8x384xf32>
    %226 = math.exp %225 : vector<8x384xf32>
    %cst_79 = arith.constant 1.000000e+00 : f32
    %227 = vector.broadcast %cst_79 : f32 to vector<8x384xf32>
    %228 = arith.addf %227, %226 : vector<8x384xf32>
    %229 = arith.divf %227, %228 : vector<8x384xf32>
    %230 = vector.extract_strided_slice %229 {offsets = [0, 0], sizes = [8, 128], strides = [1, 1]} : vector<8x384xf32> to vector<8x128xf32>
    %231 = vector.extract_strided_slice %229 {offsets = [0, 128], sizes = [8, 128], strides = [1, 1]} : vector<8x384xf32> to vector<8x128xf32>
    %232 = vector.extract_strided_slice %229 {offsets = [0, 256], sizes = [8, 128], strides = [1, 1]} : vector<8x384xf32> to vector<8x128xf32>
    %233 = vector.extract_strided_slice %223 {offsets = [0, 384], sizes = [8, 128], strides = [1, 1]} : vector<8x512xf32> to vector<8x128xf32>
    %234 = math.tanh %233 : vector<8x128xf32>
    %235 = arith.mulf %231, %217 : vector<8x128xf32>
    %236 = arith.mulf %230, %234 : vector<8x128xf32>
    %237 = arith.addf %235, %236 : vector<8x128xf32>
    %238 = math.tanh %237 : vector<8x128xf32>
    %239 = arith.mulf %232, %238 : vector<8x128xf32>
    %c1_i32_80 = arith.constant 1 : i32
    %c8_i32_81 = arith.constant 8 : i32
    %240 = arith.muli %c1_i32_80, %c8_i32_81 : i32
    %241 = tpu.assume_multiple %240, 8 : i32
    %242 = arith.index_cast %241 : i32 to index
    %c0_82 = arith.constant 0 : index
    %243 = vector.load %arg12[%242, %c0_82] : memref<64x512xf32, #tpu.memory_space<vmem>>, vector<8x512xf32>
    %cst_83 = arith.constant dense<0.000000e+00> : vector<8x512xf32>
    %244 = tpu.matmul %239, %215, %cst_83 {dimension_numbers = #tpu.dot_dimension_numbers<[1], [0], [0], [1], [0, 0, 1, 1], [], []>} : vector<8x128xf32>, vector<128x512xf32>, vector<8x512xf32> -> vector<8x512xf32>
    %245 = arith.addf %243, %244 : vector<8x512xf32>
    %246 = vector.extract_strided_slice %245 {offsets = [0, 0], sizes = [8, 384], strides = [1, 1]} : vector<8x512xf32> to vector<8x384xf32>
    %247 = arith.negf %246 : vector<8x384xf32>
    %248 = math.exp %247 : vector<8x384xf32>
    %cst_84 = arith.constant 1.000000e+00 : f32
    %249 = vector.broadcast %cst_84 : f32 to vector<8x384xf32>
    %250 = arith.addf %249, %248 : vector<8x384xf32>
    %251 = arith.divf %249, %250 : vector<8x384xf32>
    %252 = vector.extract_strided_slice %251 {offsets = [0, 0], sizes = [8, 128], strides = [1, 1]} : vector<8x384xf32> to vector<8x128xf32>
    %253 = vector.extract_strided_slice %251 {offsets = [0, 128], sizes = [8, 128], strides = [1, 1]} : vector<8x384xf32> to vector<8x128xf32>
    %254 = vector.extract_strided_slice %251 {offsets = [0, 256], sizes = [8, 128], strides = [1, 1]} : vector<8x384xf32> to vector<8x128xf32>
    %255 = vector.extract_strided_slice %245 {offsets = [0, 384], sizes = [8, 128], strides = [1, 1]} : vector<8x512xf32> to vector<8x128xf32>
    %256 = math.tanh %255 : vector<8x128xf32>
    %257 = arith.mulf %253, %237 : vector<8x128xf32>
    %258 = arith.mulf %252, %256 : vector<8x128xf32>
    %259 = arith.addf %257, %258 : vector<8x128xf32>
    %260 = math.tanh %259 : vector<8x128xf32>
    %261 = arith.mulf %254, %260 : vector<8x128xf32>
    %c2_i32_85 = arith.constant 2 : i32
    %c8_i32_86 = arith.constant 8 : i32
    %262 = arith.muli %c2_i32_85, %c8_i32_86 : i32
    %263 = tpu.assume_multiple %262, 8 : i32
    %264 = arith.index_cast %263 : i32 to index
    %c0_87 = arith.constant 0 : index
    %265 = vector.load %arg12[%264, %c0_87] : memref<64x512xf32, #tpu.memory_space<vmem>>, vector<8x512xf32>
    %cst_88 = arith.constant dense<0.000000e+00> : vector<8x512xf32>
    %266 = tpu.matmul %261, %215, %cst_88 {dimension_numbers = #tpu.dot_dimension_numbers<[1], [0], [0], [1], [0, 0, 1, 1], [], []>} : vector<8x128xf32>, vector<128x512xf32>, vector<8x512xf32> -> vector<8x512xf32>
    %267 = arith.addf %265, %266 : vector<8x512xf32>
    %268 = vector.extract_strided_slice %267 {offsets = [0, 0], sizes = [8, 384], strides = [1, 1]} : vector<8x512xf32> to vector<8x384xf32>
    %269 = arith.negf %268 : vector<8x384xf32>
    %270 = math.exp %269 : vector<8x384xf32>
    %cst_89 = arith.constant 1.000000e+00 : f32
    %271 = vector.broadcast %cst_89 : f32 to vector<8x384xf32>
    %272 = arith.addf %271, %270 : vector<8x384xf32>
    %273 = arith.divf %271, %272 : vector<8x384xf32>
    %274 = vector.extract_strided_slice %273 {offsets = [0, 0], sizes = [8, 128], strides = [1, 1]} : vector<8x384xf32> to vector<8x128xf32>
    %275 = vector.extract_strided_slice %273 {offsets = [0, 128], sizes = [8, 128], strides = [1, 1]} : vector<8x384xf32> to vector<8x128xf32>
    %276 = vector.extract_strided_slice %273 {offsets = [0, 256], sizes = [8, 128], strides = [1, 1]} : vector<8x384xf32> to vector<8x128xf32>
    %277 = vector.extract_strided_slice %267 {offsets = [0, 384], sizes = [8, 128], strides = [1, 1]} : vector<8x512xf32> to vector<8x128xf32>
    %278 = math.tanh %277 : vector<8x128xf32>
    %279 = arith.mulf %275, %259 : vector<8x128xf32>
    %280 = arith.mulf %274, %278 : vector<8x128xf32>
    %281 = arith.addf %279, %280 : vector<8x128xf32>
    %282 = math.tanh %281 : vector<8x128xf32>
    %283 = arith.mulf %276, %282 : vector<8x128xf32>
    %c3_i32_90 = arith.constant 3 : i32
    %c8_i32_91 = arith.constant 8 : i32
    %284 = arith.muli %c3_i32_90, %c8_i32_91 : i32
    %285 = tpu.assume_multiple %284, 8 : i32
    %286 = arith.index_cast %285 : i32 to index
    %c0_92 = arith.constant 0 : index
    %287 = vector.load %arg12[%286, %c0_92] : memref<64x512xf32, #tpu.memory_space<vmem>>, vector<8x512xf32>
    %cst_93 = arith.constant dense<0.000000e+00> : vector<8x512xf32>
    %288 = tpu.matmul %283, %215, %cst_93 {dimension_numbers = #tpu.dot_dimension_numbers<[1], [0], [0], [1], [0, 0, 1, 1], [], []>} : vector<8x128xf32>, vector<128x512xf32>, vector<8x512xf32> -> vector<8x512xf32>
    %289 = arith.addf %287, %288 : vector<8x512xf32>
    %290 = vector.extract_strided_slice %289 {offsets = [0, 0], sizes = [8, 384], strides = [1, 1]} : vector<8x512xf32> to vector<8x384xf32>
    %291 = arith.negf %290 : vector<8x384xf32>
    %292 = math.exp %291 : vector<8x384xf32>
    %cst_94 = arith.constant 1.000000e+00 : f32
    %293 = vector.broadcast %cst_94 : f32 to vector<8x384xf32>
    %294 = arith.addf %293, %292 : vector<8x384xf32>
    %295 = arith.divf %293, %294 : vector<8x384xf32>
    %296 = vector.extract_strided_slice %295 {offsets = [0, 0], sizes = [8, 128], strides = [1, 1]} : vector<8x384xf32> to vector<8x128xf32>
    %297 = vector.extract_strided_slice %295 {offsets = [0, 128], sizes = [8, 128], strides = [1, 1]} : vector<8x384xf32> to vector<8x128xf32>
    %298 = vector.extract_strided_slice %295 {offsets = [0, 256], sizes = [8, 128], strides = [1, 1]} : vector<8x384xf32> to vector<8x128xf32>
    %299 = vector.extract_strided_slice %289 {offsets = [0, 384], sizes = [8, 128], strides = [1, 1]} : vector<8x512xf32> to vector<8x128xf32>
    %300 = math.tanh %299 : vector<8x128xf32>
    %301 = arith.mulf %297, %281 : vector<8x128xf32>
    %302 = arith.mulf %296, %300 : vector<8x128xf32>
    %303 = arith.addf %301, %302 : vector<8x128xf32>
    %304 = math.tanh %303 : vector<8x128xf32>
    %305 = arith.mulf %298, %304 : vector<8x128xf32>
    %c4_i32_95 = arith.constant 4 : i32
    %c8_i32_96 = arith.constant 8 : i32
    %306 = arith.muli %c4_i32_95, %c8_i32_96 : i32
    %307 = tpu.assume_multiple %306, 8 : i32
    %308 = arith.index_cast %307 : i32 to index
    %c0_97 = arith.constant 0 : index
    %309 = vector.load %arg12[%308, %c0_97] : memref<64x512xf32, #tpu.memory_space<vmem>>, vector<8x512xf32>
    %cst_98 = arith.constant dense<0.000000e+00> : vector<8x512xf32>
    %310 = tpu.matmul %305, %215, %cst_98 {dimension_numbers = #tpu.dot_dimension_numbers<[1], [0], [0], [1], [0, 0, 1, 1], [], []>} : vector<8x128xf32>, vector<128x512xf32>, vector<8x512xf32> -> vector<8x512xf32>
    %311 = arith.addf %309, %310 : vector<8x512xf32>
    %312 = vector.extract_strided_slice %311 {offsets = [0, 0], sizes = [8, 384], strides = [1, 1]} : vector<8x512xf32> to vector<8x384xf32>
    %313 = arith.negf %312 : vector<8x384xf32>
    %314 = math.exp %313 : vector<8x384xf32>
    %cst_99 = arith.constant 1.000000e+00 : f32
    %315 = vector.broadcast %cst_99 : f32 to vector<8x384xf32>
    %316 = arith.addf %315, %314 : vector<8x384xf32>
    %317 = arith.divf %315, %316 : vector<8x384xf32>
    %318 = vector.extract_strided_slice %317 {offsets = [0, 0], sizes = [8, 128], strides = [1, 1]} : vector<8x384xf32> to vector<8x128xf32>
    %319 = vector.extract_strided_slice %317 {offsets = [0, 128], sizes = [8, 128], strides = [1, 1]} : vector<8x384xf32> to vector<8x128xf32>
    %320 = vector.extract_strided_slice %317 {offsets = [0, 256], sizes = [8, 128], strides = [1, 1]} : vector<8x384xf32> to vector<8x128xf32>
    %321 = vector.extract_strided_slice %311 {offsets = [0, 384], sizes = [8, 128], strides = [1, 1]} : vector<8x512xf32> to vector<8x128xf32>
    %322 = math.tanh %321 : vector<8x128xf32>
    %323 = arith.mulf %319, %303 : vector<8x128xf32>
    %324 = arith.mulf %318, %322 : vector<8x128xf32>
    %325 = arith.addf %323, %324 : vector<8x128xf32>
    %326 = math.tanh %325 : vector<8x128xf32>
    %327 = arith.mulf %320, %326 : vector<8x128xf32>
    %c5_i32_100 = arith.constant 5 : i32
    %c8_i32_101 = arith.constant 8 : i32
    %328 = arith.muli %c5_i32_100, %c8_i32_101 : i32
    %329 = tpu.assume_multiple %328, 8 : i32
    %330 = arith.index_cast %329 : i32 to index
    %c0_102 = arith.constant 0 : index
    %331 = vector.load %arg12[%330, %c0_102] : memref<64x512xf32, #tpu.memory_space<vmem>>, vector<8x512xf32>
    %cst_103 = arith.constant dense<0.000000e+00> : vector<8x512xf32>
    %332 = tpu.matmul %327, %215, %cst_103 {dimension_numbers = #tpu.dot_dimension_numbers<[1], [0], [0], [1], [0, 0, 1, 1], [], []>} : vector<8x128xf32>, vector<128x512xf32>, vector<8x512xf32> -> vector<8x512xf32>
    %333 = arith.addf %331, %332 : vector<8x512xf32>
    %334 = vector.extract_strided_slice %333 {offsets = [0, 0], sizes = [8, 384], strides = [1, 1]} : vector<8x512xf32> to vector<8x384xf32>
    %335 = arith.negf %334 : vector<8x384xf32>
    %336 = math.exp %335 : vector<8x384xf32>
    %cst_104 = arith.constant 1.000000e+00 : f32
    %337 = vector.broadcast %cst_104 : f32 to vector<8x384xf32>
    %338 = arith.addf %337, %336 : vector<8x384xf32>
    %339 = arith.divf %337, %338 : vector<8x384xf32>
    %340 = vector.extract_strided_slice %339 {offsets = [0, 0], sizes = [8, 128], strides = [1, 1]} : vector<8x384xf32> to vector<8x128xf32>
    %341 = vector.extract_strided_slice %339 {offsets = [0, 128], sizes = [8, 128], strides = [1, 1]} : vector<8x384xf32> to vector<8x128xf32>
    %342 = vector.extract_strided_slice %339 {offsets = [0, 256], sizes = [8, 128], strides = [1, 1]} : vector<8x384xf32> to vector<8x128xf32>
    %343 = vector.extract_strided_slice %333 {offsets = [0, 384], sizes = [8, 128], strides = [1, 1]} : vector<8x512xf32> to vector<8x128xf32>
    %344 = math.tanh %343 : vector<8x128xf32>
    %345 = arith.mulf %341, %325 : vector<8x128xf32>
    %346 = arith.mulf %340, %344 : vector<8x128xf32>
    %347 = arith.addf %345, %346 : vector<8x128xf32>
    %348 = math.tanh %347 : vector<8x128xf32>
    %349 = arith.mulf %342, %348 : vector<8x128xf32>
    %c6_i32_105 = arith.constant 6 : i32
    %c8_i32_106 = arith.constant 8 : i32
    %350 = arith.muli %c6_i32_105, %c8_i32_106 : i32
    %351 = tpu.assume_multiple %350, 8 : i32
    %352 = arith.index_cast %351 : i32 to index
    %c0_107 = arith.constant 0 : index
    %353 = vector.load %arg12[%352, %c0_107] : memref<64x512xf32, #tpu.memory_space<vmem>>, vector<8x512xf32>
    %cst_108 = arith.constant dense<0.000000e+00> : vector<8x512xf32>
    %354 = tpu.matmul %349, %215, %cst_108 {dimension_numbers = #tpu.dot_dimension_numbers<[1], [0], [0], [1], [0, 0, 1, 1], [], []>} : vector<8x128xf32>, vector<128x512xf32>, vector<8x512xf32> -> vector<8x512xf32>
    %355 = arith.addf %353, %354 : vector<8x512xf32>
    %356 = vector.extract_strided_slice %355 {offsets = [0, 0], sizes = [8, 384], strides = [1, 1]} : vector<8x512xf32> to vector<8x384xf32>
    %357 = arith.negf %356 : vector<8x384xf32>
    %358 = math.exp %357 : vector<8x384xf32>
    %cst_109 = arith.constant 1.000000e+00 : f32
    %359 = vector.broadcast %cst_109 : f32 to vector<8x384xf32>
    %360 = arith.addf %359, %358 : vector<8x384xf32>
    %361 = arith.divf %359, %360 : vector<8x384xf32>
    %362 = vector.extract_strided_slice %361 {offsets = [0, 0], sizes = [8, 128], strides = [1, 1]} : vector<8x384xf32> to vector<8x128xf32>
    %363 = vector.extract_strided_slice %361 {offsets = [0, 128], sizes = [8, 128], strides = [1, 1]} : vector<8x384xf32> to vector<8x128xf32>
    %364 = vector.extract_strided_slice %361 {offsets = [0, 256], sizes = [8, 128], strides = [1, 1]} : vector<8x384xf32> to vector<8x128xf32>
    %365 = vector.extract_strided_slice %355 {offsets = [0, 384], sizes = [8, 128], strides = [1, 1]} : vector<8x512xf32> to vector<8x128xf32>
    %366 = math.tanh %365 : vector<8x128xf32>
    %367 = arith.mulf %363, %347 : vector<8x128xf32>
    %368 = arith.mulf %362, %366 : vector<8x128xf32>
    %369 = arith.addf %367, %368 : vector<8x128xf32>
    %370 = math.tanh %369 : vector<8x128xf32>
    %371 = arith.mulf %364, %370 : vector<8x128xf32>
    %c7_i32_110 = arith.constant 7 : i32
    %c8_i32_111 = arith.constant 8 : i32
    %372 = arith.muli %c7_i32_110, %c8_i32_111 : i32
    %373 = tpu.assume_multiple %372, 8 : i32
    %374 = arith.index_cast %373 : i32 to index
    %c0_112 = arith.constant 0 : index
    %375 = vector.load %arg12[%374, %c0_112] : memref<64x512xf32, #tpu.memory_space<vmem>>, vector<8x512xf32>
    %cst_113 = arith.constant dense<0.000000e+00> : vector<8x512xf32>
    %376 = tpu.matmul %371, %215, %cst_113 {dimension_numbers = #tpu.dot_dimension_numbers<[1], [0], [0], [1], [0, 0, 1, 1], [], []>} : vector<8x128xf32>, vector<128x512xf32>, vector<8x512xf32> -> vector<8x512xf32>
    %377 = arith.addf %375, %376 : vector<8x512xf32>
    %378 = vector.extract_strided_slice %377 {offsets = [0, 0], sizes = [8, 384], strides = [1, 1]} : vector<8x512xf32> to vector<8x384xf32>
    %379 = arith.negf %378 : vector<8x384xf32>
    %380 = math.exp %379 : vector<8x384xf32>
    %cst_114 = arith.constant 1.000000e+00 : f32
    %381 = vector.broadcast %cst_114 : f32 to vector<8x384xf32>
    %382 = arith.addf %381, %380 : vector<8x384xf32>
    %383 = arith.divf %381, %382 : vector<8x384xf32>
    %384 = vector.extract_strided_slice %383 {offsets = [0, 0], sizes = [8, 128], strides = [1, 1]} : vector<8x384xf32> to vector<8x128xf32>
    %385 = vector.extract_strided_slice %383 {offsets = [0, 128], sizes = [8, 128], strides = [1, 1]} : vector<8x384xf32> to vector<8x128xf32>
    %386 = vector.extract_strided_slice %383 {offsets = [0, 256], sizes = [8, 128], strides = [1, 1]} : vector<8x384xf32> to vector<8x128xf32>
    %387 = vector.extract_strided_slice %377 {offsets = [0, 384], sizes = [8, 128], strides = [1, 1]} : vector<8x512xf32> to vector<8x128xf32>
    %388 = math.tanh %387 : vector<8x128xf32>
    %389 = arith.mulf %385, %369 : vector<8x128xf32>
    %390 = arith.mulf %384, %388 : vector<8x128xf32>
    %391 = arith.addf %389, %390 : vector<8x128xf32>
    %392 = math.tanh %391 : vector<8x128xf32>
    %393 = arith.mulf %386, %392 : vector<8x128xf32>
    %c8_i32_115 = arith.constant 8 : i32
    %c0_116 = arith.constant 0 : index
    %c0_117 = arith.constant 0 : index
    %394 = vector.load %arg16[%c0_116, %c0_117] : memref<8x128xf32, #tpu.memory_space<vmem>>, vector<8x128xf32>
    tpu.vector_store %arg16[%c0_116, %c0_117], %393 {strides = array<i32>} : memref<8x128xf32, #tpu.memory_space<vmem>>, vector<8x128xf32>,
    %c0_118 = arith.constant 0 : index
    %c0_119 = arith.constant 0 : index
    %395 = vector.load %arg17[%c0_118, %c0_119] : memref<8x128xf32, #tpu.memory_space<vmem>>, vector<8x128xf32>
    tpu.vector_store %arg17[%c0_118, %c0_119], %391 {strides = array<i32>} : memref<8x128xf32, #tpu.memory_space<vmem>>, vector<8x128xf32>,
    %c0_i32_120 = arith.constant 0 : i32
    %396 = arith.cmpi eq, %arg1, %c0_i32_120 : i32
    %397 = arith.extui %396 : i1 to i32
    %c0_i32_121 = arith.constant 0 : i32
    %398 = arith.cmpi ne, %397, %c0_i32_121 : i32
    scf.if %398 {
      %c0_122 = arith.constant 0 : index
      %c0_123 = arith.constant 0 : index
      %399 = vector.load %arg16[%c0_122, %c0_123] : memref<8x128xf32, #tpu.memory_space<vmem>>, vector<8x128xf32>
      %c0_124 = arith.constant 0 : index
      %c0_125 = arith.constant 0 : index
      %400 = vector.load %arg9[%c0_124, %c0_125] : memref<128x128xf32, #tpu.memory_space<vmem>>, vector<128x128xf32>
      %cst_126 = arith.constant dense<0.000000e+00> : vector<8x128xf32>
      %401 = tpu.matmul %399, %400, %cst_126 {dimension_numbers = #tpu.dot_dimension_numbers<[1], [0], [0], [1], [0, 0, 1, 1], [], []>} : vector<8x128xf32>, vector<128x128xf32>, vector<8x128xf32> -> vector<8x128xf32>
      %c0_127 = arith.constant 0 : index
      %c0_128 = arith.constant 0 : index
      %402 = vector.load %arg10[%c0_127, %c0_128] : memref<1x128xf32, #tpu.memory_space<vmem>>, vector<1x128xf32>
      %403 = vector.broadcast %402 : vector<1x128xf32> to vector<8x128xf32>
      %404 = arith.addf %401, %403 : vector<8x128xf32>
      %c0_129 = arith.constant 0 : index
      %c0_130 = arith.constant 0 : index
      %405 = vector.load %arg11[%c0_129, %c0_130] : memref<8x128xf32, #tpu.memory_space<vmem>>, vector<8x128xf32>
      tpu.vector_store %arg11[%c0_129, %c0_130], %404 {strides = array<i32>} : memref<8x128xf32, #tpu.memory_space<vmem>>, vector<8x128xf32>,
    } else {
    }
    return
  }
  func.func @transform_0(%arg0: i32, %arg1: i32) -> (i32, i32, i32) {
    %c0_i32 = arith.constant 0 : i32
    %c0_i32_0 = arith.constant 0 : i32
    return %arg1, %arg0, %c0_i32 : i32, i32, i32
  }
  func.func @transform_1(%arg0: i32, %arg1: i32) -> (i32, i32) {
    %c0_i32 = arith.constant 0 : i32
    %c0_i32_0 = arith.constant 0 : i32
    %c0_i32_1 = arith.constant 0 : i32
    return %c0_i32, %c0_i32_0 : i32, i32
  }
  func.func @transform_2(%arg0: i32, %arg1: i32) -> (i32, i32) {
    %c0_i32 = arith.constant 0 : i32
    %c0_i32_0 = arith.constant 0 : i32
    %c0_i32_1 = arith.constant 0 : i32
    return %c0_i32, %c0_i32_0 : i32, i32
  }
  func.func @transform_3(%arg0: i32, %arg1: i32) -> (i32, i32) {
    %c0_i32 = arith.constant 0 : i32
    %c0_i32_0 = arith.constant 0 : i32
    %c0_i32_1 = arith.constant 0 : i32
    return %c0_i32, %c0_i32_0 : i32, i32
  }
  func.func @transform_4(%arg0: i32, %arg1: i32) -> (i32, i32) {
    %c0_i32 = arith.constant 0 : i32
    %c0_i32_0 = arith.constant 0 : i32
    %c0_i32_1 = arith.constant 0 : i32
    return %c0_i32, %c0_i32_0 : i32, i32
  }
  func.func @transform_5(%arg0: i32, %arg1: i32) -> (i32, i32) {
    %c0_i32 = arith.constant 0 : i32
    %c0_i32_0 = arith.constant 0 : i32
    %c0_i32_1 = arith.constant 0 : i32
    return %c0_i32, %c0_i32_0 : i32, i32
  }
  func.func @transform_6(%arg0: i32, %arg1: i32) -> (i32, i32) {
    %c0_i32 = arith.constant 0 : i32
    %c0_i32_0 = arith.constant 0 : i32
    %c0_i32_1 = arith.constant 0 : i32
    return %c0_i32, %c0_i32_0 : i32, i32
  }
  func.func @transform_7(%arg0: i32, %arg1: i32) -> (i32, i32) {
    %c0_i32 = arith.constant 0 : i32
    %c0_i32_0 = arith.constant 0 : i32
    %c0_i32_1 = arith.constant 0 : i32
    return %c0_i32, %c0_i32_0 : i32, i32
  }
  func.func @transform_8(%arg0: i32, %arg1: i32) -> (i32, i32) {
    %c0_i32 = arith.constant 0 : i32
    %c0_i32_0 = arith.constant 0 : i32
    %c0_i32_1 = arith.constant 0 : i32
    return %c0_i32, %c0_i32_0 : i32, i32
  }
  func.func @transform_9(%arg0: i32, %arg1: i32) -> (i32, i32) {
    %c0_i32 = arith.constant 0 : i32
    %c0_i32_0 = arith.constant 0 : i32
    return %arg0, %c0_i32 : i32, i32
  }
}

</mosaic_0001>

<llo_original>
// kernel: music_rnn_forward.1
$region0: #{music_rnn_forward.1}
  #allocation0 [shape = 'u32[]', space=smem, size = 0x4, offset = 0x4, fixed_abs, tag = 'smem constant byte address 0x4 - core index']
  #allocation1 [shape = 'u32[144,128]{1,0:T(1,128)}', space=vmem, size = 0x12000, scoped, tag = 'internal scratch']
  #allocation2 [shape = 'f32[64,512]{1,0:T(8,128)}', space=vmem, size = 0x20000, scoped, tag = 'scratch operand']
  #allocation3 [shape = 'f32[64,128]{1,0:T(8,128)}', space=vmem, size = 0x8000, scoped, tag = 'scratch operand']
  #allocation4 [shape = 'f32[8,128]{1,0:T(8,128)}', space=vmem, size = 0x1000, scoped, tag = 'scratch operand']
  #allocation5 [shape = 'f32[8,128]{1,0:T(8,128)}', space=vmem, size = 0x1000, scoped, tag = 'scratch operand']
  #allocation6 [shape = 'f32[8,128]{1,0:T(8,128)}', space=vmem, size = 0x1000, scoped, tag = 'scratch operand']
  #allocation7 [shape = 'f32[8,128]{1,0:T(8,128)}', space=vmem, size = 0x1000, scoped, tag = 'scratch operand']
  %s0 = inlined_call_operand.vmem [shape: f32[8,8,16], index: 0, kind: input, shape index: {}]
  %s1 = inlined_call_operand.vmem [shape: f32[16,512], index: 1, kind: input, shape index: {}]
  %s2 = inlined_call_operand.vmem [shape: f32[128,512], index: 2, kind: input, shape index: {}]
  %s3 = inlined_call_operand.vmem [shape: f32[1,512], index: 3, kind: input, shape index: {}]
  %s4 = inlined_call_operand.vmem [shape: f32[128,512], index: 4, kind: input, shape index: {}]
  %s5 = inlined_call_operand.vmem [shape: f32[128,512], index: 5, kind: input, shape index: {}]
  %s6 = inlined_call_operand.vmem [shape: f32[1,512], index: 6, kind: input, shape index: {}]
  %s7 = inlined_call_operand.vmem [shape: f32[128,128], index: 7, kind: input, shape index: {}]
  %s8 = inlined_call_operand.vmem [shape: f32[1,128], index: 8, kind: input, shape index: {}]
  %s9 = inlined_call_operand.vmem [shape: f32[8,128], index: 9, kind: output, shape index: {}]
  %s10 = sld [smem:[#allocation0]]
  $region54: #{music_rnn_forward.1} parent=0
    _
  %s12 = ssub.s32 1, %s10
  %s13 = scalar_select 0, %s12, %s10
  // Predicated region
  $region2: #{music_rnn_forward.1} parent=0 // pred_check
    _
  $region3: #{music_rnn_forward.1} parent=0 // pred_check_branch
    %15 = sbr.rel (0) target = $region5
  $region4: #{music_rnn_forward.1} parent=0 // pred_region
    _
  $region5: #{music_rnn_forward.1} parent=0 // pred_fallthru
    _
  // Predicated region
  $region6: #{music_rnn_forward.1} parent=0 // pred_check
    _
  $region7: #{music_rnn_forward.1} parent=0 // pred_check_branch
    %17 = sbr.rel (0) target = $region9
  $region8: #{music_rnn_forward.1} parent=0 // pred_region
    _
  $region9: #{music_rnn_forward.1} parent=0 // pred_fallthru
    _
  // Predicated region
  $region10: #{music_rnn_forward.1} parent=0 // pred_check
    _
  $region11: #{music_rnn_forward.1} parent=0 // pred_check_branch
    %19 = sbr.rel (0) target = $region13
  $region12: #{music_rnn_forward.1} parent=0 // pred_region
    _
  $region13: #{music_rnn_forward.1} parent=0 // pred_fallthru
    _
  // Predicated region
  $region14: #{music_rnn_forward.1} parent=0 // pred_check
    _
  $region15: #{music_rnn_forward.1} parent=0 // pred_check_branch
    %21 = sbr.rel (0) target = $region17
  $region16: #{music_rnn_forward.1} parent=0 // pred_region
    _
  $region17: #{music_rnn_forward.1} parent=0 // pred_fallthru
    _
  // Predicated region
  $region18: #{music_rnn_forward.1} parent=0 // pred_check
    _
  $region19: #{music_rnn_forward.1} parent=0 // pred_check_branch
    %23 = sbr.rel (0) target = $region21
  $region20: #{music_rnn_forward.1} parent=0 // pred_region
    _
  $region21: #{music_rnn_forward.1} parent=0 // pred_fallthru
    _
  // Predicated region
  $region22: #{music_rnn_forward.1} parent=0 // pred_check
    _
  $region23: #{music_rnn_forward.1} parent=0 // pred_check_branch
    %25 = sbr.rel (0) target = $region25
  $region24: #{music_rnn_forward.1} parent=0 // pred_region
    _
  $region25: #{music_rnn_forward.1} parent=0 // pred_fallthru
    _
  // Predicated region
  $region26: #{music_rnn_forward.1} parent=0 // pred_check
    _
  $region27: #{music_rnn_forward.1} parent=0 // pred_check_branch
    %27 = sbr.rel (0) target = $region29
  $region28: #{music_rnn_forward.1} parent=0 // pred_region
    _
  $region29: #{music_rnn_forward.1} parent=0 // pred_fallthru
    _
  // Predicated region
  $region30: #{music_rnn_forward.1} parent=0 // pred_check
    _
  $region31: #{music_rnn_forward.1} parent=0 // pred_check_branch
    %29 = sbr.rel (0) target = $region33
  $region32: #{music_rnn_forward.1} parent=0 // pred_region
    _
  $region33: #{music_rnn_forward.1} parent=0 // pred_fallthru
    _
  // Predicated region
  $region34: #{music_rnn_forward.1} parent=0 // pred_check
    _
  $region35: #{music_rnn_forward.1} parent=0 // pred_check_branch
    %31 = sbr.rel (0) target = $region37
  $region36: #{music_rnn_forward.1} parent=0 // pred_region
    _
  $region37: #{music_rnn_forward.1} parent=0 // pred_fallthru
    _
  %p32 = scmp.eq.s32.totalorder 0, 0
  // Predicated region
  $region38: #{music_rnn_forward.1} parent=0 // pred_check
    %p33 = pneg %p32
  $region39: #{music_rnn_forward.1} parent=0 // pred_check_branch
    %35 = sbr.rel (%p33) target = $region41
  $region40: #{music_rnn_forward.1} parent=0 // pred_region
    %36 = vst [vmem:[#allocation4] sm:$0xff] 0.0
    %37 = vst [vmem:[#allocation5] sm:$0xff] 0.0
    %38 = vst [vmem:[#allocation6] sm:$0xff] 0.0
    %39 = vst [vmem:[#allocation7] sm:$0xff] 0.0
  $region41: #{music_rnn_forward.1} parent=0 // pred_fallthru
    _
  %v40 = vld [vmem:[%s0] sm:$0xff]
  %v41 = vld [vmem:[%s0 + $0x8] sm:$0xff]
  %v42 = vld [vmem:[%s0 + $0x10] sm:$0xff]
  %v43 = vld [vmem:[%s0 + $0x18] sm:$0xff]
  %v44 = vld [vmem:[%s0 + $0x20] sm:$0xff]
  %v45 = vld [vmem:[%s0 + $0x28] sm:$0xff]
  %v46 = vld [vmem:[%s0 + $0x30] sm:$0xff]
  %v47 = vld [vmem:[%s0 + $0x38] sm:$0xff]
  %v48 = vld [vmem:[%s1] sm:$0xff]
  %v49 = vld [vmem:[%s1 + $0x8] sm:$0xff]
  %v50 = vld [vmem:[%s1 + $0x10] sm:$0xff]
  %v51 = vld [vmem:[%s1 + $0x18] sm:$0xff]
  %v52 = vld [vmem:[%s1 + $0x20] sm:$0xff]
  %v53 = vld [vmem:[%s1 + $0x28] sm:$0xff]
  %v54 = vld [vmem:[%s1 + $0x30] sm:$0xff]
  %v55 = vld [vmem:[%s1 + $0x38] sm:$0xff]
  %v56 = vld [vmem:[%s3] sm:$0xf]
  %v58 = vlaneseq
  %v59 = vshrl.u32 %v58, 7
  %v60 = vsub.s32 0, %v59
  %v61 = vrot.slane %v56, %v60
  %v62 = vlaneseq
  %v63 = vshrl.u32 %v62, 7
  %v64 = vsub.s32 1, %v63
  %v65 = vrot.slane %v56, %v64
  %v66 = vlaneseq
  %v67 = vshrl.u32 %v66, 7
  %v68 = vsub.s32 2, %v67
  %v69 = vrot.slane %v56, %v68
  %v70 = vlaneseq
  %v71 = vshrl.u32 %v70, 7
  %v72 = vsub.s32 3, %v71
  %v73 = vrot.slane %v56, %v72
  %vm78 = vcmask 130048
  %v80 = vsel %vm78, %v40, 0
  %v83 = vsel %vm78, %v41, 0
  %v86 = vsel %vm78, %v42, 0
  %v89 = vsel %vm78, %v43, 0
  %v92 = vsel %vm78, %v44, 0
  %v95 = vsel %vm78, %v45, 0
  %v98 = vsel %vm78, %v46, 0
  %v101 = vsel %vm78, %v47, 0
  %103 = vmatprep.subr.mxu0 %v49
  %104 = vmatpush1.msra.mxu0 %v48
  %105 = vmatprep.subr.mxu0 %v53
  %106 = vmatpush1.msra.mxu0 %v52
  %107 = vmatprep.subr.mxu0 0.0
  %108 = vmatpush1.msra.mxu0 0.0
  %109 = vmatprep.subr.mxu0 0.0
  %110 = vmatpush1.msra.mxu0 0.0
  %111 = vmatprep.subr.mxu0 0.0
  %112 = vmatpush1.msra.mxu0 0.0
  %113 = vmatprep.subr.mxu0 0.0
  %114 = vmatpush1.msra.mxu0 0.0
  %115 = vmatprep.subr.mxu0 0.0
  %116 = vmatpush1.msra.mxu0 0.0
  %117 = vmatprep.subr.mxu0 0.0
  %118 = vmatpush1.msra.mxu0 0.0
  %119 = vmatprep.subr.mxu0 0.0
  %120 = vmatpush1.msra.mxu0 0.0
  %121 = vmatprep.subr.mxu0 0.0
  %122 = vmatpush1.msra.mxu0 0.0
  %123 = vmatprep.subr.mxu0 0.0
  %124 = vmatpush1.msra.mxu0 0.0
  %125 = vmatprep.subr.mxu0 0.0
  %126 = vmatpush1.msra.mxu0 0.0
  %127 = vmatprep.subr.mxu0 0.0
  %128 = vmatpush1.msra.mxu0 0.0
  %129 = vmatprep.subr.mxu0 0.0
  %130 = vmatpush1.msra.mxu0 0.0
  %131 = vmatprep.subr.mxu0 0.0
  %132 = vmatpush1.msra.mxu0 0.0
  %133 = vmatprep.subr.mxu0 0.0
  %134 = vmatpush1.msra.mxu0 0.0
  %135 = vmatprep.subr.mxu0 0.0
  %136 = vmatpush1.msra.mxu0 0.0
  %137 = vmatprep.subr.mxu0 0.0
  %138 = vmatpush1.msra.mxu0 0.0
  %139 = vmatprep.subr.mxu0 0.0
  %140 = vmatpush1.msra.mxu0 0.0
  %141 = vmatprep.subr.mxu0 0.0
  %142 = vmatpush1.msra.mxu0 0.0
  %143 = vmatprep.subr.mxu0 0.0
  %144 = vmatpush1.msra.mxu0 0.0
  %145 = vmatprep.subr.mxu0 0.0
  %146 = vmatpush1.msra.mxu0 0.0
  %147 = vmatprep.subr.mxu0 0.0
  %148 = vmatpush1.msra.mxu0 0.0
  %149 = vmatprep.subr.mxu0 0.0
  %150 = vmatpush1.msra.mxu0 0.0
  %151 = vmatprep.subr.mxu0 0.0
  %152 = vmatpush1.msra.mxu0 0.0
  %153 = vmatprep.subr.mxu0 0.0
  %154 = vmatpush1.msra.mxu0 0.0
  %155 = vmatprep.subr.mxu0 0.0
  %156 = vmatpush1.msra.mxu0 0.0
  %157 = vmatprep.subr.mxu0 0.0
  %158 = vmatpush1.msra.mxu0 0.0
  %159 = vmatprep.subr.mxu0 0.0
  %160 = vmatpush1.msra.mxu0 0.0
  %161 = vmatprep.subr.mxu0 0.0
  %162 = vmatpush1.msra.mxu0 0.0
  %163 = vmatprep.subr.mxu0 0.0
  %164 = vmatpush1.msra.mxu0 0.0
  %165 = vmatprep.subr.mxu0 0.0
  %166 = vmatpush1.msra.mxu0 0.0
  %167 = vmatprep.mubr.f32.mxu0 0.0
  %168 = vmatmul.mubr.f32.gmra.mrb[0].mxu0 %v80
  %v169 = vpop.f32.mrb[0].mxu0
  %v170 = vadd.f32 %v61, %v169
  %v171 = vpop.f32.mrb[0].mxu0
  %v172 = vadd.f32 %v65, %v171
  %173 = vmatprep.mubr.f32.mxu0 0.0
  %174 = vmatmul.mubr.f32.gmra.mrb[0].mxu0 %v83
  %v175 = vpop.f32.mrb[0].mxu0
  %v176 = vadd.f32 %v61, %v175
  %v177 = vpop.f32.mrb[0].mxu0
  %v178 = vadd.f32 %v65, %v177
  %179 = vmatprep.mubr.f32.mxu0 0.0
  %180 = vmatmul.mubr.f32.gmra.mrb[0].mxu0 %v86
  %v181 = vpop.f32.mrb[0].mxu0
  %v182 = vadd.f32 %v61, %v181
  %v183 = vpop.f32.mrb[0].mxu0
  %v184 = vadd.f32 %v65, %v183
  %185 = vmatprep.mubr.f32.mxu0 0.0
  %186 = vmatmul.mubr.f32.gmra.mrb[0].mxu0 %v89
  %v187 = vpop.f32.mrb[0].mxu0
  %v188 = vadd.f32 %v61, %v187
  %v189 = vpop.f32.mrb[0].mxu0
  %v190 = vadd.f32 %v65, %v189
  %191 = vmatprep.mubr.f32.mxu0 0.0
  %192 = vmatmul.mubr.f32.gmra.mrb[0].mxu0 %v92
  %v193 = vpop.f32.mrb[0].mxu0
  %v194 = vadd.f32 %v61, %v193
  %v195 = vpop.f32.mrb[0].mxu0
  %v196 = vadd.f32 %v65, %v195
  %197 = vmatprep.mubr.f32.mxu0 0.0
  %198 = vmatmul.mubr.f32.gmra.mrb[0].mxu0 %v95
  %v199 = vpop.f32.mrb[0].mxu0
  %v200 = vadd.f32 %v61, %v199
  %v201 = vpop.f32.mrb[0].mxu0
  %v202 = vadd.f32 %v65, %v201
  %203 = vmatprep.mubr.f32.mxu0 0.0
  %204 = vmatmul.mubr.f32.gmra.mrb[0].mxu0 %v98
  %v205 = vpop.f32.mrb[0].mxu0
  %v206 = vadd.f32 %v61, %v205
  %v207 = vpop.f32.mrb[0].mxu0
  %v208 = vadd.f32 %v65, %v207
  %209 = vmatprep.mubr.f32.mxu0 0.0
  %210 = vmatmul.mubr.f32.gmra.mrb[0].mxu0 %v101
  %v211 = vpop.f32.mrb[0].mxu0
  %v212 = vadd.f32 %v61, %v211
  %v213 = vpop.f32.mrb[0].mxu0
  %v214 = vadd.f32 %v65, %v213
  %215 = vdwg.mxu0
  %216 = vmatprep.subr.mxu0 %v51
  %217 = vmatpush1.msra.mxu0 %v50
  %218 = vmatprep.subr.mxu0 %v55
  %219 = vmatpush1.msra.mxu0 %v54
  %220 = vmatprep.subr.mxu0 0.0
  %221 = vmatpush1.msra.mxu0 0.0
  %222 = vmatprep.subr.mxu0 0.0
  %223 = vmatpush1.msra.mxu0 0.0
  %224 = vmatprep.subr.mxu0 0.0
  %225 = vmatpush1.msra.mxu0 0.0
  %226 = vmatprep.subr.mxu0 0.0
  %227 = vmatpush1.msra.mxu0 0.0
  %228 = vmatprep.subr.mxu0 0.0
  %229 = vmatpush1.msra.mxu0 0.0
  %230 = vmatprep.subr.mxu0 0.0
  %231 = vmatpush1.msra.mxu0 0.0
  %232 = vmatprep.subr.mxu0 0.0
  %233 = vmatpush1.msra.mxu0 0.0
  %234 = vmatprep.subr.mxu0 0.0
  %235 = vmatpush1.msra.mxu0 0.0
  %236 = vmatprep.subr.mxu0 0.0
  %237 = vmatpush1.msra.mxu0 0.0
  %238 = vmatprep.subr.mxu0 0.0
  %239 = vmatpush1.msra.mxu0 0.0
  %240 = vmatprep.subr.mxu0 0.0
  %241 = vmatpush1.msra.mxu0 0.0
  %242 = vmatprep.subr.mxu0 0.0
  %243 = vmatpush1.msra.mxu0 0.0
  %244 = vmatprep.subr.mxu0 0.0
  %245 = vmatpush1.msra.mxu0 0.0
  %246 = vmatprep.subr.mxu0 0.0
  %247 = vmatpush1.msra.mxu0 0.0
  %248 = vmatprep.subr.mxu0 0.0
  %249 = vmatpush1.msra.mxu0 0.0
  %250 = vmatprep.subr.mxu0 0.0
  %251 = vmatpush1.msra.mxu0 0.0
  %252 = vmatprep.subr.mxu0 0.0
  %253 = vmatpush1.msra.mxu0 0.0
  %254 = vmatprep.subr.mxu0 0.0
  %255 = vmatpush1.msra.mxu0 0.0
  %256 = vmatprep.subr.mxu0 0.0
  %257 = vmatpush1.msra.mxu0 0.0
  %258 = vmatprep.subr.mxu0 0.0
  %259 = vmatpush1.msra.mxu0 0.0
  %260 = vmatprep.subr.mxu0 0.0
  %261 = vmatpush1.msra.mxu0 0.0
  %262 = vmatprep.subr.mxu0 0.0
  %263 = vmatpush1.msra.mxu0 0.0
  %264 = vmatprep.subr.mxu0 0.0
  %265 = vmatpush1.msra.mxu0 0.0
  %266 = vmatprep.subr.mxu0 0.0
  %267 = vmatpush1.msra.mxu0 0.0
  %268 = vmatprep.subr.mxu0 0.0
  %269 = vmatpush1.msra.mxu0 0.0
  %270 = vmatprep.subr.mxu0 0.0
  %271 = vmatpush1.msra.mxu0 0.0
  %272 = vmatprep.subr.mxu0 0.0
  %273 = vmatpush1.msra.mxu0 0.0
  %274 = vmatprep.subr.mxu0 0.0
  %275 = vmatpush1.msra.mxu0 0.0
  %276 = vmatprep.subr.mxu0 0.0
  %277 = vmatpush1.msra.mxu0 0.0
  %278 = vmatprep.subr.mxu0 0.0
  %279 = vmatpush1.msra.mxu0 0.0
  %280 = vmatprep.mubr.f32.mxu0 0.0
  %281 = vmatmul.mubr.f32.gmra.mrb[0].mxu0 %v80
  %v282 = vpop.f32.mrb[0].mxu0
  %v283 = vadd.f32 %v69, %v282
  %v284 = vpop.f32.mrb[0].mxu0
  %v285 = vadd.f32 %v73, %v284
  %286 = vmatprep.mubr.f32.mxu0 0.0
  %287 = vmatmul.mubr.f32.gmra.mrb[0].mxu0 %v83
  %v288 = vpop.f32.mrb[0].mxu0
  %v289 = vadd.f32 %v69, %v288
  %v290 = vpop.f32.mrb[0].mxu0
  %v291 = vadd.f32 %v73, %v290
  %292 = vmatprep.mubr.f32.mxu0 0.0
  %293 = vmatmul.mubr.f32.gmra.mrb[0].mxu0 %v86
  %v294 = vpop.f32.mrb[0].mxu0
  %v295 = vadd.f32 %v69, %v294
  %v296 = vpop.f32.mrb[0].mxu0
  %v297 = vadd.f32 %v73, %v296
  %298 = vmatprep.mubr.f32.mxu0 0.0
  %299 = vmatmul.mubr.f32.gmra.mrb[0].mxu0 %v89
  %v300 = vpop.f32.mrb[0].mxu0
  %v301 = vadd.f32 %v69, %v300
  %v302 = vpop.f32.mrb[0].mxu0
  %v303 = vadd.f32 %v73, %v302
  %304 = vmatprep.mubr.f32.mxu0 0.0
  %305 = vmatmul.mubr.f32.gmra.mrb[0].mxu0 %v92
  %v306 = vpop.f32.mrb[0].mxu0
  %v307 = vadd.f32 %v69, %v306
  %v308 = vpop.f32.mrb[0].mxu0
  %v309 = vadd.f32 %v73, %v308
  %310 = vmatprep.mubr.f32.mxu0 0.0
  %311 = vmatmul.mubr.f32.gmra.mrb[0].mxu0 %v95
  %v312 = vpop.f32.mrb[0].mxu0
  %v313 = vadd.f32 %v69, %v312
  %v314 = vpop.f32.mrb[0].mxu0
  %v315 = vadd.f32 %v73, %v314
  %316 = vmatprep.mubr.f32.mxu0 0.0
  %317 = vmatmul.mubr.f32.gmra.mrb[0].mxu0 %v98
  %v318 = vpop.f32.mrb[0].mxu0
  %v319 = vadd.f32 %v69, %v318
  %v320 = vpop.f32.mrb[0].mxu0
  %v321 = vadd.f32 %v73, %v320
  %322 = vmatprep.mubr.f32.mxu0 0.0
  %323 = vmatmul.mubr.f32.gmra.mrb[0].mxu0 %v101
  %v324 = vpop.f32.mrb[0].mxu0
  %v325 = vadd.f32 %v69, %v324
  %v326 = vpop.f32.mrb[0].mxu0
  %v327 = vadd.f32 %v73, %v326
  %328 = vdwg.mxu0
  %329 = vst [vmem:[#allocation2] sm:$0xff] %v170
  %330 = vst [vmem:[#allocation2 + $0x8] sm:$0xff] %v172
  %331 = vst [vmem:[#allocation2 + $0x10] sm:$0xff] %v283
  %332 = vst [vmem:[#allocation2 + $0x18] sm:$0xff] %v285
  %333 = vst [vmem:[#allocation2 + $0x20] sm:$0xff] %v176
  %334 = vst [vmem:[#allocation2 + $0x28] sm:$0xff] %v178
  %335 = vst [vmem:[#allocation2 + $0x30] sm:$0xff] %v289
  %336 = vst [vmem:[#allocation2 + $0x38] sm:$0xff] %v291
  %337 = vst [vmem:[#allocation2 + $0x40] sm:$0xff] %v182
  %338 = vst [vmem:[#allocation2 + $0x48] sm:$0xff] %v184
  %339 = vst [vmem:[#allocation2 + $0x50] sm:$0xff] %v295
  %340 = vst [vmem:[#allocation2 + $0x58] sm:$0xff] %v297
  %341 = vst [vmem:[#allocation2 + $0x60] sm:$0xff] %v188
  %342 = vst [vmem:[#allocation2 + $0x68] sm:$0xff] %v190
  %343 = vst [vmem:[#allocation2 + $0x70] sm:$0xff] %v301
  %344 = vst [vmem:[#allocation2 + $0x78] sm:$0xff] %v303
  %345 = vst [vmem:[#allocation2 + $0x80] sm:$0xff] %v194
  %346 = vst [vmem:[#allocation2 + $0x88] sm:$0xff] %v196
  %347 = vst [vmem:[#allocation2 + $0x90] sm:$0xff] %v307
  %348 = vst [vmem:[#allocation2 + $0x98] sm:$0xff] %v309
  %349 = vst [vmem:[#allocation2 + $0xa0] sm:$0xff] %v200
  %350 = vst [vmem:[#allocation2 + $0xa8] sm:$0xff] %v202
  %351 = vst [vmem:[#allocation2 + $0xb0] sm:$0xff] %v313
  %352 = vst [vmem:[#allocation2 + $0xb8] sm:$0xff] %v315
  %353 = vst [vmem:[#allocation2 + $0xc0] sm:$0xff] %v206
  %354 = vst [vmem:[#allocation2 + $0xc8] sm:$0xff] %v208
  %355 = vst [vmem:[#allocation2 + $0xd0] sm:$0xff] %v319
  %356 = vst [vmem:[#allocation2 + $0xd8] sm:$0xff] %v321
  %357 = vst [vmem:[#allocation2 + $0xe0] sm:$0xff] %v212
  %358 = vst [vmem:[#allocation2 + $0xe8] sm:$0xff] %v214
  %359 = vst [vmem:[#allocation2 + $0xf0] sm:$0xff] %v325
  %360 = vst [vmem:[#allocation2 + $0xf8] sm:$0xff] %v327
  %v361 = vld [vmem:[%s2] sm:$0xff]
  %v362 = vld [vmem:[%s2 + $0x8] sm:$0xff]
  %v363 = vld [vmem:[%s2 + $0x10] sm:$0xff]
  %v364 = vld [vmem:[%s2 + $0x18] sm:$0xff]
  %v365 = vld [vmem:[%s2 + $0x20] sm:$0xff]
  %v366 = vld [vmem:[%s2 + $0x28] sm:$0xff]
  %v367 = vld [vmem:[%s2 + $0x30] sm:$0xff]
  %v368 = vld [vmem:[%s2 + $0x38] sm:$0xff]
  %v369 = vld [vmem:[%s2 + $0x40] sm:$0xff]
  %v370 = vld [vmem:[%s2 + $0x48] sm:$0xff]
  %v371 = vld [vmem:[%s2 + $0x50] sm:$0xff]
  %v372 = vld [vmem:[%s2 + $0x58] sm:$0xff]
  %v373 = vld [vmem:[%s2 + $0x60] sm:$0xff]
  %v374 = vld [vmem:[%s2 + $0x68] sm:$0xff]
  %v375 = vld [vmem:[%s2 + $0x70] sm:$0xff]
  %v376 = vld [vmem:[%s2 + $0x78] sm:$0xff]
  %v377 = vld [vmem:[%s2 + $0x80] sm:$0xff]
  %v378 = vld [vmem:[%s2 + $0x88] sm:$0xff]
  %v379 = vld [vmem:[%s2 + $0x90] sm:$0xff]
  %v380 = vld [vmem:[%s2 + $0x98] sm:$0xff]
  %v381 = vld [vmem:[%s2 + $0xa0] sm:$0xff]
  %v382 = vld [vmem:[%s2 + $0xa8] sm:$0xff]
  %v383 = vld [vmem:[%s2 + $0xb0] sm:$0xff]
  %v384 = vld [vmem:[%s2 + $0xb8] sm:$0xff]
  %v385 = vld [vmem:[%s2 + $0xc0] sm:$0xff]
  %v386 = vld [vmem:[%s2 + $0xc8] sm:$0xff]
  %v387 = vld [vmem:[%s2 + $0xd0] sm:$0xff]
  %v388 = vld [vmem:[%s2 + $0xd8] sm:$0xff]
  %v389 = vld [vmem:[%s2 + $0xe0] sm:$0xff]
  %v390 = vld [vmem:[%s2 + $0xe8] sm:$0xff]
  %v391 = vld [vmem:[%s2 + $0xf0] sm:$0xff]
  %v392 = vld [vmem:[%s2 + $0xf8] sm:$0xff]
  %v393 = vld [vmem:[%s2 + $0x100] sm:$0xff]
  %v394 = vld [vmem:[%s2 + $0x108] sm:$0xff]
  %v395 = vld [vmem:[%s2 + $0x110] sm:$0xff]
  %v396 = vld [vmem:[%s2 + $0x118] sm:$0xff]
  %v397 = vld [vmem:[%s2 + $0x120] sm:$0xff]
  %v398 = vld [vmem:[%s2 + $0x128] sm:$0xff]
  %v399 = vld [vmem:[%s2 + $0x130] sm:$0xff]
  %v400 = vld [vmem:[%s2 + $0x138] sm:$0xff]
  %v401 = vld [vmem:[%s2 + $0x140] sm:$0xff]
  %v402 = vld [vmem:[%s2 + $0x148] sm:$0xff]
  %v403 = vld [vmem:[%s2 + $0x150] sm:$0xff]
  %v404 = vld [vmem:[%s2 + $0x158] sm:$0xff]
  %v405 = vld [vmem:[%s2 + $0x160] sm:$0xff]
  %v406 = vld [vmem:[%s2 + $0x168] sm:$0xff]
  %v407 = vld [vmem:[%s2 + $0x170] sm:$0xff]
  %v408 = vld [vmem:[%s2 + $0x178] sm:$0xff]
  %v409 = vld [vmem:[%s2 + $0x180] sm:$0xff]
  %v410 = vld [vmem:[%s2 + $0x188] sm:$0xff]
  %v411 = vld [vmem:[%s2 + $0x190] sm:$0xff]
  %v412 = vld [vmem:[%s2 + $0x198] sm:$0xff]
  %v413 = vld [vmem:[%s2 + $0x1a0] sm:$0xff]
  %v414 = vld [vmem:[%s2 + $0x1a8] sm:$0xff]
  %v415 = vld [vmem:[%s2 + $0x1b0] sm:$0xff]
  %v416 = vld [vmem:[%s2 + $0x1b8] sm:$0xff]
  %v417 = vld [vmem:[%s2 + $0x1c0] sm:$0xff]
  %v418 = vld [vmem:[%s2 + $0x1c8] sm:$0xff]
  %v419 = vld [vmem:[%s2 + $0x1d0] sm:$0xff]
  %v420 = vld [vmem:[%s2 + $0x1d8] sm:$0xff]
  %v421 = vld [vmem:[%s2 + $0x1e0] sm:$0xff]
  %v422 = vld [vmem:[%s2 + $0x1e8] sm:$0xff]
  %v423 = vld [vmem:[%s2 + $0x1f0] sm:$0xff]
  %v424 = vld [vmem:[%s2 + $0x1f8] sm:$0xff]
  %v425 = vld [vmem:[#allocation4] sm:$0xff]
  %v426 = vld [vmem:[#allocation5] sm:$0xff]
  %s427 = smul.u32 0, 4
  %s428 = smul.addr %s427, 8
  %s429 = scalar_lea.vmem [#allocation2], %s428
  %v430 = vld [vmem:[%s429] sm:$0xff]
  %v431 = vld [vmem:[%s429 + $0x8] sm:$0xff]
  %v432 = vld [vmem:[%s429 + $0x10] sm:$0xff]
  %v433 = vld [vmem:[%s429 + $0x18] sm:$0xff]
  %434 = vmatprep.subr.mxu0 %v362
  %435 = vmatpush1.msra.mxu0 %v361
  %436 = vmatprep.subr.mxu0 %v366
  %437 = vmatpush1.msra.mxu0 %v365
  %438 = vmatprep.subr.mxu0 %v370
  %439 = vmatpush1.msra.mxu0 %v369
  %440 = vmatprep.subr.mxu0 %v374
  %441 = vmatpush1.msra.mxu0 %v373
  %442 = vmatprep.subr.mxu0 %v378
  %443 = vmatpush1.msra.mxu0 %v377
  %444 = vmatprep.subr.mxu0 %v382
  %445 = vmatpush1.msra.mxu0 %v381
  %446 = vmatprep.subr.mxu0 %v386
  %447 = vmatpush1.msra.mxu0 %v385
  %448 = vmatprep.subr.mxu0 %v390
  %449 = vmatpush1.msra.mxu0 %v389
  %450 = vmatprep.subr.mxu0 %v394
  %451 = vmatpush1.msra.mxu0 %v393
  %452 = vmatprep.subr.mxu0 %v398
  %453 = vmatpush1.msra.mxu0 %v397
  %454 = vmatprep.subr.mxu0 %v402
  %455 = vmatpush1.msra.mxu0 %v401
  %456 = vmatprep.subr.mxu0 %v406
  %457 = vmatpush1.msra.mxu0 %v405
  %458 = vmatprep.subr.mxu0 %v410
  %459 = vmatpush1.msra.mxu0 %v409
  %460 = vmatprep.subr.mxu0 %v414
  %461 = vmatpush1.msra.mxu0 %v413
  %462 = vmatprep.subr.mxu0 %v418
  %463 = vmatpush1.msra.mxu0 %v417
  %464 = vmatprep.subr.mxu0 %v422
  %465 = vmatpush1.msra.mxu0 %v421
  %466 = vmatprep.subr.mxu0 0.0
  %467 = vmatpush1.msra.mxu0 0.0
  %468 = vmatprep.subr.mxu0 0.0
  %469 = vmatpush1.msra.mxu0 0.0
  %470 = vmatprep.subr.mxu0 0.0
  %471 = vmatpush1.msra.mxu0 0.0
  %472 = vmatprep.subr.mxu0 0.0
  %473 = vmatpush1.msra.mxu0 0.0
  %474 = vmatprep.subr.mxu0 0.0
  %475 = vmatpush1.msra.mxu0 0.0
  %476 = vmatprep.subr.mxu0 0.0
  %477 = vmatpush1.msra.mxu0 0.0
  %478 = vmatprep.subr.mxu0 0.0
  %479 = vmatpush1.msra.mxu0 0.0
  %480 = vmatprep.subr.mxu0 0.0
  %481 = vmatpush1.msra.mxu0 0.0
  %482 = vmatprep.subr.mxu0 0.0
  %483 = vmatpush1.msra.mxu0 0.0
  %484 = vmatprep.subr.mxu0 0.0
  %485 = vmatpush1.msra.mxu0 0.0
  %486 = vmatprep.subr.mxu0 0.0
  %487 = vmatpush1.msra.mxu0 0.0
  %488 = vmatprep.subr.mxu0 0.0
  %489 = vmatpush1.msra.mxu0 0.0
  %490 = vmatprep.subr.mxu0 0.0
  %491 = vmatpush1.msra.mxu0 0.0
  %492 = vmatprep.subr.mxu0 0.0
  %493 = vmatpush1.msra.mxu0 0.0
  %494 = vmatprep.subr.mxu0 0.0
  %495 = vmatpush1.msra.mxu0 0.0
  %496 = vmatprep.subr.mxu0 0.0
  %497 = vmatpush1.msra.mxu0 0.0
  %498 = vmatprep.mubr.f32.mxu0 0.0
  %499 = vmatmul.mubr.f32.gmra.mrb[0].mxu0 %v425
  %v500 = vpop.f32.mrb[0].mxu0
  %v501 = vadd.f32 0.0, %v500
  %v502 = vpop.f32.mrb[0].mxu0
  %v503 = vadd.f32 0.0, %v502
  %504 = vdwg.mxu0
  %505 = vmatprep.subr.mxu0 %v364
  %506 = vmatpush1.msra.mxu0 %v363
  %507 = vmatprep.subr.mxu0 %v368
  %508 = vmatpush1.msra.mxu0 %v367
  %509 = vmatprep.subr.mxu0 %v372
  %510 = vmatpush1.msra.mxu0 %v371
  %511 = vmatprep.subr.mxu0 %v376
  %512 = vmatpush1.msra.mxu0 %v375
  %513 = vmatprep.subr.mxu0 %v380
  %514 = vmatpush1.msra.mxu0 %v379
  %515 = vmatprep.subr.mxu0 %v384
  %516 = vmatpush1.msra.mxu0 %v383
  %517 = vmatprep.subr.mxu0 %v388
  %518 = vmatpush1.msra.mxu0 %v387
  %519 = vmatprep.subr.mxu0 %v392
  %520 = vmatpush1.msra.mxu0 %v391
  %521 = vmatprep.subr.mxu0 %v396
  %522 = vmatpush1.msra.mxu0 %v395
  %523 = vmatprep.subr.mxu0 %v400
  %524 = vmatpush1.msra.mxu0 %v399
  %525 = vmatprep.subr.mxu0 %v404
  %526 = vmatpush1.msra.mxu0 %v403
  %527 = vmatprep.subr.mxu0 %v408
  %528 = vmatpush1.msra.mxu0 %v407
  %529 = vmatprep.subr.mxu0 %v412
  %530 = vmatpush1.msra.mxu0 %v411
  %531 = vmatprep.subr.mxu0 %v416
  %532 = vmatpush1.msra.mxu0 %v415
  %533 = vmatprep.subr.mxu0 %v420
  %534 = vmatpush1.msra.mxu0 %v419
  %535 = vmatprep.subr.mxu0 %v424
  %536 = vmatpush1.msra.mxu0 %v423
  %537 = vmatprep.subr.mxu0 0.0
  %538 = vmatpush1.msra.mxu0 0.0
  %539 = vmatprep.subr.mxu0 0.0
  %540 = vmatpush1.msra.mxu0 0.0
  %541 = vmatprep.subr.mxu0 0.0
  %542 = vmatpush1.msra.mxu0 0.0
  %543 = vmatprep.subr.mxu0 0.0
  %544 = vmatpush1.msra.mxu0 0.0
  %545 = vmatprep.subr.mxu0 0.0
  %546 = vmatpush1.msra.mxu0 0.0
  %547 = vmatprep.subr.mxu0 0.0
  %548 = vmatpush1.msra.mxu0 0.0
  %549 = vmatprep.subr.mxu0 0.0
  %550 = vmatpush1.msra.mxu0 0.0
  %551 = vmatprep.subr.mxu0 0.0
  %552 = vmatpush1.msra.mxu0 0.0
  %553 = vmatprep.subr.mxu0 0.0
  %554 = vmatpush1.msra.mxu0 0.0
  %555 = vmatprep.subr.mxu0 0.0
  %556 = vmatpush1.msra.mxu0 0.0
  %557 = vmatprep.subr.mxu0 0.0
  %558 = vmatpush1.msra.mxu0 0.0
  %559 = vmatprep.subr.mxu0 0.0
  %560 = vmatpush1.msra.mxu0 0.0
  %561 = vmatprep.subr.mxu0 0.0
  %562 = vmatpush1.msra.mxu0 0.0
  %563 = vmatprep.subr.mxu0 0.0
  %564 = vmatpush1.msra.mxu0 0.0
  %565 = vmatprep.subr.mxu0 0.0
  %566 = vmatpush1.msra.mxu0 0.0
  %567 = vmatprep.subr.mxu0 0.0
  %568 = vmatpush1.msra.mxu0 0.0
  %569 = vmatprep.mubr.f32.mxu0 0.0
  %570 = vmatmul.mubr.f32.gmra.mrb[0].mxu0 %v425
  %v571 = vpop.f32.mrb[0].mxu0
  %v572 = vadd.f32 0.0, %v571
  %v573 = vpop.f32.mrb[0].mxu0
  %v574 = vadd.f32 0.0, %v573
  %575 = vdwg.mxu0
  %v576 = vadd.f32 %v430, %v501
  %v577 = vadd.f32 %v431, %v503
  %v578 = vadd.f32 %v432, %v572
  %v579 = vadd.f32 %v433, %v574
  %v580 = vxor.u32 %v576, 2147483648
  %v581 = vxor.u32 %v577, 2147483648
  %v582 = vxor.u32 %v578, 2147483648
  %v583 = vmul.f32 %v580, 1.442695
  %v584 = vpow.pop %v583
  %v585 = vmul.f32 %v581, 1.442695
  %v586 = vpow.pop %v585
  %v587 = vmul.f32 %v582, 1.442695
  %v588 = vpow.pop %v587
  %v589 = vadd.f32 %v584, 1.0
  %v590 = vadd.f32 %v586, 1.0
  %v591 = vadd.f32 %v588, 1.0
  %v592 = vrcp.pop %v589
  %v593 = vmul.f32 1.0, %v592
  %v594 = vrcp.pop %v590
  %v595 = vmul.f32 1.0, %v594
  %v596 = vrcp.pop %v591
  %v597 = vmul.f32 1.0, %v596
  %v598 = vtanh.pop %v579
  %v599 = vmul.f32 %v595, %v426
  %v600 = vmul.f32 %v593, %v598
  %v601 = vadd.f32 %v599, %v600
  %v602 = vtanh.pop %v601
  %v603 = vmul.f32 %v597, %v602
  %604 = vst [vmem:[#allocation3] sm:$0xff] %v603
  %s605 = smul.u32 1, 4
  %s606 = smul.addr %s605, 8
  %s607 = scalar_lea.vmem [#allocation2], %s606
  %v608 = vld [vmem:[%s607] sm:$0xff]
  %v609 = vld [vmem:[%s607 + $0x8] sm:$0xff]
  %v610 = vld [vmem:[%s607 + $0x10] sm:$0xff]
  %v611 = vld [vmem:[%s607 + $0x18] sm:$0xff]
  %612 = vmatprep.subr.mxu0 %v362
  %613 = vmatpush1.msra.mxu0 %v361
  %614 = vmatprep.subr.mxu0 %v366
  %615 = vmatpush1.msra.mxu0 %v365
  %616 = vmatprep.subr.mxu0 %v370
  %617 = vmatpush1.msra.mxu0 %v369
  %618 = vmatprep.subr.mxu0 %v374
  %619 = vmatpush1.msra.mxu0 %v373
  %620 = vmatprep.subr.mxu0 %v378
  %621 = vmatpush1.msra.mxu0 %v377
  %622 = vmatprep.subr.mxu0 %v382
  %623 = vmatpush1.msra.mxu0 %v381
  %624 = vmatprep.subr.mxu0 %v386
  %625 = vmatpush1.msra.mxu0 %v385
  %626 = vmatprep.subr.mxu0 %v390
  %627 = vmatpush1.msra.mxu0 %v389
  %628 = vmatprep.subr.mxu0 %v394
  %629 = vmatpush1.msra.mxu0 %v393
  %630 = vmatprep.subr.mxu0 %v398
  %631 = vmatpush1.msra.mxu0 %v397
  %632 = vmatprep.subr.mxu0 %v402
  %633 = vmatpush1.msra.mxu0 %v401
  %634 = vmatprep.subr.mxu0 %v406
  %635 = vmatpush1.msra.mxu0 %v405
  %636 = vmatprep.subr.mxu0 %v410
  %637 = vmatpush1.msra.mxu0 %v409
  %638 = vmatprep.subr.mxu0 %v414
  %639 = vmatpush1.msra.mxu0 %v413
  %640 = vmatprep.subr.mxu0 %v418
  %641 = vmatpush1.msra.mxu0 %v417
  %642 = vmatprep.subr.mxu0 %v422
  %643 = vmatpush1.msra.mxu0 %v421
  %644 = vmatprep.subr.mxu0 0.0
  %645 = vmatpush1.msra.mxu0 0.0
  %646 = vmatprep.subr.mxu0 0.0
  %647 = vmatpush1.msra.mxu0 0.0
  %648 = vmatprep.subr.mxu0 0.0
  %649 = vmatpush1.msra.mxu0 0.0
  %650 = vmatprep.subr.mxu0 0.0
  %651 = vmatpush1.msra.mxu0 0.0
  %652 = vmatprep.subr.mxu0 0.0
  %653 = vmatpush1.msra.mxu0 0.0
  %654 = vmatprep.subr.mxu0 0.0
  %655 = vmatpush1.msra.mxu0 0.0
  %656 = vmatprep.subr.mxu0 0.0
  %657 = vmatpush1.msra.mxu0 0.0
  %658 = vmatprep.subr.mxu0 0.0
  %659 = vmatpush1.msra.mxu0 0.0
  %660 = vmatprep.subr.mxu0 0.0
  %661 = vmatpush1.msra.mxu0 0.0
  %662 = vmatprep.subr.mxu0 0.0
  %663 = vmatpush1.msra.mxu0 0.0
  %664 = vmatprep.subr.mxu0 0.0
  %665 = vmatpush1.msra.mxu0 0.0
  %666 = vmatprep.subr.mxu0 0.0
  %667 = vmatpush1.msra.mxu0 0.0
  %668 = vmatprep.subr.mxu0 0.0
  %669 = vmatpush1.msra.mxu0 0.0
  %670 = vmatprep.subr.mxu0 0.0
  %671 = vmatpush1.msra.mxu0 0.0
  %672 = vmatprep.subr.mxu0 0.0
  %673 = vmatpush1.msra.mxu0 0.0
  %674 = vmatprep.subr.mxu0 0.0
  %675 = vmatpush1.msra.mxu0 0.0
  %676 = vmatprep.mubr.f32.mxu0 0.0
  %677 = vmatmul.mubr.f32.gmra.mrb[0].mxu0 %v603
  %v678 = vpop.f32.mrb[0].mxu0
  %v679 = vadd.f32 0.0, %v678
  %v680 = vpop.f32.mrb[0].mxu0
  %v681 = vadd.f32 0.0, %v680
  %682 = vdwg.mxu0
  %683 = vmatprep.subr.mxu0 %v364
  %684 = vmatpush1.msra.mxu0 %v363
  %685 = vmatprep.subr.mxu0 %v368
  %686 = vmatpush1.msra.mxu0 %v367
  %687 = vmatprep.subr.mxu0 %v372
  %688 = vmatpush1.msra.mxu0 %v371
  %689 = vmatprep.subr.mxu0 %v376
  %690 = vmatpush1.msra.mxu0 %v375
  %691 = vmatprep.subr.mxu0 %v380
  %692 = vmatpush1.msra.mxu0 %v379
  %693 = vmatprep.subr.mxu0 %v384
  %694 = vmatpush1.msra.mxu0 %v383
  %695 = vmatprep.subr.mxu0 %v388
  %696 = vmatpush1.msra.mxu0 %v387
  %697 = vmatprep.subr.mxu0 %v392
  %698 = vmatpush1.msra.mxu0 %v391
  %699 = vmatprep.subr.mxu0 %v396
  %700 = vmatpush1.msra.mxu0 %v395
  %701 = vmatprep.subr.mxu0 %v400
  %702 = vmatpush1.msra.mxu0 %v399
  %703 = vmatprep.subr.mxu0 %v404
  %704 = vmatpush1.msra.mxu0 %v403
  %705 = vmatprep.subr.mxu0 %v408
  %706 = vmatpush1.msra.mxu0 %v407
  %707 = vmatprep.subr.mxu0 %v412
  %708 = vmatpush1.msra.mxu0 %v411
  %709 = vmatprep.subr.mxu0 %v416
  %710 = vmatpush1.msra.mxu0 %v415
  %711 = vmatprep.subr.mxu0 %v420
  %712 = vmatpush1.msra.mxu0 %v419
  %713 = vmatprep.subr.mxu0 %v424
  %714 = vmatpush1.msra.mxu0 %v423
  %715 = vmatprep.subr.mxu0 0.0
  %716 = vmatpush1.msra.mxu0 0.0
  %717 = vmatprep.subr.mxu0 0.0
  %718 = vmatpush1.msra.mxu0 0.0
  %719 = vmatprep.subr.mxu0 0.0
  %720 = vmatpush1.msra.mxu0 0.0
  %721 = vmatprep.subr.mxu0 0.0
  %722 = vmatpush1.msra.mxu0 0.0
  %723 = vmatprep.subr.mxu0 0.0
  %724 = vmatpush1.msra.mxu0 0.0
  %725 = vmatprep.subr.mxu0 0.0
  %726 = vmatpush1.msra.mxu0 0.0
  %727 = vmatprep.subr.mxu0 0.0
  %728 = vmatpush1.msra.mxu0 0.0
  %729 = vmatprep.subr.mxu0 0.0
  %730 = vmatpush1.msra.mxu0 0.0
  %731 = vmatprep.subr.mxu0 0.0
  %732 = vmatpush1.msra.mxu0 0.0
  %733 = vmatprep.subr.mxu0 0.0
  %734 = vmatpush1.msra.mxu0 0.0
  %735 = vmatprep.subr.mxu0 0.0
  %736 = vmatpush1.msra.mxu0 0.0
  %737 = vmatprep.subr.mxu0 0.0
  %738 = vmatpush1.msra.mxu0 0.0
  %739 = vmatprep.subr.mxu0 0.0
  %740 = vmatpush1.msra.mxu0 0.0
  %741 = vmatprep.subr.mxu0 0.0
  %742 = vmatpush1.msra.mxu0 0.0
  %743 = vmatprep.subr.mxu0 0.0
  %744 = vmatpush1.msra.mxu0 0.0
  %745 = vmatprep.subr.mxu0 0.0
  %746 = vmatpush1.msra.mxu0 0.0
  %747 = vmatprep.mubr.f32.mxu0 0.0
  %748 = vmatmul.mubr.f32.gmra.mrb[0].mxu0 %v603
  %v749 = vpop.f32.mrb[0].mxu0
  %v750 = vadd.f32 0.0, %v749
  %v751 = vpop.f32.mrb[0].mxu0
  %v752 = vadd.f32 0.0, %v751
  %753 = vdwg.mxu0
  %v754 = vadd.f32 %v608, %v679
  %v755 = vadd.f32 %v609, %v681
  %v756 = vadd.f32 %v610, %v750
  %v757 = vadd.f32 %v611, %v752
  %v758 = vxor.u32 %v754, 2147483648
  %v759 = vxor.u32 %v755, 2147483648
  %v760 = vxor.u32 %v756, 2147483648
  %v761 = vmul.f32 %v758, 1.442695
  %v762 = vpow.pop %v761
  %v763 = vmul.f32 %v759, 1.442695
  %v764 = vpow.pop %v763
  %v765 = vmul.f32 %v760, 1.442695
  %v766 = vpow.pop %v765
  %v767 = vadd.f32 %v762, 1.0
  %v768 = vadd.f32 %v764, 1.0
  %v769 = vadd.f32 %v766, 1.0
  %v770 = vrcp.pop %v767
  %v771 = vmul.f32 1.0, %v770
  %v772 = vrcp.pop %v768
  %v773 = vmul.f32 1.0, %v772
  %v774 = vrcp.pop %v769
  %v775 = vmul.f32 1.0, %v774
  %v776 = vtanh.pop %v757
  %v777 = vmul.f32 %v773, %v601
  %v778 = vmul.f32 %v771, %v776
  %v779 = vadd.f32 %v777, %v778
  %v780 = vtanh.pop %v779
  %v781 = vmul.f32 %v775, %v780
  %s782 = scalar_lea.vmem [#allocation3], 8
  %783 = vst [vmem:[%s782] sm:$0xff] %v781
  %s784 = smul.u32 2, 4
  %s785 = smul.addr %s784, 8
  %s786 = scalar_lea.vmem [#allocation2], %s785
  %v787 = vld [vmem:[%s786] sm:$0xff]
  %v788 = vld [vmem:[%s786 + $0x8] sm:$0xff]
  %v789 = vld [vmem:[%s786 + $0x10] sm:$0xff]
  %v790 = vld [vmem:[%s786 + $0x18] sm:$0xff]
  %791 = vmatprep.subr.mxu0 %v362
  %792 = vmatpush1.msra.mxu0 %v361
  %793 = vmatprep.subr.mxu0 %v366
  %794 = vmatpush1.msra.mxu0 %v365
  %795 = vmatprep.subr.mxu0 %v370
  %796 = vmatpush1.msra.mxu0 %v369
  %797 = vmatprep.subr.mxu0 %v374
  %798 = vmatpush1.msra.mxu0 %v373
  %799 = vmatprep.subr.mxu0 %v378
  %800 = vmatpush1.msra.mxu0 %v377
  %801 = vmatprep.subr.mxu0 %v382
  %802 = vmatpush1.msra.mxu0 %v381
  %803 = vmatprep.subr.mxu0 %v386
  %804 = vmatpush1.msra.mxu0 %v385
  %805 = vmatprep.subr.mxu0 %v390
  %806 = vmatpush1.msra.mxu0 %v389
  %807 = vmatprep.subr.mxu0 %v394
  %808 = vmatpush1.msra.mxu0 %v393
  %809 = vmatprep.subr.mxu0 %v398
  %810 = vmatpush1.msra.mxu0 %v397
  %811 = vmatprep.subr.mxu0 %v402
  %812 = vmatpush1.msra.mxu0 %v401
  %813 = vmatprep.subr.mxu0 %v406
  %814 = vmatpush1.msra.mxu0 %v405
  %815 = vmatprep.subr.mxu0 %v410
  %816 = vmatpush1.msra.mxu0 %v409
  %817 = vmatprep.subr.mxu0 %v414
  %818 = vmatpush1.msra.mxu0 %v413
  %819 = vmatprep.subr.mxu0 %v418
  %820 = vmatpush1.msra.mxu0 %v417
  %821 = vmatprep.subr.mxu0 %v422
  %822 = vmatpush1.msra.mxu0 %v421
  %823 = vmatprep.subr.mxu0 0.0
  %824 = vmatpush1.msra.mxu0 0.0
  %825 = vmatprep.subr.mxu0 0.0
  %826 = vmatpush1.msra.mxu0 0.0
  %827 = vmatprep.subr.mxu0 0.0
  %828 = vmatpush1.msra.mxu0 0.0
  %829 = vmatprep.subr.mxu0 0.0
  %830 = vmatpush1.msra.mxu0 0.0
  %831 = vmatprep.subr.mxu0 0.0
  %832 = vmatpush1.msra.mxu0 0.0
  %833 = vmatprep.subr.mxu0 0.0
  %834 = vmatpush1.msra.mxu0 0.0
  %835 = vmatprep.subr.mxu0 0.0
  %836 = vmatpush1.msra.mxu0 0.0
  %837 = vmatprep.subr.mxu0 0.0
  %838 = vmatpush1.msra.mxu0 0.0
  %839 = vmatprep.subr.mxu0 0.0
  %840 = vmatpush1.msra.mxu0 0.0
  %841 = vmatprep.subr.mxu0 0.0
  %842 = vmatpush1.msra.mxu0 0.0
  %843 = vmatprep.subr.mxu0 0.0
  %844 = vmatpush1.msra.mxu0 0.0
  %845 = vmatprep.subr.mxu0 0.0
  %846 = vmatpush1.msra.mxu0 0.0
  %847 = vmatprep.subr.mxu0 0.0
  %848 = vmatpush1.msra.mxu0 0.0
  %849 = vmatprep.subr.mxu0 0.0
  %850 = vmatpush1.msra.mxu0 0.0
  %851 = vmatprep.subr.mxu0 0.0
  %852 = vmatpush1.msra.mxu0 0.0
  %853 = vmatprep.subr.mxu0 0.0
  %854 = vmatpush1.msra.mxu0 0.0
  %855 = vmatprep.mubr.f32.mxu0 0.0
  %856 = vmatmul.mubr.f32.gmra.mrb[0].mxu0 %v781
  %v857 = vpop.f32.mrb[0].mxu0
  %v858 = vadd.f32 0.0, %v857
  %v859 = vpop.f32.mrb[0].mxu0
  %v860 = vadd.f32 0.0, %v859
  %861 = vdwg.mxu0
  %862 = vmatprep.subr.mxu0 %v364
  %863 = vmatpush1.msra.mxu0 %v363
  %864 = vmatprep.subr.mxu0 %v368
  %865 = vmatpush1.msra.mxu0 %v367
  %866 = vmatprep.subr.mxu0 %v372
  %867 = vmatpush1.msra.mxu0 %v371
  %868 = vmatprep.subr.mxu0 %v376
  %869 = vmatpush1.msra.mxu0 %v375
  %870 = vmatprep.subr.mxu0 %v380
  %871 = vmatpush1.msra.mxu0 %v379
  %872 = vmatprep.subr.mxu0 %v384
  %873 = vmatpush1.msra.mxu0 %v383
  %874 = vmatprep.subr.mxu0 %v388
  %875 = vmatpush1.msra.mxu0 %v387
  %876 = vmatprep.subr.mxu0 %v392
  %877 = vmatpush1.msra.mxu0 %v391
  %878 = vmatprep.subr.mxu0 %v396
  %879 = vmatpush1.msra.mxu0 %v395
  %880 = vmatprep.subr.mxu0 %v400
  %881 = vmatpush1.msra.mxu0 %v399
  %882 = vmatprep.subr.mxu0 %v404
  %883 = vmatpush1.msra.mxu0 %v403
  %884 = vmatprep.subr.mxu0 %v408
  %885 = vmatpush1.msra.mxu0 %v407
  %886 = vmatprep.subr.mxu0 %v412
  %887 = vmatpush1.msra.mxu0 %v411
  %888 = vmatprep.subr.mxu0 %v416
  %889 = vmatpush1.msra.mxu0 %v415
  %890 = vmatprep.subr.mxu0 %v420
  %891 = vmatpush1.msra.mxu0 %v419
  %892 = vmatprep.subr.mxu0 %v424
  %893 = vmatpush1.msra.mxu0 %v423
  %894 = vmatprep.subr.mxu0 0.0
  %895 = vmatpush1.msra.mxu0 0.0
  %896 = vmatprep.subr.mxu0 0.0
  %897 = vmatpush1.msra.mxu0 0.0
  %898 = vmatprep.subr.mxu0 0.0
  %899 = vmatpush1.msra.mxu0 0.0
  %900 = vmatprep.subr.mxu0 0.0
  %901 = vmatpush1.msra.mxu0 0.0
  %902 = vmatprep.subr.mxu0 0.0
  %903 = vmatpush1.msra.mxu0 0.0
  %904 = vmatprep.subr.mxu0 0.0
  %905 = vmatpush1.msra.mxu0 0.0
  %906 = vmatprep.subr.mxu0 0.0
  %907 = vmatpush1.msra.mxu0 0.0
  %908 = vmatprep.subr.mxu0 0.0
  %909 = vmatpush1.msra.mxu0 0.0
  %910 = vmatprep.subr.mxu0 0.0
  %911 = vmatpush1.msra.mxu0 0.0
  %912 = vmatprep.subr.mxu0 0.0
  %913 = vmatpush1.msra.mxu0 0.0
  %914 = vmatprep.subr.mxu0 0.0
  %915 = vmatpush1.msra.mxu0 0.0
  %916 = vmatprep.subr.mxu0 0.0
  %917 = vmatpush1.msra.mxu0 0.0
  %918 = vmatprep.subr.mxu0 0.0
  %919 = vmatpush1.msra.mxu0 0.0
  %920 = vmatprep.subr.mxu0 0.0
  %921 = vmatpush1.msra.mxu0 0.0
  %922 = vmatprep.subr.mxu0 0.0
  %923 = vmatpush1.msra.mxu0 0.0
  %924 = vmatprep.subr.mxu0 0.0
  %925 = vmatpush1.msra.mxu0 0.0
  %926 = vmatprep.mubr.f32.mxu0 0.0
  %927 = vmatmul.mubr.f32.gmra.mrb[0].mxu0 %v781
  %v928 = vpop.f32.mrb[0].mxu0
  %v929 = vadd.f32 0.0, %v928
  %v930 = vpop.f32.mrb[0].mxu0
  %v931 = vadd.f32 0.0, %v930
  %932 = vdwg.mxu0
  %v933 = vadd.f32 %v787, %v858
  %v934 = vadd.f32 %v788, %v860
  %v935 = vadd.f32 %v789, %v929
  %v936 = vadd.f32 %v790, %v931
  %v937 = vxor.u32 %v933, 2147483648
  %v938 = vxor.u32 %v934, 2147483648
  %v939 = vxor.u32 %v935, 2147483648
  %v940 = vmul.f32 %v937, 1.442695
  %v941 = vpow.pop %v940
  %v942 = vmul.f32 %v938, 1.442695
  %v943 = vpow.pop %v942
  %v944 = vmul.f32 %v939, 1.442695
  %v945 = vpow.pop %v944
  %v946 = vadd.f32 %v941, 1.0
  %v947 = vadd.f32 %v943, 1.0
  %v948 = vadd.f32 %v945, 1.0
  %v949 = vrcp.pop %v946
  %v950 = vmul.f32 1.0, %v949
  %v951 = vrcp.pop %v947
  %v952 = vmul.f32 1.0, %v951
  %v953 = vrcp.pop %v948
  %v954 = vmul.f32 1.0, %v953
  %v955 = vtanh.pop %v936
  %v956 = vmul.f32 %v952, %v779
  %v957 = vmul.f32 %v950, %v955
  %v958 = vadd.f32 %v956, %v957
  %v959 = vtanh.pop %v958
  %v960 = vmul.f32 %v954, %v959
  %s961 = scalar_lea.vmem [#allocation3], 16
  %962 = vst [vmem:[%s961] sm:$0xff] %v960
  %s963 = smul.u32 3, 4
  %s964 = smul.addr %s963, 8
  %s965 = scalar_lea.vmem [#allocation2], %s964
  %v966 = vld [vmem:[%s965] sm:$0xff]
  %v967 = vld [vmem:[%s965 + $0x8] sm:$0xff]
  %v968 = vld [vmem:[%s965 + $0x10] sm:$0xff]
  %v969 = vld [vmem:[%s965 + $0x18] sm:$0xff]
  %970 = vmatprep.subr.mxu0 %v362
  %971 = vmatpush1.msra.mxu0 %v361
  %972 = vmatprep.subr.mxu0 %v366
  %973 = vmatpush1.msra.mxu0 %v365
  %974 = vmatprep.subr.mxu0 %v370
  %975 = vmatpush1.msra.mxu0 %v369
  %976 = vmatprep.subr.mxu0 %v374
  %977 = vmatpush1.msra.mxu0 %v373
  %978 = vmatprep.subr.mxu0 %v378
  %979 = vmatpush1.msra.mxu0 %v377
  %980 = vmatprep.subr.mxu0 %v382
  %981 = vmatpush1.msra.mxu0 %v381
  %982 = vmatprep.subr.mxu0 %v386
  %983 = vmatpush1.msra.mxu0 %v385
  %984 = vmatprep.subr.mxu0 %v390
  %985 = vmatpush1.msra.mxu0 %v389
  %986 = vmatprep.subr.mxu0 %v394
  %987 = vmatpush1.msra.mxu0 %v393
  %988 = vmatprep.subr.mxu0 %v398
  %989 = vmatpush1.msra.mxu0 %v397
  %990 = vmatprep.subr.mxu0 %v402
  %991 = vmatpush1.msra.mxu0 %v401
  %992 = vmatprep.subr.mxu0 %v406
  %993 = vmatpush1.msra.mxu0 %v405
  %994 = vmatprep.subr.mxu0 %v410
  %995 = vmatpush1.msra.mxu0 %v409
  %996 = vmatprep.subr.mxu0 %v414
  %997 = vmatpush1.msra.mxu0 %v413
  %998 = vmatprep.subr.mxu0 %v418
  %999 = vmatpush1.msra.mxu0 %v417
  %1000 = vmatprep.subr.mxu0 %v422
  %1001 = vmatpush1.msra.mxu0 %v421
  %1002 = vmatprep.subr.mxu0 0.0
  %1003 = vmatpush1.msra.mxu0 0.0
  %1004 = vmatprep.subr.mxu0 0.0
  %1005 = vmatpush1.msra.mxu0 0.0
  %1006 = vmatprep.subr.mxu0 0.0
  %1007 = vmatpush1.msra.mxu0 0.0
  %1008 = vmatprep.subr.mxu0 0.0
  %1009 = vmatpush1.msra.mxu0 0.0
  %1010 = vmatprep.subr.mxu0 0.0
  %1011 = vmatpush1.msra.mxu0 0.0
  %1012 = vmatprep.subr.mxu0 0.0
  %1013 = vmatpush1.msra.mxu0 0.0
  %1014 = vmatprep.subr.mxu0 0.0
  %1015 = vmatpush1.msra.mxu0 0.0
  %1016 = vmatprep.subr.mxu0 0.0
  %1017 = vmatpush1.msra.mxu0 0.0
  %1018 = vmatprep.subr.mxu0 0.0
  %1019 = vmatpush1.msra.mxu0 0.0
  %1020 = vmatprep.subr.mxu0 0.0
  %1021 = vmatpush1.msra.mxu0 0.0
  %1022 = vmatprep.subr.mxu0 0.0
  %1023 = vmatpush1.msra.mxu0 0.0
  %1024 = vmatprep.subr.mxu0 0.0
  %1025 = vmatpush1.msra.mxu0 0.0
  %1026 = vmatprep.subr.mxu0 0.0
  %1027 = vmatpush1.msra.mxu0 0.0
  %1028 = vmatprep.subr.mxu0 0.0
  %1029 = vmatpush1.msra.mxu0 0.0
  %1030 = vmatprep.subr.mxu0 0.0
  %1031 = vmatpush1.msra.mxu0 0.0
  %1032 = vmatprep.subr.mxu0 0.0
  %1033 = vmatpush1.msra.mxu0 0.0
  %1034 = vmatprep.mubr.f32.mxu0 0.0
  %1035 = vmatmul.mubr.f32.gmra.mrb[0].mxu0 %v960
  %v1036 = vpop.f32.mrb[0].mxu0
  %v1037 = vadd.f32 0.0, %v1036
  %v1038 = vpop.f32.mrb[0].mxu0
  %v1039 = vadd.f32 0.0, %v1038
  %1040 = vdwg.mxu0
  %1041 = vmatprep.subr.mxu0 %v364
  %1042 = vmatpush1.msra.mxu0 %v363
  %1043 = vmatprep.subr.mxu0 %v368
  %1044 = vmatpush1.msra.mxu0 %v367
  %1045 = vmatprep.subr.mxu0 %v372
  %1046 = vmatpush1.msra.mxu0 %v371
  %1047 = vmatprep.subr.mxu0 %v376
  %1048 = vmatpush1.msra.mxu0 %v375
  %1049 = vmatprep.subr.mxu0 %v380
  %1050 = vmatpush1.msra.mxu0 %v379
  %1051 = vmatprep.subr.mxu0 %v384
  %1052 = vmatpush1.msra.mxu0 %v383
  %1053 = vmatprep.subr.mxu0 %v388
  %1054 = vmatpush1.msra.mxu0 %v387
  %1055 = vmatprep.subr.mxu0 %v392
  %1056 = vmatpush1.msra.mxu0 %v391
  %1057 = vmatprep.subr.mxu0 %v396
  %1058 = vmatpush1.msra.mxu0 %v395
  %1059 = vmatprep.subr.mxu0 %v400
  %1060 = vmatpush1.msra.mxu0 %v399
  %1061 = vmatprep.subr.mxu0 %v404
  %1062 = vmatpush1.msra.mxu0 %v403
  %1063 = vmatprep.subr.mxu0 %v408
  %1064 = vmatpush1.msra.mxu0 %v407
  %1065 = vmatprep.subr.mxu0 %v412
  %1066 = vmatpush1.msra.mxu0 %v411
  %1067 = vmatprep.subr.mxu0 %v416
  %1068 = vmatpush1.msra.mxu0 %v415
  %1069 = vmatprep.subr.mxu0 %v420
  %1070 = vmatpush1.msra.mxu0 %v419
  %1071 = vmatprep.subr.mxu0 %v424
  %1072 = vmatpush1.msra.mxu0 %v423
  %1073 = vmatprep.subr.mxu0 0.0
  %1074 = vmatpush1.msra.mxu0 0.0
  %1075 = vmatprep.subr.mxu0 0.0
  %1076 = vmatpush1.msra.mxu0 0.0
  %1077 = vmatprep.subr.mxu0 0.0
  %1078 = vmatpush1.msra.mxu0 0.0
  %1079 = vmatprep.subr.mxu0 0.0
  %1080 = vmatpush1.msra.mxu0 0.0
  %1081 = vmatprep.subr.mxu0 0.0
  %1082 = vmatpush1.msra.mxu0 0.0
  %1083 = vmatprep.subr.mxu0 0.0
  %1084 = vmatpush1.msra.mxu0 0.0
  %1085 = vmatprep.subr.mxu0 0.0
  %1086 = vmatpush1.msra.mxu0 0.0
  %1087 = vmatprep.subr.mxu0 0.0
  %1088 = vmatpush1.msra.mxu0 0.0
  %1089 = vmatprep.subr.mxu0 0.0
  %1090 = vmatpush1.msra.mxu0 0.0
  %1091 = vmatprep.subr.mxu0 0.0
  %1092 = vmatpush1.msra.mxu0 0.0
  %1093 = vmatprep.subr.mxu0 0.0
  %1094 = vmatpush1.msra.mxu0 0.0
  %1095 = vmatprep.subr.mxu0 0.0
  %1096 = vmatpush1.msra.mxu0 0.0
  %1097 = vmatprep.subr.mxu0 0.0
  %1098 = vmatpush1.msra.mxu0 0.0
  %1099 = vmatprep.subr.mxu0 0.0
  %1100 = vmatpush1.msra.mxu0 0.0
  %1101 = vmatprep.subr.mxu0 0.0
  %1102 = vmatpush1.msra.mxu0 0.0
  %1103 = vmatprep.subr.mxu0 0.0
  %1104 = vmatpush1.msra.mxu0 0.0
  %1105 = vmatprep.mubr.f32.mxu0 0.0
  %1106 = vmatmul.mubr.f32.gmra.mrb[0].mxu0 %v960
  %v1107 = vpop.f32.mrb[0].mxu0
  %v1108 = vadd.f32 0.0, %v1107
  %v1109 = vpop.f32.mrb[0].mxu0
  %v1110 = vadd.f32 0.0, %v1109
  %1111 = vdwg.mxu0
  %v1112 = vadd.f32 %v966, %v1037
  %v1113 = vadd.f32 %v967, %v1039
  %v1114 = vadd.f32 %v968, %v1108
  %v1115 = vadd.f32 %v969, %v1110
  %v1116 = vxor.u32 %v1112, 2147483648
  %v1117 = vxor.u32 %v1113, 2147483648
  %v1118 = vxor.u32 %v1114, 2147483648
  %v1119 = vmul.f32 %v1116, 1.442695
  %v1120 = vpow.pop %v1119
  %v1121 = vmul.f32 %v1117, 1.442695
  %v1122 = vpow.pop %v1121
  %v1123 = vmul.f32 %v1118, 1.442695
  %v1124 = vpow.pop %v1123
  %v1125 = vadd.f32 %v1120, 1.0
  %v1126 = vadd.f32 %v1122, 1.0
  %v1127 = vadd.f32 %v1124, 1.0
  %v1128 = vrcp.pop %v1125
  %v1129 = vmul.f32 1.0, %v1128
  %v1130 = vrcp.pop %v1126
  %v1131 = vmul.f32 1.0, %v1130
  %v1132 = vrcp.pop %v1127
  %v1133 = vmul.f32 1.0, %v1132
  %v1134 = vtanh.pop %v1115
  %v1135 = vmul.f32 %v1131, %v958
  %v1136 = vmul.f32 %v1129, %v1134
  %v1137 = vadd.f32 %v1135, %v1136
  %v1138 = vtanh.pop %v1137
  %v1139 = vmul.f32 %v1133, %v1138
  %s1140 = scalar_lea.vmem [#allocation3], 24
  %1141 = vst [vmem:[%s1140] sm:$0xff] %v1139
  %s1142 = smul.u32 4, 4
  %s1143 = smul.addr %s1142, 8
  %s1144 = scalar_lea.vmem [#allocation2], %s1143
  %v1145 = vld [vmem:[%s1144] sm:$0xff]
  %v1146 = vld [vmem:[%s1144 + $0x8] sm:$0xff]
  %v1147 = vld [vmem:[%s1144 + $0x10] sm:$0xff]
  %v1148 = vld [vmem:[%s1144 + $0x18] sm:$0xff]
  %1149 = vmatprep.subr.mxu0 %v362
  %1150 = vmatpush1.msra.mxu0 %v361
  %1151 = vmatprep.subr.mxu0 %v366
  %1152 = vmatpush1.msra.mxu0 %v365
  %1153 = vmatprep.subr.mxu0 %v370
  %1154 = vmatpush1.msra.mxu0 %v369
  %1155 = vmatprep.subr.mxu0 %v374
  %1156 = vmatpush1.msra.mxu0 %v373
  %1157 = vmatprep.subr.mxu0 %v378
  %1158 = vmatpush1.msra.mxu0 %v377
  %1159 = vmatprep.subr.mxu0 %v382
  %1160 = vmatpush1.msra.mxu0 %v381
  %1161 = vmatprep.subr.mxu0 %v386
  %1162 = vmatpush1.msra.mxu0 %v385
  %1163 = vmatprep.subr.mxu0 %v390
  %1164 = vmatpush1.msra.mxu0 %v389
  %1165 = vmatprep.subr.mxu0 %v394
  %1166 = vmatpush1.msra.mxu0 %v393
  %1167 = vmatprep.subr.mxu0 %v398
  %1168 = vmatpush1.msra.mxu0 %v397
  %1169 = vmatprep.subr.mxu0 %v402
  %1170 = vmatpush1.msra.mxu0 %v401
  %1171 = vmatprep.subr.mxu0 %v406
  %1172 = vmatpush1.msra.mxu0 %v405
  %1173 = vmatprep.subr.mxu0 %v410
  %1174 = vmatpush1.msra.mxu0 %v409
  %1175 = vmatprep.subr.mxu0 %v414
  %1176 = vmatpush1.msra.mxu0 %v413
  %1177 = vmatprep.subr.mxu0 %v418
  %1178 = vmatpush1.msra.mxu0 %v417
  %1179 = vmatprep.subr.mxu0 %v422
  %1180 = vmatpush1.msra.mxu0 %v421
  %1181 = vmatprep.subr.mxu0 0.0
  %1182 = vmatpush1.msra.mxu0 0.0
  %1183 = vmatprep.subr.mxu0 0.0
  %1184 = vmatpush1.msra.mxu0 0.0
  %1185 = vmatprep.subr.mxu0 0.0
  %1186 = vmatpush1.msra.mxu0 0.0
  %1187 = vmatprep.subr.mxu0 0.0
  %1188 = vmatpush1.msra.mxu0 0.0
  %1189 = vmatprep.subr.mxu0 0.0
  %1190 = vmatpush1.msra.mxu0 0.0
  %1191 = vmatprep.subr.mxu0 0.0
  %1192 = vmatpush1.msra.mxu0 0.0
  %1193 = vmatprep.subr.mxu0 0.0
  %1194 = vmatpush1.msra.mxu0 0.0
  %1195 = vmatprep.subr.mxu0 0.0
  %1196 = vmatpush1.msra.mxu0 0.0
  %1197 = vmatprep.subr.mxu0 0.0
  %1198 = vmatpush1.msra.mxu0 0.0
  %1199 = vmatprep.subr.mxu0 0.0
  %1200 = vmatpush1.msra.mxu0 0.0
  %1201 = vmatprep.subr.mxu0 0.0
  %1202 = vmatpush1.msra.mxu0 0.0
  %1203 = vmatprep.subr.mxu0 0.0
  %1204 = vmatpush1.msra.mxu0 0.0
  %1205 = vmatprep.subr.mxu0 0.0
  %1206 = vmatpush1.msra.mxu0 0.0
  %1207 = vmatprep.subr.mxu0 0.0
  %1208 = vmatpush1.msra.mxu0 0.0
  %1209 = vmatprep.subr.mxu0 0.0
  %1210 = vmatpush1.msra.mxu0 0.0
  %1211 = vmatprep.subr.mxu0 0.0
  %1212 = vmatpush1.msra.mxu0 0.0
  %1213 = vmatprep.mubr.f32.mxu0 0.0
  %1214 = vmatmul.mubr.f32.gmra.mrb[0].mxu0 %v1139
  %v1215 = vpop.f32.mrb[0].mxu0
  %v1216 = vadd.f32 0.0, %v1215
  %v1217 = vpop.f32.mrb[0].mxu0
  %v1218 = vadd.f32 0.0, %v1217
  %1219 = vdwg.mxu0
  %1220 = vmatprep.subr.mxu0 %v364
  %1221 = vmatpush1.msra.mxu0 %v363
  %1222 = vmatprep.subr.mxu0 %v368
  %1223 = vmatpush1.msra.mxu0 %v367
  %1224 = vmatprep.subr.mxu0 %v372
  %1225 = vmatpush1.msra.mxu0 %v371
  %1226 = vmatprep.subr.mxu0 %v376
  %1227 = vmatpush1.msra.mxu0 %v375
  %1228 = vmatprep.subr.mxu0 %v380
  %1229 = vmatpush1.msra.mxu0 %v379
  %1230 = vmatprep.subr.mxu0 %v384
  %1231 = vmatpush1.msra.mxu0 %v383
  %1232 = vmatprep.subr.mxu0 %v388
  %1233 = vmatpush1.msra.mxu0 %v387
  %1234 = vmatprep.subr.mxu0 %v392
  %1235 = vmatpush1.msra.mxu0 %v391
  %1236 = vmatprep.subr.mxu0 %v396
  %1237 = vmatpush1.msra.mxu0 %v395
  %1238 = vmatprep.subr.mxu0 %v400
  %1239 = vmatpush1.msra.mxu0 %v399
  %1240 = vmatprep.subr.mxu0 %v404
  %1241 = vmatpush1.msra.mxu0 %v403
  %1242 = vmatprep.subr.mxu0 %v408
  %1243 = vmatpush1.msra.mxu0 %v407
  %1244 = vmatprep.subr.mxu0 %v412
  %1245 = vmatpush1.msra.mxu0 %v411
  %1246 = vmatprep.subr.mxu0 %v416
  %1247 = vmatpush1.msra.mxu0 %v415
  %1248 = vmatprep.subr.mxu0 %v420
  %1249 = vmatpush1.msra.mxu0 %v419
  %1250 = vmatprep.subr.mxu0 %v424
  %1251 = vmatpush1.msra.mxu0 %v423
  %1252 = vmatprep.subr.mxu0 0.0
  %1253 = vmatpush1.msra.mxu0 0.0
  %1254 = vmatprep.subr.mxu0 0.0
  %1255 = vmatpush1.msra.mxu0 0.0
  %1256 = vmatprep.subr.mxu0 0.0
  %1257 = vmatpush1.msra.mxu0 0.0
  %1258 = vmatprep.subr.mxu0 0.0
  %1259 = vmatpush1.msra.mxu0 0.0
  %1260 = vmatprep.subr.mxu0 0.0
  %1261 = vmatpush1.msra.mxu0 0.0
  %1262 = vmatprep.subr.mxu0 0.0
  %1263 = vmatpush1.msra.mxu0 0.0
  %1264 = vmatprep.subr.mxu0 0.0
  %1265 = vmatpush1.msra.mxu0 0.0
  %1266 = vmatprep.subr.mxu0 0.0
  %1267 = vmatpush1.msra.mxu0 0.0
  %1268 = vmatprep.subr.mxu0 0.0
  %1269 = vmatpush1.msra.mxu0 0.0
  %1270 = vmatprep.subr.mxu0 0.0
  %1271 = vmatpush1.msra.mxu0 0.0
  %1272 = vmatprep.subr.mxu0 0.0
  %1273 = vmatpush1.msra.mxu0 0.0
  %1274 = vmatprep.subr.mxu0 0.0
  %1275 = vmatpush1.msra.mxu0 0.0
  %1276 = vmatprep.subr.mxu0 0.0
  %1277 = vmatpush1.msra.mxu0 0.0
  %1278 = vmatprep.subr.mxu0 0.0
  %1279 = vmatpush1.msra.mxu0 0.0
  %1280 = vmatprep.subr.mxu0 0.0
  %1281 = vmatpush1.msra.mxu0 0.0
  %1282 = vmatprep.subr.mxu0 0.0
  %1283 = vmatpush1.msra.mxu0 0.0
  %1284 = vmatprep.mubr.f32.mxu0 0.0
  %1285 = vmatmul.mubr.f32.gmra.mrb[0].mxu0 %v1139
  %v1286 = vpop.f32.mrb[0].mxu0
  %v1287 = vadd.f32 0.0, %v1286
  %v1288 = vpop.f32.mrb[0].mxu0
  %v1289 = vadd.f32 0.0, %v1288
  %1290 = vdwg.mxu0
  %v1291 = vadd.f32 %v1145, %v1216
  %v1292 = vadd.f32 %v1146, %v1218
  %v1293 = vadd.f32 %v1147, %v1287
  %v1294 = vadd.f32 %v1148, %v1289
  %v1295 = vxor.u32 %v1291, 2147483648
  %v1296 = vxor.u32 %v1292, 2147483648
  %v1297 = vxor.u32 %v1293, 2147483648
  %v1298 = vmul.f32 %v1295, 1.442695
  %v1299 = vpow.pop %v1298
  %v1300 = vmul.f32 %v1296, 1.442695
  %v1301 = vpow.pop %v1300
  %v1302 = vmul.f32 %v1297, 1.442695
  %v1303 = vpow.pop %v1302
  %v1304 = vadd.f32 %v1299, 1.0
  %v1305 = vadd.f32 %v1301, 1.0
  %v1306 = vadd.f32 %v1303, 1.0
  %v1307 = vrcp.pop %v1304
  %v1308 = vmul.f32 1.0, %v1307
  %v1309 = vrcp.pop %v1305
  %v1310 = vmul.f32 1.0, %v1309
  %v1311 = vrcp.pop %v1306
  %v1312 = vmul.f32 1.0, %v1311
  %v1313 = vtanh.pop %v1294
  %v1314 = vmul.f32 %v1310, %v1137
  %v1315 = vmul.f32 %v1308, %v1313
  %v1316 = vadd.f32 %v1314, %v1315
  %v1317 = vtanh.pop %v1316
  %v1318 = vmul.f32 %v1312, %v1317
  %s1319 = scalar_lea.vmem [#allocation3], 32
  %1320 = vst [vmem:[%s1319] sm:$0xff] %v1318
  %s1321 = smul.u32 5, 4
  %s1322 = smul.addr %s1321, 8
  %s1323 = scalar_lea.vmem [#allocation2], %s1322
  %v1324 = vld [vmem:[%s1323] sm:$0xff]
  %v1325 = vld [vmem:[%s1323 + $0x8] sm:$0xff]
  %v1326 = vld [vmem:[%s1323 + $0x10] sm:$0xff]
  %v1327 = vld [vmem:[%s1323 + $0x18] sm:$0xff]
  %1328 = vmatprep.subr.mxu0 %v362
  %1329 = vmatpush1.msra.mxu0 %v361
  %1330 = vmatprep.subr.mxu0 %v366
  %1331 = vmatpush1.msra.mxu0 %v365
  %1332 = vmatprep.subr.mxu0 %v370
  %1333 = vmatpush1.msra.mxu0 %v369
  %1334 = vmatprep.subr.mxu0 %v374
  %1335 = vmatpush1.msra.mxu0 %v373
  %1336 = vmatprep.subr.mxu0 %v378
  %1337 = vmatpush1.msra.mxu0 %v377
  %1338 = vmatprep.subr.mxu0 %v382
  %1339 = vmatpush1.msra.mxu0 %v381
  %1340 = vmatprep.subr.mxu0 %v386
  %1341 = vmatpush1.msra.mxu0 %v385
  %1342 = vmatprep.subr.mxu0 %v390
  %1343 = vmatpush1.msra.mxu0 %v389
  %1344 = vmatprep.subr.mxu0 %v394
  %1345 = vmatpush1.msra.mxu0 %v393
  %1346 = vmatprep.subr.mxu0 %v398
  %1347 = vmatpush1.msra.mxu0 %v397
  %1348 = vmatprep.subr.mxu0 %v402
  %1349 = vmatpush1.msra.mxu0 %v401
  %1350 = vmatprep.subr.mxu0 %v406
  %1351 = vmatpush1.msra.mxu0 %v405
  %1352 = vmatprep.subr.mxu0 %v410
  %1353 = vmatpush1.msra.mxu0 %v409
  %1354 = vmatprep.subr.mxu0 %v414
  %1355 = vmatpush1.msra.mxu0 %v413
  %1356 = vmatprep.subr.mxu0 %v418
  %1357 = vmatpush1.msra.mxu0 %v417
  %1358 = vmatprep.subr.mxu0 %v422
  %1359 = vmatpush1.msra.mxu0 %v421
  %1360 = vmatprep.subr.mxu0 0.0
  %1361 = vmatpush1.msra.mxu0 0.0
  %1362 = vmatprep.subr.mxu0 0.0
  %1363 = vmatpush1.msra.mxu0 0.0
  %1364 = vmatprep.subr.mxu0 0.0
  %1365 = vmatpush1.msra.mxu0 0.0
  %1366 = vmatprep.subr.mxu0 0.0
  %1367 = vmatpush1.msra.mxu0 0.0
  %1368 = vmatprep.subr.mxu0 0.0
  %1369 = vmatpush1.msra.mxu0 0.0
  %1370 = vmatprep.subr.mxu0 0.0
  %1371 = vmatpush1.msra.mxu0 0.0
  %1372 = vmatprep.subr.mxu0 0.0
  %1373 = vmatpush1.msra.mxu0 0.0
  %1374 = vmatprep.subr.mxu0 0.0
  %1375 = vmatpush1.msra.mxu0 0.0
  %1376 = vmatprep.subr.mxu0 0.0
  %1377 = vmatpush1.msra.mxu0 0.0
  %1378 = vmatprep.subr.mxu0 0.0
  %1379 = vmatpush1.msra.mxu0 0.0
  %1380 = vmatprep.subr.mxu0 0.0
  %1381 = vmatpush1.msra.mxu0 0.0
  %1382 = vmatprep.subr.mxu0 0.0
  %1383 = vmatpush1.msra.mxu0 0.0
  %1384 = vmatprep.subr.mxu0 0.0
  %1385 = vmatpush1.msra.mxu0 0.0
  %1386 = vmatprep.subr.mxu0 0.0
  %1387 = vmatpush1.msra.mxu0 0.0
  %1388 = vmatprep.subr.mxu0 0.0
  %1389 = vmatpush1.msra.mxu0 0.0
  %1390 = vmatprep.subr.mxu0 0.0
  %1391 = vmatpush1.msra.mxu0 0.0
  %1392 = vmatprep.mubr.f32.mxu0 0.0
  %1393 = vmatmul.mubr.f32.gmra.mrb[0].mxu0 %v1318
  %v1394 = vpop.f32.mrb[0].mxu0
  %v1395 = vadd.f32 0.0, %v1394
  %v1396 = vpop.f32.mrb[0].mxu0
  %v1397 = vadd.f32 0.0, %v1396
  %1398 = vdwg.mxu0
  %1399 = vmatprep.subr.mxu0 %v364
  %1400 = vmatpush1.msra.mxu0 %v363
  %1401 = vmatprep.subr.mxu0 %v368
  %1402 = vmatpush1.msra.mxu0 %v367
  %1403 = vmatprep.subr.mxu0 %v372
  %1404 = vmatpush1.msra.mxu0 %v371
  %1405 = vmatprep.subr.mxu0 %v376
  %1406 = vmatpush1.msra.mxu0 %v375
  %1407 = vmatprep.subr.mxu0 %v380
  %1408 = vmatpush1.msra.mxu0 %v379
  %1409 = vmatprep.subr.mxu0 %v384
  %1410 = vmatpush1.msra.mxu0 %v383
  %1411 = vmatprep.subr.mxu0 %v388
  %1412 = vmatpush1.msra.mxu0 %v387
  %1413 = vmatprep.subr.mxu0 %v392
  %1414 = vmatpush1.msra.mxu0 %v391
  %1415 = vmatprep.subr.mxu0 %v396
  %1416 = vmatpush1.msra.mxu0 %v395
  %1417 = vmatprep.subr.mxu0 %v400
  %1418 = vmatpush1.msra.mxu0 %v399
  %1419 = vmatprep.subr.mxu0 %v404
  %1420 = vmatpush1.msra.mxu0 %v403
  %1421 = vmatprep.subr.mxu0 %v408
  %1422 = vmatpush1.msra.mxu0 %v407
  %1423 = vmatprep.subr.mxu0 %v412
  %1424 = vmatpush1.msra.mxu0 %v411
  %1425 = vmatprep.subr.mxu0 %v416
  %1426 = vmatpush1.msra.mxu0 %v415
  %1427 = vmatprep.subr.mxu0 %v420
  %1428 = vmatpush1.msra.mxu0 %v419
  %1429 = vmatprep.subr.mxu0 %v424
  %1430 = vmatpush1.msra.mxu0 %v423
  %1431 = vmatprep.subr.mxu0 0.0
  %1432 = vmatpush1.msra.mxu0 0.0
  %1433 = vmatprep.subr.mxu0 0.0
  %1434 = vmatpush1.msra.mxu0 0.0
  %1435 = vmatprep.subr.mxu0 0.0
  %1436 = vmatpush1.msra.mxu0 0.0
  %1437 = vmatprep.subr.mxu0 0.0
  %1438 = vmatpush1.msra.mxu0 0.0
  %1439 = vmatprep.subr.mxu0 0.0
  %1440 = vmatpush1.msra.mxu0 0.0
  %1441 = vmatprep.subr.mxu0 0.0
  %1442 = vmatpush1.msra.mxu0 0.0
  %1443 = vmatprep.subr.mxu0 0.0
  %1444 = vmatpush1.msra.mxu0 0.0
  %1445 = vmatprep.subr.mxu0 0.0
  %1446 = vmatpush1.msra.mxu0 0.0
  %1447 = vmatprep.subr.mxu0 0.0
  %1448 = vmatpush1.msra.mxu0 0.0
  %1449 = vmatprep.subr.mxu0 0.0
  %1450 = vmatpush1.msra.mxu0 0.0
  %1451 = vmatprep.subr.mxu0 0.0
  %1452 = vmatpush1.msra.mxu0 0.0
  %1453 = vmatprep.subr.mxu0 0.0
  %1454 = vmatpush1.msra.mxu0 0.0
  %1455 = vmatprep.subr.mxu0 0.0
  %1456 = vmatpush1.msra.mxu0 0.0
  %1457 = vmatprep.subr.mxu0 0.0
  %1458 = vmatpush1.msra.mxu0 0.0
  %1459 = vmatprep.subr.mxu0 0.0
  %1460 = vmatpush1.msra.mxu0 0.0
  %1461 = vmatprep.subr.mxu0 0.0
  %1462 = vmatpush1.msra.mxu0 0.0
  %1463 = vmatprep.mubr.f32.mxu0 0.0
  %1464 = vmatmul.mubr.f32.gmra.mrb[0].mxu0 %v1318
  %v1465 = vpop.f32.mrb[0].mxu0
  %v1466 = vadd.f32 0.0, %v1465
  %v1467 = vpop.f32.mrb[0].mxu0
  %v1468 = vadd.f32 0.0, %v1467
  %1469 = vdwg.mxu0
  %v1470 = vadd.f32 %v1324, %v1395
  %v1471 = vadd.f32 %v1325, %v1397
  %v1472 = vadd.f32 %v1326, %v1466
  %v1473 = vadd.f32 %v1327, %v1468
  %v1474 = vxor.u32 %v1470, 2147483648
  %v1475 = vxor.u32 %v1471, 2147483648
  %v1476 = vxor.u32 %v1472, 2147483648
  %v1477 = vmul.f32 %v1474, 1.442695
  %v1478 = vpow.pop %v1477
  %v1479 = vmul.f32 %v1475, 1.442695
  %v1480 = vpow.pop %v1479
  %v1481 = vmul.f32 %v1476, 1.442695
  %v1482 = vpow.pop %v1481
  %v1483 = vadd.f32 %v1478, 1.0
  %v1484 = vadd.f32 %v1480, 1.0
  %v1485 = vadd.f32 %v1482, 1.0
  %v1486 = vrcp.pop %v1483
  %v1487 = vmul.f32 1.0, %v1486
  %v1488 = vrcp.pop %v1484
  %v1489 = vmul.f32 1.0, %v1488
  %v1490 = vrcp.pop %v1485
  %v1491 = vmul.f32 1.0, %v1490
  %v1492 = vtanh.pop %v1473
  %v1493 = vmul.f32 %v1489, %v1316
  %v1494 = vmul.f32 %v1487, %v1492
  %v1495 = vadd.f32 %v1493, %v1494
  %v1496 = vtanh.pop %v1495
  %v1497 = vmul.f32 %v1491, %v1496
  %s1498 = scalar_lea.vmem [#allocation3], 40
  %1499 = vst [vmem:[%s1498] sm:$0xff] %v1497
  %s1500 = smul.u32 6, 4
  %s1501 = smul.addr %s1500, 8
  %s1502 = scalar_lea.vmem [#allocation2], %s1501
  %v1503 = vld [vmem:[%s1502] sm:$0xff]
  %v1504 = vld [vmem:[%s1502 + $0x8] sm:$0xff]
  %v1505 = vld [vmem:[%s1502 + $0x10] sm:$0xff]
  %v1506 = vld [vmem:[%s1502 + $0x18] sm:$0xff]
  %1507 = vmatprep.subr.mxu0 %v362
  %1508 = vmatpush1.msra.mxu0 %v361
  %1509 = vmatprep.subr.mxu0 %v366
  %1510 = vmatpush1.msra.mxu0 %v365
  %1511 = vmatprep.subr.mxu0 %v370
  %1512 = vmatpush1.msra.mxu0 %v369
  %1513 = vmatprep.subr.mxu0 %v374
  %1514 = vmatpush1.msra.mxu0 %v373
  %1515 = vmatprep.subr.mxu0 %v378
  %1516 = vmatpush1.msra.mxu0 %v377
  %1517 = vmatprep.subr.mxu0 %v382
  %1518 = vmatpush1.msra.mxu0 %v381
  %1519 = vmatprep.subr.mxu0 %v386
  %1520 = vmatpush1.msra.mxu0 %v385
  %1521 = vmatprep.subr.mxu0 %v390
  %1522 = vmatpush1.msra.mxu0 %v389
  %1523 = vmatprep.subr.mxu0 %v394
  %1524 = vmatpush1.msra.mxu0 %v393
  %1525 = vmatprep.subr.mxu0 %v398
  %1526 = vmatpush1.msra.mxu0 %v397
  %1527 = vmatprep.subr.mxu0 %v402
  %1528 = vmatpush1.msra.mxu0 %v401
  %1529 = vmatprep.subr.mxu0 %v406
  %1530 = vmatpush1.msra.mxu0 %v405
  %1531 = vmatprep.subr.mxu0 %v410
  %1532 = vmatpush1.msra.mxu0 %v409
  %1533 = vmatprep.subr.mxu0 %v414
  %1534 = vmatpush1.msra.mxu0 %v413
  %1535 = vmatprep.subr.mxu0 %v418
  %1536 = vmatpush1.msra.mxu0 %v417
  %1537 = vmatprep.subr.mxu0 %v422
  %1538 = vmatpush1.msra.mxu0 %v421
  %1539 = vmatprep.subr.mxu0 0.0
  %1540 = vmatpush1.msra.mxu0 0.0
  %1541 = vmatprep.subr.mxu0 0.0
  %1542 = vmatpush1.msra.mxu0 0.0
  %1543 = vmatprep.subr.mxu0 0.0
  %1544 = vmatpush1.msra.mxu0 0.0
  %1545 = vmatprep.subr.mxu0 0.0
  %1546 = vmatpush1.msra.mxu0 0.0
  %1547 = vmatprep.subr.mxu0 0.0
  %1548 = vmatpush1.msra.mxu0 0.0
  %1549 = vmatprep.subr.mxu0 0.0
  %1550 = vmatpush1.msra.mxu0 0.0
  %1551 = vmatprep.subr.mxu0 0.0
  %1552 = vmatpush1.msra.mxu0 0.0
  %1553 = vmatprep.subr.mxu0 0.0
  %1554 = vmatpush1.msra.mxu0 0.0
  %1555 = vmatprep.subr.mxu0 0.0
  %1556 = vmatpush1.msra.mxu0 0.0
  %1557 = vmatprep.subr.mxu0 0.0
  %1558 = vmatpush1.msra.mxu0 0.0
  %1559 = vmatprep.subr.mxu0 0.0
  %1560 = vmatpush1.msra.mxu0 0.0
  %1561 = vmatprep.subr.mxu0 0.0
  %1562 = vmatpush1.msra.mxu0 0.0
  %1563 = vmatprep.subr.mxu0 0.0
  %1564 = vmatpush1.msra.mxu0 0.0
  %1565 = vmatprep.subr.mxu0 0.0
  %1566 = vmatpush1.msra.mxu0 0.0
  %1567 = vmatprep.subr.mxu0 0.0
  %1568 = vmatpush1.msra.mxu0 0.0
  %1569 = vmatprep.subr.mxu0 0.0
  %1570 = vmatpush1.msra.mxu0 0.0
  %1571 = vmatprep.mubr.f32.mxu0 0.0
  %1572 = vmatmul.mubr.f32.gmra.mrb[0].mxu0 %v1497
  %v1573 = vpop.f32.mrb[0].mxu0
  %v1574 = vadd.f32 0.0, %v1573
  %v1575 = vpop.f32.mrb[0].mxu0
  %v1576 = vadd.f32 0.0, %v1575
  %1577 = vdwg.mxu0
  %1578 = vmatprep.subr.mxu0 %v364
  %1579 = vmatpush1.msra.mxu0 %v363
  %1580 = vmatprep.subr.mxu0 %v368
  %1581 = vmatpush1.msra.mxu0 %v367
  %1582 = vmatprep.subr.mxu0 %v372
  %1583 = vmatpush1.msra.mxu0 %v371
  %1584 = vmatprep.subr.mxu0 %v376
  %1585 = vmatpush1.msra.mxu0 %v375
  %1586 = vmatprep.subr.mxu0 %v380
  %1587 = vmatpush1.msra.mxu0 %v379
  %1588 = vmatprep.subr.mxu0 %v384
  %1589 = vmatpush1.msra.mxu0 %v383
  %1590 = vmatprep.subr.mxu0 %v388
  %1591 = vmatpush1.msra.mxu0 %v387
  %1592 = vmatprep.subr.mxu0 %v392
  %1593 = vmatpush1.msra.mxu0 %v391
  %1594 = vmatprep.subr.mxu0 %v396
  %1595 = vmatpush1.msra.mxu0 %v395
  %1596 = vmatprep.subr.mxu0 %v400
  %1597 = vmatpush1.msra.mxu0 %v399
  %1598 = vmatprep.subr.mxu0 %v404
  %1599 = vmatpush1.msra.mxu0 %v403
  %1600 = vmatprep.subr.mxu0 %v408
  %1601 = vmatpush1.msra.mxu0 %v407
  %1602 = vmatprep.subr.mxu0 %v412
  %1603 = vmatpush1.msra.mxu0 %v411
  %1604 = vmatprep.subr.mxu0 %v416
  %1605 = vmatpush1.msra.mxu0 %v415
  %1606 = vmatprep.subr.mxu0 %v420
  %1607 = vmatpush1.msra.mxu0 %v419
  %1608 = vmatprep.subr.mxu0 %v424
  %1609 = vmatpush1.msra.mxu0 %v423
  %1610 = vmatprep.subr.mxu0 0.0
  %1611 = vmatpush1.msra.mxu0 0.0
  %1612 = vmatprep.subr.mxu0 0.0
  %1613 = vmatpush1.msra.mxu0 0.0
  %1614 = vmatprep.subr.mxu0 0.0
  %1615 = vmatpush1.msra.mxu0 0.0
  %1616 = vmatprep.subr.mxu0 0.0
  %1617 = vmatpush1.msra.mxu0 0.0
  %1618 = vmatprep.subr.mxu0 0.0
  %1619 = vmatpush1.msra.mxu0 0.0
  %1620 = vmatprep.subr.mxu0 0.0
  %1621 = vmatpush1.msra.mxu0 0.0
  %1622 = vmatprep.subr.mxu0 0.0
  %1623 = vmatpush1.msra.mxu0 0.0
  %1624 = vmatprep.subr.mxu0 0.0
  %1625 = vmatpush1.msra.mxu0 0.0
  %1626 = vmatprep.subr.mxu0 0.0
  %1627 = vmatpush1.msra.mxu0 0.0
  %1628 = vmatprep.subr.mxu0 0.0
  %1629 = vmatpush1.msra.mxu0 0.0
  %1630 = vmatprep.subr.mxu0 0.0
  %1631 = vmatpush1.msra.mxu0 0.0
  %1632 = vmatprep.subr.mxu0 0.0
  %1633 = vmatpush1.msra.mxu0 0.0
  %1634 = vmatprep.subr.mxu0 0.0
  %1635 = vmatpush1.msra.mxu0 0.0
  %1636 = vmatprep.subr.mxu0 0.0
  %1637 = vmatpush1.msra.mxu0 0.0
  %1638 = vmatprep.subr.mxu0 0.0
  %1639 = vmatpush1.msra.mxu0 0.0
  %1640 = vmatprep.subr.mxu0 0.0
  %1641 = vmatpush1.msra.mxu0 0.0
  %1642 = vmatprep.mubr.f32.mxu0 0.0
  %1643 = vmatmul.mubr.f32.gmra.mrb[0].mxu0 %v1497
  %v1644 = vpop.f32.mrb[0].mxu0
  %v1645 = vadd.f32 0.0, %v1644
  %v1646 = vpop.f32.mrb[0].mxu0
  %v1647 = vadd.f32 0.0, %v1646
  %1648 = vdwg.mxu0
  %v1649 = vadd.f32 %v1503, %v1574
  %v1650 = vadd.f32 %v1504, %v1576
  %v1651 = vadd.f32 %v1505, %v1645
  %v1652 = vadd.f32 %v1506, %v1647
  %v1653 = vxor.u32 %v1649, 2147483648
  %v1654 = vxor.u32 %v1650, 2147483648
  %v1655 = vxor.u32 %v1651, 2147483648
  %v1656 = vmul.f32 %v1653, 1.442695
  %v1657 = vpow.pop %v1656
  %v1658 = vmul.f32 %v1654, 1.442695
  %v1659 = vpow.pop %v1658
  %v1660 = vmul.f32 %v1655, 1.442695
  %v1661 = vpow.pop %v1660
  %v1662 = vadd.f32 %v1657, 1.0
  %v1663 = vadd.f32 %v1659, 1.0
  %v1664 = vadd.f32 %v1661, 1.0
  %v1665 = vrcp.pop %v1662
  %v1666 = vmul.f32 1.0, %v1665
  %v1667 = vrcp.pop %v1663
  %v1668 = vmul.f32 1.0, %v1667
  %v1669 = vrcp.pop %v1664
  %v1670 = vmul.f32 1.0, %v1669
  %v1671 = vtanh.pop %v1652
  %v1672 = vmul.f32 %v1668, %v1495
  %v1673 = vmul.f32 %v1666, %v1671
  %v1674 = vadd.f32 %v1672, %v1673
  %v1675 = vtanh.pop %v1674
  %v1676 = vmul.f32 %v1670, %v1675
  %s1677 = scalar_lea.vmem [#allocation3], 48
  %1678 = vst [vmem:[%s1677] sm:$0xff] %v1676
  %s1679 = smul.u32 7, 4
  %s1680 = smul.addr %s1679, 8
  %s1681 = scalar_lea.vmem [#allocation2], %s1680
  %v1682 = vld [vmem:[%s1681] sm:$0xff]
  %v1683 = vld [vmem:[%s1681 + $0x8] sm:$0xff]
  %v1684 = vld [vmem:[%s1681 + $0x10] sm:$0xff]
  %v1685 = vld [vmem:[%s1681 + $0x18] sm:$0xff]
  %1686 = vmatprep.subr.mxu0 %v362
  %1687 = vmatpush1.msra.mxu0 %v361
  %1688 = vmatprep.subr.mxu0 %v366
  %1689 = vmatpush1.msra.mxu0 %v365
  %1690 = vmatprep.subr.mxu0 %v370
  %1691 = vmatpush1.msra.mxu0 %v369
  %1692 = vmatprep.subr.mxu0 %v374
  %1693 = vmatpush1.msra.mxu0 %v373
  %1694 = vmatprep.subr.mxu0 %v378
  %1695 = vmatpush1.msra.mxu0 %v377
  %1696 = vmatprep.subr.mxu0 %v382
  %1697 = vmatpush1.msra.mxu0 %v381
  %1698 = vmatprep.subr.mxu0 %v386
  %1699 = vmatpush1.msra.mxu0 %v385
  %1700 = vmatprep.subr.mxu0 %v390
  %1701 = vmatpush1.msra.mxu0 %v389
  %1702 = vmatprep.subr.mxu0 %v394
  %1703 = vmatpush1.msra.mxu0 %v393
  %1704 = vmatprep.subr.mxu0 %v398
  %1705 = vmatpush1.msra.mxu0 %v397
  %1706 = vmatprep.subr.mxu0 %v402
  %1707 = vmatpush1.msra.mxu0 %v401
  %1708 = vmatprep.subr.mxu0 %v406
  %1709 = vmatpush1.msra.mxu0 %v405
  %1710 = vmatprep.subr.mxu0 %v410
  %1711 = vmatpush1.msra.mxu0 %v409
  %1712 = vmatprep.subr.mxu0 %v414
  %1713 = vmatpush1.msra.mxu0 %v413
  %1714 = vmatprep.subr.mxu0 %v418
  %1715 = vmatpush1.msra.mxu0 %v417
  %1716 = vmatprep.subr.mxu0 %v422
  %1717 = vmatpush1.msra.mxu0 %v421
  %1718 = vmatprep.subr.mxu0 0.0
  %1719 = vmatpush1.msra.mxu0 0.0
  %1720 = vmatprep.subr.mxu0 0.0
  %1721 = vmatpush1.msra.mxu0 0.0
  %1722 = vmatprep.subr.mxu0 0.0
  %1723 = vmatpush1.msra.mxu0 0.0
  %1724 = vmatprep.subr.mxu0 0.0
  %1725 = vmatpush1.msra.mxu0 0.0
  %1726 = vmatprep.subr.mxu0 0.0
  %1727 = vmatpush1.msra.mxu0 0.0
  %1728 = vmatprep.subr.mxu0 0.0
  %1729 = vmatpush1.msra.mxu0 0.0
  %1730 = vmatprep.subr.mxu0 0.0
  %1731 = vmatpush1.msra.mxu0 0.0
  %1732 = vmatprep.subr.mxu0 0.0
  %1733 = vmatpush1.msra.mxu0 0.0
  %1734 = vmatprep.subr.mxu0 0.0
  %1735 = vmatpush1.msra.mxu0 0.0
  %1736 = vmatprep.subr.mxu0 0.0
  %1737 = vmatpush1.msra.mxu0 0.0
  %1738 = vmatprep.subr.mxu0 0.0
  %1739 = vmatpush1.msra.mxu0 0.0
  %1740 = vmatprep.subr.mxu0 0.0
  %1741 = vmatpush1.msra.mxu0 0.0
  %1742 = vmatprep.subr.mxu0 0.0
  %1743 = vmatpush1.msra.mxu0 0.0
  %1744 = vmatprep.subr.mxu0 0.0
  %1745 = vmatpush1.msra.mxu0 0.0
  %1746 = vmatprep.subr.mxu0 0.0
  %1747 = vmatpush1.msra.mxu0 0.0
  %1748 = vmatprep.subr.mxu0 0.0
  %1749 = vmatpush1.msra.mxu0 0.0
  %1750 = vmatprep.mubr.f32.mxu0 0.0
  %1751 = vmatmul.mubr.f32.gmra.mrb[0].mxu0 %v1676
  %v1752 = vpop.f32.mrb[0].mxu0
  %v1753 = vadd.f32 0.0, %v1752
  %v1754 = vpop.f32.mrb[0].mxu0
  %v1755 = vadd.f32 0.0, %v1754
  %1756 = vdwg.mxu0
  %1757 = vmatprep.subr.mxu0 %v364
  %1758 = vmatpush1.msra.mxu0 %v363
  %1759 = vmatprep.subr.mxu0 %v368
  %1760 = vmatpush1.msra.mxu0 %v367
  %1761 = vmatprep.subr.mxu0 %v372
  %1762 = vmatpush1.msra.mxu0 %v371
  %1763 = vmatprep.subr.mxu0 %v376
  %1764 = vmatpush1.msra.mxu0 %v375
  %1765 = vmatprep.subr.mxu0 %v380
  %1766 = vmatpush1.msra.mxu0 %v379
  %1767 = vmatprep.subr.mxu0 %v384
  %1768 = vmatpush1.msra.mxu0 %v383
  %1769 = vmatprep.subr.mxu0 %v388
  %1770 = vmatpush1.msra.mxu0 %v387
  %1771 = vmatprep.subr.mxu0 %v392
  %1772 = vmatpush1.msra.mxu0 %v391
  %1773 = vmatprep.subr.mxu0 %v396
  %1774 = vmatpush1.msra.mxu0 %v395
  %1775 = vmatprep.subr.mxu0 %v400
  %1776 = vmatpush1.msra.mxu0 %v399
  %1777 = vmatprep.subr.mxu0 %v404
  %1778 = vmatpush1.msra.mxu0 %v403
  %1779 = vmatprep.subr.mxu0 %v408
  %1780 = vmatpush1.msra.mxu0 %v407
  %1781 = vmatprep.subr.mxu0 %v412
  %1782 = vmatpush1.msra.mxu0 %v411
  %1783 = vmatprep.subr.mxu0 %v416
  %1784 = vmatpush1.msra.mxu0 %v415
  %1785 = vmatprep.subr.mxu0 %v420
  %1786 = vmatpush1.msra.mxu0 %v419
  %1787 = vmatprep.subr.mxu0 %v424
  %1788 = vmatpush1.msra.mxu0 %v423
  %1789 = vmatprep.subr.mxu0 0.0
  %1790 = vmatpush1.msra.mxu0 0.0
  %1791 = vmatprep.subr.mxu0 0.0
  %1792 = vmatpush1.msra.mxu0 0.0
  %1793 = vmatprep.subr.mxu0 0.0
  %1794 = vmatpush1.msra.mxu0 0.0
  %1795 = vmatprep.subr.mxu0 0.0
  %1796 = vmatpush1.msra.mxu0 0.0
  %1797 = vmatprep.subr.mxu0 0.0
  %1798 = vmatpush1.msra.mxu0 0.0
  %1799 = vmatprep.subr.mxu0 0.0
  %1800 = vmatpush1.msra.mxu0 0.0
  %1801 = vmatprep.subr.mxu0 0.0
  %1802 = vmatpush1.msra.mxu0 0.0
  %1803 = vmatprep.subr.mxu0 0.0
  %1804 = vmatpush1.msra.mxu0 0.0
  %1805 = vmatprep.subr.mxu0 0.0
  %1806 = vmatpush1.msra.mxu0 0.0
  %1807 = vmatprep.subr.mxu0 0.0
  %1808 = vmatpush1.msra.mxu0 0.0
  %1809 = vmatprep.subr.mxu0 0.0
  %1810 = vmatpush1.msra.mxu0 0.0
  %1811 = vmatprep.subr.mxu0 0.0
  %1812 = vmatpush1.msra.mxu0 0.0
  %1813 = vmatprep.subr.mxu0 0.0
  %1814 = vmatpush1.msra.mxu0 0.0
  %1815 = vmatprep.subr.mxu0 0.0
  %1816 = vmatpush1.msra.mxu0 0.0
  %1817 = vmatprep.subr.mxu0 0.0
  %1818 = vmatpush1.msra.mxu0 0.0
  %1819 = vmatprep.subr.mxu0 0.0
  %1820 = vmatpush1.msra.mxu0 0.0
  %1821 = vmatprep.mubr.f32.mxu0 0.0
  %1822 = vmatmul.mubr.f32.gmra.mrb[0].mxu0 %v1676
  %v1823 = vpop.f32.mrb[0].mxu0
  %v1824 = vadd.f32 0.0, %v1823
  %v1825 = vpop.f32.mrb[0].mxu0
  %v1826 = vadd.f32 0.0, %v1825
  %1827 = vdwg.mxu0
  %v1828 = vadd.f32 %v1682, %v1753
  %v1829 = vadd.f32 %v1683, %v1755
  %v1830 = vadd.f32 %v1684, %v1824
  %v1831 = vadd.f32 %v1685, %v1826
  %v1832 = vxor.u32 %v1828, 2147483648
  %v1833 = vxor.u32 %v1829, 2147483648
  %v1834 = vxor.u32 %v1830, 2147483648
  %v1835 = vmul.f32 %v1832, 1.442695
  %v1836 = vpow.pop %v1835
  %v1837 = vmul.f32 %v1833, 1.442695
  %v1838 = vpow.pop %v1837
  %v1839 = vmul.f32 %v1834, 1.442695
  %v1840 = vpow.pop %v1839
  %v1841 = vadd.f32 %v1836, 1.0
  %v1842 = vadd.f32 %v1838, 1.0
  %v1843 = vadd.f32 %v1840, 1.0
  %v1844 = vrcp.pop %v1841
  %v1845 = vmul.f32 1.0, %v1844
  %v1846 = vrcp.pop %v1842
  %v1847 = vmul.f32 1.0, %v1846
  %v1848 = vrcp.pop %v1843
  %v1849 = vmul.f32 1.0, %v1848
  %v1850 = vtanh.pop %v1831
  %v1851 = vmul.f32 %v1847, %v1674
  %v1852 = vmul.f32 %v1845, %v1850
  %v1853 = vadd.f32 %v1851, %v1852
  %v1854 = vtanh.pop %v1853
  %v1855 = vmul.f32 %v1849, %v1854
  %s1856 = scalar_lea.vmem [#allocation3], 56
  %1857 = vst [vmem:[%s1856] sm:$0xff] %v1855
  %1858 = vst [vmem:[#allocation4] sm:$0xff] %v1855
  %1859 = vst [vmem:[#allocation5] sm:$0xff] %v1853
  %v1860 = vld [vmem:[#allocation3] sm:$0xff]
  %v1861 = vld [vmem:[#allocation3 + $0x8] sm:$0xff]
  %v1862 = vld [vmem:[#allocation3 + $0x10] sm:$0xff]
  %v1863 = vld [vmem:[#allocation3 + $0x18] sm:$0xff]
  %v1864 = vld [vmem:[#allocation3 + $0x20] sm:$0xff]
  %v1865 = vld [vmem:[#allocation3 + $0x28] sm:$0xff]
  %v1866 = vld [vmem:[#allocation3 + $0x30] sm:$0xff]
  %v1867 = vld [vmem:[#allocation3 + $0x38] sm:$0xff]
  %v1868 = vld [vmem:[%s4] sm:$0xff]
  %v1869 = vld [vmem:[%s4 + $0x8] sm:$0xff]
  %v1870 = vld [vmem:[%s4 + $0x10] sm:$0xff]
  %v1871 = vld [vmem:[%s4 + $0x18] sm:$0xff]
  %v1872 = vld [vmem:[%s4 + $0x20] sm:$0xff]
  %v1873 = vld [vmem:[%s4 + $0x28] sm:$0xff]
  %v1874 = vld [vmem:[%s4 + $0x30] sm:$0xff]
  %v1875 = vld [vmem:[%s4 + $0x38] sm:$0xff]
  %v1876 = vld [vmem:[%s4 + $0x40] sm:$0xff]
  %v1877 = vld [vmem:[%s4 + $0x48] sm:$0xff]
  %v1878 = vld [vmem:[%s4 + $0x50] sm:$0xff]
  %v1879 = vld [vmem:[%s4 + $0x58] sm:$0xff]
  %v1880 = vld [vmem:[%s4 + $0x60] sm:$0xff]
  %v1881 = vld [vmem:[%s4 + $0x68] sm:$0xff]
  %v1882 = vld [vmem:[%s4 + $0x70] sm:$0xff]
  %v1883 = vld [vmem:[%s4 + $0x78] sm:$0xff]
  %v1884 = vld [vmem:[%s4 + $0x80] sm:$0xff]
  %v1885 = vld [vmem:[%s4 + $0x88] sm:$0xff]
  %v1886 = vld [vmem:[%s4 + $0x90] sm:$0xff]
  %v1887 = vld [vmem:[%s4 + $0x98] sm:$0xff]
  %v1888 = vld [vmem:[%s4 + $0xa0] sm:$0xff]
  %v1889 = vld [vmem:[%s4 + $0xa8] sm:$0xff]
  %v1890 = vld [vmem:[%s4 + $0xb0] sm:$0xff]
  %v1891 = vld [vmem:[%s4 + $0xb8] sm:$0xff]
  %v1892 = vld [vmem:[%s4 + $0xc0] sm:$0xff]
  %v1893 = vld [vmem:[%s4 + $0xc8] sm:$0xff]
  %v1894 = vld [vmem:[%s4 + $0xd0] sm:$0xff]
  %v1895 = vld [vmem:[%s4 + $0xd8] sm:$0xff]
  %v1896 = vld [vmem:[%s4 + $0xe0] sm:$0xff]
  %v1897 = vld [vmem:[%s4 + $0xe8] sm:$0xff]
  %v1898 = vld [vmem:[%s4 + $0xf0] sm:$0xff]
  %v1899 = vld [vmem:[%s4 + $0xf8] sm:$0xff]
  %v1900 = vld [vmem:[%s4 + $0x100] sm:$0xff]
  %v1901 = vld [vmem:[%s4 + $0x108] sm:$0xff]
  %v1902 = vld [vmem:[%s4 + $0x110] sm:$0xff]
  %v1903 = vld [vmem:[%s4 + $0x118] sm:$0xff]
  %v1904 = vld [vmem:[%s4 + $0x120] sm:$0xff]
  %v1905 = vld [vmem:[%s4 + $0x128] sm:$0xff]
  %v1906 = vld [vmem:[%s4 + $0x130] sm:$0xff]
  %v1907 = vld [vmem:[%s4 + $0x138] sm:$0xff]
  %v1908 = vld [vmem:[%s4 + $0x140] sm:$0xff]
  %v1909 = vld [vmem:[%s4 + $0x148] sm:$0xff]
  %v1910 = vld [vmem:[%s4 + $0x150] sm:$0xff]
  %v1911 = vld [vmem:[%s4 + $0x158] sm:$0xff]
  %v1912 = vld [vmem:[%s4 + $0x160] sm:$0xff]
  %v1913 = vld [vmem:[%s4 + $0x168] sm:$0xff]
  %v1914 = vld [vmem:[%s4 + $0x170] sm:$0xff]
  %v1915 = vld [vmem:[%s4 + $0x178] sm:$0xff]
  %v1916 = vld [vmem:[%s4 + $0x180] sm:$0xff]
  %v1917 = vld [vmem:[%s4 + $0x188] sm:$0xff]
  %v1918 = vld [vmem:[%s4 + $0x190] sm:$0xff]
  %v1919 = vld [vmem:[%s4 + $0x198] sm:$0xff]
  %v1920 = vld [vmem:[%s4 + $0x1a0] sm:$0xff]
  %v1921 = vld [vmem:[%s4 + $0x1a8] sm:$0xff]
  %v1922 = vld [vmem:[%s4 + $0x1b0] sm:$0xff]
  %v1923 = vld [vmem:[%s4 + $0x1b8] sm:$0xff]
  %v1924 = vld [vmem:[%s4 + $0x1c0] sm:$0xff]
  %v1925 = vld [vmem:[%s4 + $0x1c8] sm:$0xff]
  %v1926 = vld [vmem:[%s4 + $0x1d0] sm:$0xff]
  %v1927 = vld [vmem:[%s4 + $0x1d8] sm:$0xff]
  %v1928 = vld [vmem:[%s4 + $0x1e0] sm:$0xff]
  %v1929 = vld [vmem:[%s4 + $0x1e8] sm:$0xff]
  %v1930 = vld [vmem:[%s4 + $0x1f0] sm:$0xff]
  %v1931 = vld [vmem:[%s4 + $0x1f8] sm:$0xff]
  %v1932 = vld [vmem:[%s6] sm:$0xf]
  %v1934 = vlaneseq
  %v1935 = vshrl.u32 %v1934, 7
  %v1936 = vsub.s32 0, %v1935
  %v1937 = vrot.slane %v1932, %v1936
  %v1938 = vlaneseq
  %v1939 = vshrl.u32 %v1938, 7
  %v1940 = vsub.s32 1, %v1939
  %v1941 = vrot.slane %v1932, %v1940
  %v1942 = vlaneseq
  %v1943 = vshrl.u32 %v1942, 7
  %v1944 = vsub.s32 2, %v1943
  %v1945 = vrot.slane %v1932, %v1944
  %v1946 = vlaneseq
  %v1947 = vshrl.u32 %v1946, 7
  %v1948 = vsub.s32 3, %v1947
  %v1949 = vrot.slane %v1932, %v1948
  %1954 = vmatprep.subr.mxu0 %v1869
  %1955 = vmatpush1.msra.mxu0 %v1868
  %1956 = vmatprep.subr.mxu0 %v1873
  %1957 = vmatpush1.msra.mxu0 %v1872
  %1958 = vmatprep.subr.mxu0 %v1877
  %1959 = vmatpush1.msra.mxu0 %v1876
  %1960 = vmatprep.subr.mxu0 %v1881
  %1961 = vmatpush1.msra.mxu0 %v1880
  %1962 = vmatprep.subr.mxu0 %v1885
  %1963 = vmatpush1.msra.mxu0 %v1884
  %1964 = vmatprep.subr.mxu0 %v1889
  %1965 = vmatpush1.msra.mxu0 %v1888
  %1966 = vmatprep.subr.mxu0 %v1893
  %1967 = vmatpush1.msra.mxu0 %v1892
  %1968 = vmatprep.subr.mxu0 %v1897
  %1969 = vmatpush1.msra.mxu0 %v1896
  %1970 = vmatprep.subr.mxu0 %v1901
  %1971 = vmatpush1.msra.mxu0 %v1900
  %1972 = vmatprep.subr.mxu0 %v1905
  %1973 = vmatpush1.msra.mxu0 %v1904
  %1974 = vmatprep.subr.mxu0 %v1909
  %1975 = vmatpush1.msra.mxu0 %v1908
  %1976 = vmatprep.subr.mxu0 %v1913
  %1977 = vmatpush1.msra.mxu0 %v1912
  %1978 = vmatprep.subr.mxu0 %v1917
  %1979 = vmatpush1.msra.mxu0 %v1916
  %1980 = vmatprep.subr.mxu0 %v1921
  %1981 = vmatpush1.msra.mxu0 %v1920
  %1982 = vmatprep.subr.mxu0 %v1925
  %1983 = vmatpush1.msra.mxu0 %v1924
  %1984 = vmatprep.subr.mxu0 %v1929
  %1985 = vmatpush1.msra.mxu0 %v1928
  %1986 = vmatprep.subr.mxu0 0.0
  %1987 = vmatpush1.msra.mxu0 0.0
  %1988 = vmatprep.subr.mxu0 0.0
  %1989 = vmatpush1.msra.mxu0 0.0
  %1990 = vmatprep.subr.mxu0 0.0
  %1991 = vmatpush1.msra.mxu0 0.0
  %1992 = vmatprep.subr.mxu0 0.0
  %1993 = vmatpush1.msra.mxu0 0.0
  %1994 = vmatprep.subr.mxu0 0.0
  %1995 = vmatpush1.msra.mxu0 0.0
  %1996 = vmatprep.subr.mxu0 0.0
  %1997 = vmatpush1.msra.mxu0 0.0
  %1998 = vmatprep.subr.mxu0 0.0
  %1999 = vmatpush1.msra.mxu0 0.0
  %2000 = vmatprep.subr.mxu0 0.0
  %2001 = vmatpush1.msra.mxu0 0.0
  %2002 = vmatprep.subr.mxu0 0.0
  %2003 = vmatpush1.msra.mxu0 0.0
  %2004 = vmatprep.subr.mxu0 0.0
  %2005 = vmatpush1.msra.mxu0 0.0
  %2006 = vmatprep.subr.mxu0 0.0
  %2007 = vmatpush1.msra.mxu0 0.0
  %2008 = vmatprep.subr.mxu0 0.0
  %2009 = vmatpush1.msra.mxu0 0.0
  %2010 = vmatprep.subr.mxu0 0.0
  %2011 = vmatpush1.msra.mxu0 0.0
  %2012 = vmatprep.subr.mxu0 0.0
  %2013 = vmatpush1.msra.mxu0 0.0
  %2014 = vmatprep.subr.mxu0 0.0
  %2015 = vmatpush1.msra.mxu0 0.0
  %2016 = vmatprep.subr.mxu0 0.0
  %2017 = vmatpush1.msra.mxu0 0.0
  %2018 = vmatprep.mubr.f32.mxu0 0.0
  %2019 = vmatmul.mubr.f32.gmra.mrb[0].mxu0 %v1860
  %v2020 = vpop.f32.mrb[0].mxu0
  %v2021 = vadd.f32 %v1937, %v2020
  %v2022 = vpop.f32.mrb[0].mxu0
  %v2023 = vadd.f32 %v1941, %v2022
  %2024 = vmatprep.mubr.f32.mxu0 0.0
  %2025 = vmatmul.mubr.f32.gmra.mrb[0].mxu0 %v1861
  %v2026 = vpop.f32.mrb[0].mxu0
  %v2027 = vadd.f32 %v1937, %v2026
  %v2028 = vpop.f32.mrb[0].mxu0
  %v2029 = vadd.f32 %v1941, %v2028
  %2030 = vmatprep.mubr.f32.mxu0 0.0
  %2031 = vmatmul.mubr.f32.gmra.mrb[0].mxu0 %v1862
  %v2032 = vpop.f32.mrb[0].mxu0
  %v2033 = vadd.f32 %v1937, %v2032
  %v2034 = vpop.f32.mrb[0].mxu0
  %v2035 = vadd.f32 %v1941, %v2034
  %2036 = vmatprep.mubr.f32.mxu0 0.0
  %2037 = vmatmul.mubr.f32.gmra.mrb[0].mxu0 %v1863
  %v2038 = vpop.f32.mrb[0].mxu0
  %v2039 = vadd.f32 %v1937, %v2038
  %v2040 = vpop.f32.mrb[0].mxu0
  %v2041 = vadd.f32 %v1941, %v2040
  %2042 = vmatprep.mubr.f32.mxu0 0.0
  %2043 = vmatmul.mubr.f32.gmra.mrb[0].mxu0 %v1864
  %v2044 = vpop.f32.mrb[0].mxu0
  %v2045 = vadd.f32 %v1937, %v2044
  %v2046 = vpop.f32.mrb[0].mxu0
  %v2047 = vadd.f32 %v1941, %v2046
  %2048 = vmatprep.mubr.f32.mxu0 0.0
  %2049 = vmatmul.mubr.f32.gmra.mrb[0].mxu0 %v1865
  %v2050 = vpop.f32.mrb[0].mxu0
  %v2051 = vadd.f32 %v1937, %v2050
  %v2052 = vpop.f32.mrb[0].mxu0
  %v2053 = vadd.f32 %v1941, %v2052
  %2054 = vmatprep.mubr.f32.mxu0 0.0
  %2055 = vmatmul.mubr.f32.gmra.mrb[0].mxu0 %v1866
  %v2056 = vpop.f32.mrb[0].mxu0
  %v2057 = vadd.f32 %v1937, %v2056
  %v2058 = vpop.f32.mrb[0].mxu0
  %v2059 = vadd.f32 %v1941, %v2058
  %2060 = vmatprep.mubr.f32.mxu0 0.0
  %2061 = vmatmul.mubr.f32.gmra.mrb[0].mxu0 %v1867
  %v2062 = vpop.f32.mrb[0].mxu0
  %v2063 = vadd.f32 %v1937, %v2062
  %v2064 = vpop.f32.mrb[0].mxu0
  %v2065 = vadd.f32 %v1941, %v2064
  %2066 = vdwg.mxu0
  %2067 = vmatprep.subr.mxu0 %v1871
  %2068 = vmatpush1.msra.mxu0 %v1870
  %2069 = vmatprep.subr.mxu0 %v1875
  %2070 = vmatpush1.msra.mxu0 %v1874
  %2071 = vmatprep.subr.mxu0 %v1879
  %2072 = vmatpush1.msra.mxu0 %v1878
  %2073 = vmatprep.subr.mxu0 %v1883
  %2074 = vmatpush1.msra.mxu0 %v1882
  %2075 = vmatprep.subr.mxu0 %v1887
  %2076 = vmatpush1.msra.mxu0 %v1886
  %2077 = vmatprep.subr.mxu0 %v1891
  %2078 = vmatpush1.msra.mxu0 %v1890
  %2079 = vmatprep.subr.mxu0 %v1895
  %2080 = vmatpush1.msra.mxu0 %v1894
  %2081 = vmatprep.subr.mxu0 %v1899
  %2082 = vmatpush1.msra.mxu0 %v1898
  %2083 = vmatprep.subr.mxu0 %v1903
  %2084 = vmatpush1.msra.mxu0 %v1902
  %2085 = vmatprep.subr.mxu0 %v1907
  %2086 = vmatpush1.msra.mxu0 %v1906
  %2087 = vmatprep.subr.mxu0 %v1911
  %2088 = vmatpush1.msra.mxu0 %v1910
  %2089 = vmatprep.subr.mxu0 %v1915
  %2090 = vmatpush1.msra.mxu0 %v1914
  %2091 = vmatprep.subr.mxu0 %v1919
  %2092 = vmatpush1.msra.mxu0 %v1918
  %2093 = vmatprep.subr.mxu0 %v1923
  %2094 = vmatpush1.msra.mxu0 %v1922
  %2095 = vmatprep.subr.mxu0 %v1927
  %2096 = vmatpush1.msra.mxu0 %v1926
  %2097 = vmatprep.subr.mxu0 %v1931
  %2098 = vmatpush1.msra.mxu0 %v1930
  %2099 = vmatprep.subr.mxu0 0.0
  %2100 = vmatpush1.msra.mxu0 0.0
  %2101 = vmatprep.subr.mxu0 0.0
  %2102 = vmatpush1.msra.mxu0 0.0
  %2103 = vmatprep.subr.mxu0 0.0
  %2104 = vmatpush1.msra.mxu0 0.0
  %2105 = vmatprep.subr.mxu0 0.0
  %2106 = vmatpush1.msra.mxu0 0.0
  %2107 = vmatprep.subr.mxu0 0.0
  %2108 = vmatpush1.msra.mxu0 0.0
  %2109 = vmatprep.subr.mxu0 0.0
  %2110 = vmatpush1.msra.mxu0 0.0
  %2111 = vmatprep.subr.mxu0 0.0
  %2112 = vmatpush1.msra.mxu0 0.0
  %2113 = vmatprep.subr.mxu0 0.0
  %2114 = vmatpush1.msra.mxu0 0.0
  %2115 = vmatprep.subr.mxu0 0.0
  %2116 = vmatpush1.msra.mxu0 0.0
  %2117 = vmatprep.subr.mxu0 0.0
  %2118 = vmatpush1.msra.mxu0 0.0
  %2119 = vmatprep.subr.mxu0 0.0
  %2120 = vmatpush1.msra.mxu0 0.0
  %2121 = vmatprep.subr.mxu0 0.0
  %2122 = vmatpush1.msra.mxu0 0.0
  %2123 = vmatprep.subr.mxu0 0.0
  %2124 = vmatpush1.msra.mxu0 0.0
  %2125 = vmatprep.subr.mxu0 0.0
  %2126 = vmatpush1.msra.mxu0 0.0
  %2127 = vmatprep.subr.mxu0 0.0
  %2128 = vmatpush1.msra.mxu0 0.0
  %2129 = vmatprep.subr.mxu0 0.0
  %2130 = vmatpush1.msra.mxu0 0.0
  %2131 = vmatprep.mubr.f32.mxu0 0.0
  %2132 = vmatmul.mubr.f32.gmra.mrb[0].mxu0 %v1860
  %v2133 = vpop.f32.mrb[0].mxu0
  %v2134 = vadd.f32 %v1945, %v2133
  %v2135 = vpop.f32.mrb[0].mxu0
  %v2136 = vadd.f32 %v1949, %v2135
  %2137 = vmatprep.mubr.f32.mxu0 0.0
  %2138 = vmatmul.mubr.f32.gmra.mrb[0].mxu0 %v1861
  %v2139 = vpop.f32.mrb[0].mxu0
  %v2140 = vadd.f32 %v1945, %v2139
  %v2141 = vpop.f32.mrb[0].mxu0
  %v2142 = vadd.f32 %v1949, %v2141
  %2143 = vmatprep.mubr.f32.mxu0 0.0
  %2144 = vmatmul.mubr.f32.gmra.mrb[0].mxu0 %v1862
  %v2145 = vpop.f32.mrb[0].mxu0
  %v2146 = vadd.f32 %v1945, %v2145
  %v2147 = vpop.f32.mrb[0].mxu0
  %v2148 = vadd.f32 %v1949, %v2147
  %2149 = vmatprep.mubr.f32.mxu0 0.0
  %2150 = vmatmul.mubr.f32.gmra.mrb[0].mxu0 %v1863
  %v2151 = vpop.f32.mrb[0].mxu0
  %v2152 = vadd.f32 %v1945, %v2151
  %v2153 = vpop.f32.mrb[0].mxu0
  %v2154 = vadd.f32 %v1949, %v2153
  %2155 = vmatprep.mubr.f32.mxu0 0.0
  %2156 = vmatmul.mubr.f32.gmra.mrb[0].mxu0 %v1864
  %v2157 = vpop.f32.mrb[0].mxu0
  %v2158 = vadd.f32 %v1945, %v2157
  %v2159 = vpop.f32.mrb[0].mxu0
  %v2160 = vadd.f32 %v1949, %v2159
  %2161 = vmatprep.mubr.f32.mxu0 0.0
  %2162 = vmatmul.mubr.f32.gmra.mrb[0].mxu0 %v1865
  %v2163 = vpop.f32.mrb[0].mxu0
  %v2164 = vadd.f32 %v1945, %v2163
  %v2165 = vpop.f32.mrb[0].mxu0
  %v2166 = vadd.f32 %v1949, %v2165
  %2167 = vmatprep.mubr.f32.mxu0 0.0
  %2168 = vmatmul.mubr.f32.gmra.mrb[0].mxu0 %v1866
  %v2169 = vpop.f32.mrb[0].mxu0
  %v2170 = vadd.f32 %v1945, %v2169
  %v2171 = vpop.f32.mrb[0].mxu0
  %v2172 = vadd.f32 %v1949, %v2171
  %2173 = vmatprep.mubr.f32.mxu0 0.0
  %2174 = vmatmul.mubr.f32.gmra.mrb[0].mxu0 %v1867
  %v2175 = vpop.f32.mrb[0].mxu0
  %v2176 = vadd.f32 %v1945, %v2175
  %v2177 = vpop.f32.mrb[0].mxu0
  %v2178 = vadd.f32 %v1949, %v2177
  %2179 = vdwg.mxu0
  %2180 = vst [vmem:[#allocation2] sm:$0xff] %v2021
  %2181 = vst [vmem:[#allocation2 + $0x8] sm:$0xff] %v2023
  %2182 = vst [vmem:[#allocation2 + $0x10] sm:$0xff] %v2134
  %2183 = vst [vmem:[#allocation2 + $0x18] sm:$0xff] %v2136
  %2184 = vst [vmem:[#allocation2 + $0x20] sm:$0xff] %v2027
  %2185 = vst [vmem:[#allocation2 + $0x28] sm:$0xff] %v2029
  %2186 = vst [vmem:[#allocation2 + $0x30] sm:$0xff] %v2140
  %2187 = vst [vmem:[#allocation2 + $0x38] sm:$0xff] %v2142
  %2188 = vst [vmem:[#allocation2 + $0x40] sm:$0xff] %v2033
  %2189 = vst [vmem:[#allocation2 + $0x48] sm:$0xff] %v2035
  %2190 = vst [vmem:[#allocation2 + $0x50] sm:$0xff] %v2146
  %2191 = vst [vmem:[#allocation2 + $0x58] sm:$0xff] %v2148
  %2192 = vst [vmem:[#allocation2 + $0x60] sm:$0xff] %v2039
  %2193 = vst [vmem:[#allocation2 + $0x68] sm:$0xff] %v2041
  %2194 = vst [vmem:[#allocation2 + $0x70] sm:$0xff] %v2152
  %2195 = vst [vmem:[#allocation2 + $0x78] sm:$0xff] %v2154
  %2196 = vst [vmem:[#allocation2 + $0x80] sm:$0xff] %v2045
  %2197 = vst [vmem:[#allocation2 + $0x88] sm:$0xff] %v2047
  %2198 = vst [vmem:[#allocation2 + $0x90] sm:$0xff] %v2158
  %2199 = vst [vmem:[#allocation2 + $0x98] sm:$0xff] %v2160
  %2200 = vst [vmem:[#allocation2 + $0xa0] sm:$0xff] %v2051
  %2201 = vst [vmem:[#allocation2 + $0xa8] sm:$0xff] %v2053
  %2202 = vst [vmem:[#allocation2 + $0xb0] sm:$0xff] %v2164
  %2203 = vst [vmem:[#allocation2 + $0xb8] sm:$0xff] %v2166
  %2204 = vst [vmem:[#allocation2 + $0xc0] sm:$0xff] %v2057
  %2205 = vst [vmem:[#allocation2 + $0xc8] sm:$0xff] %v2059
  %2206 = vst [vmem:[#allocation2 + $0xd0] sm:$0xff] %v2170
  %2207 = vst [vmem:[#allocation2 + $0xd8] sm:$0xff] %v2172
  %2208 = vst [vmem:[#allocation2 + $0xe0] sm:$0xff] %v2063
  %2209 = vst [vmem:[#allocation2 + $0xe8] sm:$0xff] %v2065
  %2210 = vst [vmem:[#allocation2 + $0xf0] sm:$0xff] %v2176
  %2211 = vst [vmem:[#allocation2 + $0xf8] sm:$0xff] %v2178
  %v2212 = vld [vmem:[%s5] sm:$0xff]
  %v2213 = vld [vmem:[%s5 + $0x8] sm:$0xff]
  %v2214 = vld [vmem:[%s5 + $0x10] sm:$0xff]
  %v2215 = vld [vmem:[%s5 + $0x18] sm:$0xff]
  %v2216 = vld [vmem:[%s5 + $0x20] sm:$0xff]
  %v2217 = vld [vmem:[%s5 + $0x28] sm:$0xff]
  %v2218 = vld [vmem:[%s5 + $0x30] sm:$0xff]
  %v2219 = vld [vmem:[%s5 + $0x38] sm:$0xff]
  %v2220 = vld [vmem:[%s5 + $0x40] sm:$0xff]
  %v2221 = vld [vmem:[%s5 + $0x48] sm:$0xff]
  %v2222 = vld [vmem:[%s5 + $0x50] sm:$0xff]
  %v2223 = vld [vmem:[%s5 + $0x58] sm:$0xff]
  %v2224 = vld [vmem:[%s5 + $0x60] sm:$0xff]
  %v2225 = vld [vmem:[%s5 + $0x68] sm:$0xff]
  %v2226 = vld [vmem:[%s5 + $0x70] sm:$0xff]
  %v2227 = vld [vmem:[%s5 + $0x78] sm:$0xff]
  %v2228 = vld [vmem:[%s5 + $0x80] sm:$0xff]
  %v2229 = vld [vmem:[%s5 + $0x88] sm:$0xff]
  %v2230 = vld [vmem:[%s5 + $0x90] sm:$0xff]
  %v2231 = vld [vmem:[%s5 + $0x98] sm:$0xff]
  %v2232 = vld [vmem:[%s5 + $0xa0] sm:$0xff]
  %v2233 = vld [vmem:[%s5 + $0xa8] sm:$0xff]
  %v2234 = vld [vmem:[%s5 + $0xb0] sm:$0xff]
  %v2235 = vld [vmem:[%s5 + $0xb8] sm:$0xff]
  %v2236 = vld [vmem:[%s5 + $0xc0] sm:$0xff]
  %v2237 = vld [vmem:[%s5 + $0xc8] sm:$0xff]
  %v2238 = vld [vmem:[%s5 + $0xd0] sm:$0xff]
  %v2239 = vld [vmem:[%s5 + $0xd8] sm:$0xff]
  %v2240 = vld [vmem:[%s5 + $0xe0] sm:$0xff]
  %v2241 = vld [vmem:[%s5 + $0xe8] sm:$0xff]
  %v2242 = vld [vmem:[%s5 + $0xf0] sm:$0xff]
  %v2243 = vld [vmem:[%s5 + $0xf8] sm:$0xff]
  %v2244 = vld [vmem:[%s5 + $0x100] sm:$0xff]
  %v2245 = vld [vmem:[%s5 + $0x108] sm:$0xff]
  %v2246 = vld [vmem:[%s5 + $0x110] sm:$0xff]
  %v2247 = vld [vmem:[%s5 + $0x118] sm:$0xff]
  %v2248 = vld [vmem:[%s5 + $0x120] sm:$0xff]
  %v2249 = vld [vmem:[%s5 + $0x128] sm:$0xff]
  %v2250 = vld [vmem:[%s5 + $0x130] sm:$0xff]
  %v2251 = vld [vmem:[%s5 + $0x138] sm:$0xff]
  %v2252 = vld [vmem:[%s5 + $0x140] sm:$0xff]
  %v2253 = vld [vmem:[%s5 + $0x148] sm:$0xff]
  %v2254 = vld [vmem:[%s5 + $0x150] sm:$0xff]
  %v2255 = vld [vmem:[%s5 + $0x158] sm:$0xff]
  %v2256 = vld [vmem:[%s5 + $0x160] sm:$0xff]
  %v2257 = vld [vmem:[%s5 + $0x168] sm:$0xff]
  %v2258 = vld [vmem:[%s5 + $0x170] sm:$0xff]
  %v2259 = vld [vmem:[%s5 + $0x178] sm:$0xff]
  %v2260 = vld [vmem:[%s5 + $0x180] sm:$0xff]
  %v2261 = vld [vmem:[%s5 + $0x188] sm:$0xff]
  %v2262 = vld [vmem:[%s5 + $0x190] sm:$0xff]
  %v2263 = vld [vmem:[%s5 + $0x198] sm:$0xff]
  %v2264 = vld [vmem:[%s5 + $0x1a0] sm:$0xff]
  %v2265 = vld [vmem:[%s5 + $0x1a8] sm:$0xff]
  %v2266 = vld [vmem:[%s5 + $0x1b0] sm:$0xff]
  %v2267 = vld [vmem:[%s5 + $0x1b8] sm:$0xff]
  %v2268 = vld [vmem:[%s5 + $0x1c0] sm:$0xff]
  %v2269 = vld [vmem:[%s5 + $0x1c8] sm:$0xff]
  %v2270 = vld [vmem:[%s5 + $0x1d0] sm:$0xff]
  %v2271 = vld [vmem:[%s5 + $0x1d8] sm:$0xff]
  %v2272 = vld [vmem:[%s5 + $0x1e0] sm:$0xff]
  %v2273 = vld [vmem:[%s5 + $0x1e8] sm:$0xff]
  %v2274 = vld [vmem:[%s5 + $0x1f0] sm:$0xff]
  %v2275 = vld [vmem:[%s5 + $0x1f8] sm:$0xff]
  %v2276 = vld [vmem:[#allocation6] sm:$0xff]
  %v2277 = vld [vmem:[#allocation7] sm:$0xff]
  %v2278 = vld [vmem:[%s429] sm:$0xff]
  %v2279 = vld [vmem:[%s429 + $0x8] sm:$0xff]
  %v2280 = vld [vmem:[%s429 + $0x10] sm:$0xff]
  %v2281 = vld [vmem:[%s429 + $0x18] sm:$0xff]
  %2282 = vmatprep.subr.mxu0 %v2213
  %2283 = vmatpush1.msra.mxu0 %v2212
  %2284 = vmatprep.subr.mxu0 %v2217
  %2285 = vmatpush1.msra.mxu0 %v2216
  %2286 = vmatprep.subr.mxu0 %v2221
  %2287 = vmatpush1.msra.mxu0 %v2220
  %2288 = vmatprep.subr.mxu0 %v2225
  %2289 = vmatpush1.msra.mxu0 %v2224
  %2290 = vmatprep.subr.mxu0 %v2229
  %2291 = vmatpush1.msra.mxu0 %v2228
  %2292 = vmatprep.subr.mxu0 %v2233
  %2293 = vmatpush1.msra.mxu0 %v2232
  %2294 = vmatprep.subr.mxu0 %v2237
  %2295 = vmatpush1.msra.mxu0 %v2236
  %2296 = vmatprep.subr.mxu0 %v2241
  %2297 = vmatpush1.msra.mxu0 %v2240
  %2298 = vmatprep.subr.mxu0 %v2245
  %2299 = vmatpush1.msra.mxu0 %v2244
  %2300 = vmatprep.subr.mxu0 %v2249
  %2301 = vmatpush1.msra.mxu0 %v2248
  %2302 = vmatprep.subr.mxu0 %v2253
  %2303 = vmatpush1.msra.mxu0 %v2252
  %2304 = vmatprep.subr.mxu0 %v2257
  %2305 = vmatpush1.msra.mxu0 %v2256
  %2306 = vmatprep.subr.mxu0 %v2261
  %2307 = vmatpush1.msra.mxu0 %v2260
  %2308 = vmatprep.subr.mxu0 %v2265
  %2309 = vmatpush1.msra.mxu0 %v2264
  %2310 = vmatprep.subr.mxu0 %v2269
  %2311 = vmatpush1.msra.mxu0 %v2268
  %2312 = vmatprep.subr.mxu0 %v2273
  %2313 = vmatpush1.msra.mxu0 %v2272
  %2314 = vmatprep.subr.mxu0 0.0
  %2315 = vmatpush1.msra.mxu0 0.0
  %2316 = vmatprep.subr.mxu0 0.0
  %2317 = vmatpush1.msra.mxu0 0.0
  %2318 = vmatprep.subr.mxu0 0.0
  %2319 = vmatpush1.msra.mxu0 0.0
  %2320 = vmatprep.subr.mxu0 0.0
  %2321 = vmatpush1.msra.mxu0 0.0
  %2322 = vmatprep.subr.mxu0 0.0
  %2323 = vmatpush1.msra.mxu0 0.0
  %2324 = vmatprep.subr.mxu0 0.0
  %2325 = vmatpush1.msra.mxu0 0.0
  %2326 = vmatprep.subr.mxu0 0.0
  %2327 = vmatpush1.msra.mxu0 0.0
  %2328 = vmatprep.subr.mxu0 0.0
  %2329 = vmatpush1.msra.mxu0 0.0
  %2330 = vmatprep.subr.mxu0 0.0
  %2331 = vmatpush1.msra.mxu0 0.0
  %2332 = vmatprep.subr.mxu0 0.0
  %2333 = vmatpush1.msra.mxu0 0.0
  %2334 = vmatprep.subr.mxu0 0.0
  %2335 = vmatpush1.msra.mxu0 0.0
  %2336 = vmatprep.subr.mxu0 0.0
  %2337 = vmatpush1.msra.mxu0 0.0
  %2338 = vmatprep.subr.mxu0 0.0
  %2339 = vmatpush1.msra.mxu0 0.0
  %2340 = vmatprep.subr.mxu0 0.0
  %2341 = vmatpush1.msra.mxu0 0.0
  %2342 = vmatprep.subr.mxu0 0.0
  %2343 = vmatpush1.msra.mxu0 0.0
  %2344 = vmatprep.subr.mxu0 0.0
  %2345 = vmatpush1.msra.mxu0 0.0
  %2346 = vmatprep.mubr.f32.mxu0 0.0
  %2347 = vmatmul.mubr.f32.gmra.mrb[0].mxu0 %v2276
  %v2348 = vpop.f32.mrb[0].mxu0
  %v2349 = vadd.f32 0.0, %v2348
  %v2350 = vpop.f32.mrb[0].mxu0
  %v2351 = vadd.f32 0.0, %v2350
  %2352 = vdwg.mxu0
  %2353 = vmatprep.subr.mxu0 %v2215
  %2354 = vmatpush1.msra.mxu0 %v2214
  %2355 = vmatprep.subr.mxu0 %v2219
  %2356 = vmatpush1.msra.mxu0 %v2218
  %2357 = vmatprep.subr.mxu0 %v2223
  %2358 = vmatpush1.msra.mxu0 %v2222
  %2359 = vmatprep.subr.mxu0 %v2227
  %2360 = vmatpush1.msra.mxu0 %v2226
  %2361 = vmatprep.subr.mxu0 %v2231
  %2362 = vmatpush1.msra.mxu0 %v2230
  %2363 = vmatprep.subr.mxu0 %v2235
  %2364 = vmatpush1.msra.mxu0 %v2234
  %2365 = vmatprep.subr.mxu0 %v2239
  %2366 = vmatpush1.msra.mxu0 %v2238
  %2367 = vmatprep.subr.mxu0 %v2243
  %2368 = vmatpush1.msra.mxu0 %v2242
  %2369 = vmatprep.subr.mxu0 %v2247
  %2370 = vmatpush1.msra.mxu0 %v2246
  %2371 = vmatprep.subr.mxu0 %v2251
  %2372 = vmatpush1.msra.mxu0 %v2250
  %2373 = vmatprep.subr.mxu0 %v2255
  %2374 = vmatpush1.msra.mxu0 %v2254
  %2375 = vmatprep.subr.mxu0 %v2259
  %2376 = vmatpush1.msra.mxu0 %v2258
  %2377 = vmatprep.subr.mxu0 %v2263
  %2378 = vmatpush1.msra.mxu0 %v2262
  %2379 = vmatprep.subr.mxu0 %v2267
  %2380 = vmatpush1.msra.mxu0 %v2266
  %2381 = vmatprep.subr.mxu0 %v2271
  %2382 = vmatpush1.msra.mxu0 %v2270
  %2383 = vmatprep.subr.mxu0 %v2275
  %2384 = vmatpush1.msra.mxu0 %v2274
  %2385 = vmatprep.subr.mxu0 0.0
  %2386 = vmatpush1.msra.mxu0 0.0
  %2387 = vmatprep.subr.mxu0 0.0
  %2388 = vmatpush1.msra.mxu0 0.0
  %2389 = vmatprep.subr.mxu0 0.0
  %2390 = vmatpush1.msra.mxu0 0.0
  %2391 = vmatprep.subr.mxu0 0.0
  %2392 = vmatpush1.msra.mxu0 0.0
  %2393 = vmatprep.subr.mxu0 0.0
  %2394 = vmatpush1.msra.mxu0 0.0
  %2395 = vmatprep.subr.mxu0 0.0
  %2396 = vmatpush1.msra.mxu0 0.0
  %2397 = vmatprep.subr.mxu0 0.0
  %2398 = vmatpush1.msra.mxu0 0.0
  %2399 = vmatprep.subr.mxu0 0.0
  %2400 = vmatpush1.msra.mxu0 0.0
  %2401 = vmatprep.subr.mxu0 0.0
  %2402 = vmatpush1.msra.mxu0 0.0
  %2403 = vmatprep.subr.mxu0 0.0
  %2404 = vmatpush1.msra.mxu0 0.0
  %2405 = vmatprep.subr.mxu0 0.0
  %2406 = vmatpush1.msra.mxu0 0.0
  %2407 = vmatprep.subr.mxu0 0.0
  %2408 = vmatpush1.msra.mxu0 0.0
  %2409 = vmatprep.subr.mxu0 0.0
  %2410 = vmatpush1.msra.mxu0 0.0
  %2411 = vmatprep.subr.mxu0 0.0
  %2412 = vmatpush1.msra.mxu0 0.0
  %2413 = vmatprep.subr.mxu0 0.0
  %2414 = vmatpush1.msra.mxu0 0.0
  %2415 = vmatprep.subr.mxu0 0.0
  %2416 = vmatpush1.msra.mxu0 0.0
  %2417 = vmatprep.mubr.f32.mxu0 0.0
  %2418 = vmatmul.mubr.f32.gmra.mrb[0].mxu0 %v2276
  %v2419 = vpop.f32.mrb[0].mxu0
  %v2420 = vadd.f32 0.0, %v2419
  %v2421 = vpop.f32.mrb[0].mxu0
  %v2422 = vadd.f32 0.0, %v2421
  %2423 = vdwg.mxu0
  %v2424 = vadd.f32 %v2278, %v2349
  %v2425 = vadd.f32 %v2279, %v2351
  %v2426 = vadd.f32 %v2280, %v2420
  %v2427 = vadd.f32 %v2281, %v2422
  %v2428 = vxor.u32 %v2424, 2147483648
  %v2429 = vxor.u32 %v2425, 2147483648
  %v2430 = vxor.u32 %v2426, 2147483648
  %v2431 = vmul.f32 %v2428, 1.442695
  %v2432 = vpow.pop %v2431
  %v2433 = vmul.f32 %v2429, 1.442695
  %v2434 = vpow.pop %v2433
  %v2435 = vmul.f32 %v2430, 1.442695
  %v2436 = vpow.pop %v2435
  %v2437 = vadd.f32 %v2432, 1.0
  %v2438 = vadd.f32 %v2434, 1.0
  %v2439 = vadd.f32 %v2436, 1.0
  %v2440 = vrcp.pop %v2437
  %v2441 = vmul.f32 1.0, %v2440
  %v2442 = vrcp.pop %v2438
  %v2443 = vmul.f32 1.0, %v2442
  %v2444 = vrcp.pop %v2439
  %v2445 = vmul.f32 1.0, %v2444
  %v2446 = vtanh.pop %v2427
  %v2447 = vmul.f32 %v2443, %v2277
  %v2448 = vmul.f32 %v2441, %v2446
  %v2449 = vadd.f32 %v2447, %v2448
  %v2450 = vtanh.pop %v2449
  %v2451 = vmul.f32 %v2445, %v2450
  %v2452 = vld [vmem:[%s607] sm:$0xff]
  %v2453 = vld [vmem:[%s607 + $0x8] sm:$0xff]
  %v2454 = vld [vmem:[%s607 + $0x10] sm:$0xff]
  %v2455 = vld [vmem:[%s607 + $0x18] sm:$0xff]
  %2456 = vmatprep.subr.mxu0 %v2213
  %2457 = vmatpush1.msra.mxu0 %v2212
  %2458 = vmatprep.subr.mxu0 %v2217
  %2459 = vmatpush1.msra.mxu0 %v2216
  %2460 = vmatprep.subr.mxu0 %v2221
  %2461 = vmatpush1.msra.mxu0 %v2220
  %2462 = vmatprep.subr.mxu0 %v2225
  %2463 = vmatpush1.msra.mxu0 %v2224
  %2464 = vmatprep.subr.mxu0 %v2229
  %2465 = vmatpush1.msra.mxu0 %v2228
  %2466 = vmatprep.subr.mxu0 %v2233
  %2467 = vmatpush1.msra.mxu0 %v2232
  %2468 = vmatprep.subr.mxu0 %v2237
  %2469 = vmatpush1.msra.mxu0 %v2236
  %2470 = vmatprep.subr.mxu0 %v2241
  %2471 = vmatpush1.msra.mxu0 %v2240
  %2472 = vmatprep.subr.mxu0 %v2245
  %2473 = vmatpush1.msra.mxu0 %v2244
  %2474 = vmatprep.subr.mxu0 %v2249
  %2475 = vmatpush1.msra.mxu0 %v2248
  %2476 = vmatprep.subr.mxu0 %v2253
  %2477 = vmatpush1.msra.mxu0 %v2252
  %2478 = vmatprep.subr.mxu0 %v2257
  %2479 = vmatpush1.msra.mxu0 %v2256
  %2480 = vmatprep.subr.mxu0 %v2261
  %2481 = vmatpush1.msra.mxu0 %v2260
  %2482 = vmatprep.subr.mxu0 %v2265
  %2483 = vmatpush1.msra.mxu0 %v2264
  %2484 = vmatprep.subr.mxu0 %v2269
  %2485 = vmatpush1.msra.mxu0 %v2268
  %2486 = vmatprep.subr.mxu0 %v2273
  %2487 = vmatpush1.msra.mxu0 %v2272
  %2488 = vmatprep.subr.mxu0 0.0
  %2489 = vmatpush1.msra.mxu0 0.0
  %2490 = vmatprep.subr.mxu0 0.0
  %2491 = vmatpush1.msra.mxu0 0.0
  %2492 = vmatprep.subr.mxu0 0.0
  %2493 = vmatpush1.msra.mxu0 0.0
  %2494 = vmatprep.subr.mxu0 0.0
  %2495 = vmatpush1.msra.mxu0 0.0
  %2496 = vmatprep.subr.mxu0 0.0
  %2497 = vmatpush1.msra.mxu0 0.0
  %2498 = vmatprep.subr.mxu0 0.0
  %2499 = vmatpush1.msra.mxu0 0.0
  %2500 = vmatprep.subr.mxu0 0.0
  %2501 = vmatpush1.msra.mxu0 0.0
  %2502 = vmatprep.subr.mxu0 0.0
  %2503 = vmatpush1.msra.mxu0 0.0
  %2504 = vmatprep.subr.mxu0 0.0
  %2505 = vmatpush1.msra.mxu0 0.0
  %2506 = vmatprep.subr.mxu0 0.0
  %2507 = vmatpush1.msra.mxu0 0.0
  %2508 = vmatprep.subr.mxu0 0.0
  %2509 = vmatpush1.msra.mxu0 0.0
  %2510 = vmatprep.subr.mxu0 0.0
  %2511 = vmatpush1.msra.mxu0 0.0
  %2512 = vmatprep.subr.mxu0 0.0
  %2513 = vmatpush1.msra.mxu0 0.0
  %2514 = vmatprep.subr.mxu0 0.0
  %2515 = vmatpush1.msra.mxu0 0.0
  %2516 = vmatprep.subr.mxu0 0.0
  %2517 = vmatpush1.msra.mxu0 0.0
  %2518 = vmatprep.subr.mxu0 0.0
  %2519 = vmatpush1.msra.mxu0 0.0
  %2520 = vmatprep.mubr.f32.mxu0 0.0
  %2521 = vmatmul.mubr.f32.gmra.mrb[0].mxu0 %v2451
  %v2522 = vpop.f32.mrb[0].mxu0
  %v2523 = vadd.f32 0.0, %v2522
  %v2524 = vpop.f32.mrb[0].mxu0
  %v2525 = vadd.f32 0.0, %v2524
  %2526 = vdwg.mxu0
  %2527 = vmatprep.subr.mxu0 %v2215
  %2528 = vmatpush1.msra.mxu0 %v2214
  %2529 = vmatprep.subr.mxu0 %v2219
  %2530 = vmatpush1.msra.mxu0 %v2218
  %2531 = vmatprep.subr.mxu0 %v2223
  %2532 = vmatpush1.msra.mxu0 %v2222
  %2533 = vmatprep.subr.mxu0 %v2227
  %2534 = vmatpush1.msra.mxu0 %v2226
  %2535 = vmatprep.subr.mxu0 %v2231
  %2536 = vmatpush1.msra.mxu0 %v2230
  %2537 = vmatprep.subr.mxu0 %v2235
  %2538 = vmatpush1.msra.mxu0 %v2234
  %2539 = vmatprep.subr.mxu0 %v2239
  %2540 = vmatpush1.msra.mxu0 %v2238
  %2541 = vmatprep.subr.mxu0 %v2243
  %2542 = vmatpush1.msra.mxu0 %v2242
  %2543 = vmatprep.subr.mxu0 %v2247
  %2544 = vmatpush1.msra.mxu0 %v2246
  %2545 = vmatprep.subr.mxu0 %v2251
  %2546 = vmatpush1.msra.mxu0 %v2250
  %2547 = vmatprep.subr.mxu0 %v2255
  %2548 = vmatpush1.msra.mxu0 %v2254
  %2549 = vmatprep.subr.mxu0 %v2259
  %2550 = vmatpush1.msra.mxu0 %v2258
  %2551 = vmatprep.subr.mxu0 %v2263
  %2552 = vmatpush1.msra.mxu0 %v2262
  %2553 = vmatprep.subr.mxu0 %v2267
  %2554 = vmatpush1.msra.mxu0 %v2266
  %2555 = vmatprep.subr.mxu0 %v2271
  %2556 = vmatpush1.msra.mxu0 %v2270
  %2557 = vmatprep.subr.mxu0 %v2275
  %2558 = vmatpush1.msra.mxu0 %v2274
  %2559 = vmatprep.subr.mxu0 0.0
  %2560 = vmatpush1.msra.mxu0 0.0
  %2561 = vmatprep.subr.mxu0 0.0
  %2562 = vmatpush1.msra.mxu0 0.0
  %2563 = vmatprep.subr.mxu0 0.0
  %2564 = vmatpush1.msra.mxu0 0.0
  %2565 = vmatprep.subr.mxu0 0.0
  %2566 = vmatpush1.msra.mxu0 0.0
  %2567 = vmatprep.subr.mxu0 0.0
  %2568 = vmatpush1.msra.mxu0 0.0
  %2569 = vmatprep.subr.mxu0 0.0
  %2570 = vmatpush1.msra.mxu0 0.0
  %2571 = vmatprep.subr.mxu0 0.0
  %2572 = vmatpush1.msra.mxu0 0.0
  %2573 = vmatprep.subr.mxu0 0.0
  %2574 = vmatpush1.msra.mxu0 0.0
  %2575 = vmatprep.subr.mxu0 0.0
  %2576 = vmatpush1.msra.mxu0 0.0
  %2577 = vmatprep.subr.mxu0 0.0
  %2578 = vmatpush1.msra.mxu0 0.0
  %2579 = vmatprep.subr.mxu0 0.0
  %2580 = vmatpush1.msra.mxu0 0.0
  %2581 = vmatprep.subr.mxu0 0.0
  %2582 = vmatpush1.msra.mxu0 0.0
  %2583 = vmatprep.subr.mxu0 0.0
  %2584 = vmatpush1.msra.mxu0 0.0
  %2585 = vmatprep.subr.mxu0 0.0
  %2586 = vmatpush1.msra.mxu0 0.0
  %2587 = vmatprep.subr.mxu0 0.0
  %2588 = vmatpush1.msra.mxu0 0.0
  %2589 = vmatprep.subr.mxu0 0.0
  %2590 = vmatpush1.msra.mxu0 0.0
  %2591 = vmatprep.mubr.f32.mxu0 0.0
  %2592 = vmatmul.mubr.f32.gmra.mrb[0].mxu0 %v2451
  %v2593 = vpop.f32.mrb[0].mxu0
  %v2594 = vadd.f32 0.0, %v2593
  %v2595 = vpop.f32.mrb[0].mxu0
  %v2596 = vadd.f32 0.0, %v2595
  %2597 = vdwg.mxu0
  %v2598 = vadd.f32 %v2452, %v2523
  %v2599 = vadd.f32 %v2453, %v2525
  %v2600 = vadd.f32 %v2454, %v2594
  %v2601 = vadd.f32 %v2455, %v2596
  %v2602 = vxor.u32 %v2598, 2147483648
  %v2603 = vxor.u32 %v2599, 2147483648
  %v2604 = vxor.u32 %v2600, 2147483648
  %v2605 = vmul.f32 %v2602, 1.442695
  %v2606 = vpow.pop %v2605
  %v2607 = vmul.f32 %v2603, 1.442695
  %v2608 = vpow.pop %v2607
  %v2609 = vmul.f32 %v2604, 1.442695
  %v2610 = vpow.pop %v2609
  %v2611 = vadd.f32 %v2606, 1.0
  %v2612 = vadd.f32 %v2608, 1.0
  %v2613 = vadd.f32 %v2610, 1.0
  %v2614 = vrcp.pop %v2611
  %v2615 = vmul.f32 1.0, %v2614
  %v2616 = vrcp.pop %v2612
  %v2617 = vmul.f32 1.0, %v2616
  %v2618 = vrcp.pop %v2613
  %v2619 = vmul.f32 1.0, %v2618
  %v2620 = vtanh.pop %v2601
  %v2621 = vmul.f32 %v2617, %v2449
  %v2622 = vmul.f32 %v2615, %v2620
  %v2623 = vadd.f32 %v2621, %v2622
  %v2624 = vtanh.pop %v2623
  %v2625 = vmul.f32 %v2619, %v2624
  %v2626 = vld [vmem:[%s786] sm:$0xff]
  %v2627 = vld [vmem:[%s786 + $0x8] sm:$0xff]
  %v2628 = vld [vmem:[%s786 + $0x10] sm:$0xff]
  %v2629 = vld [vmem:[%s786 + $0x18] sm:$0xff]
  %2630 = vmatprep.subr.mxu0 %v2213
  %2631 = vmatpush1.msra.mxu0 %v2212
  %2632 = vmatprep.subr.mxu0 %v2217
  %2633 = vmatpush1.msra.mxu0 %v2216
  %2634 = vmatprep.subr.mxu0 %v2221
  %2635 = vmatpush1.msra.mxu0 %v2220
  %2636 = vmatprep.subr.mxu0 %v2225
  %2637 = vmatpush1.msra.mxu0 %v2224
  %2638 = vmatprep.subr.mxu0 %v2229
  %2639 = vmatpush1.msra.mxu0 %v2228
  %2640 = vmatprep.subr.mxu0 %v2233
  %2641 = vmatpush1.msra.mxu0 %v2232
  %2642 = vmatprep.subr.mxu0 %v2237
  %2643 = vmatpush1.msra.mxu0 %v2236
  %2644 = vmatprep.subr.mxu0 %v2241
  %2645 = vmatpush1.msra.mxu0 %v2240
  %2646 = vmatprep.subr.mxu0 %v2245
  %2647 = vmatpush1.msra.mxu0 %v2244
  %2648 = vmatprep.subr.mxu0 %v2249
  %2649 = vmatpush1.msra.mxu0 %v2248
  %2650 = vmatprep.subr.mxu0 %v2253
  %2651 = vmatpush1.msra.mxu0 %v2252
  %2652 = vmatprep.subr.mxu0 %v2257
  %2653 = vmatpush1.msra.mxu0 %v2256
  %2654 = vmatprep.subr.mxu0 %v2261
  %2655 = vmatpush1.msra.mxu0 %v2260
  %2656 = vmatprep.subr.mxu0 %v2265
  %2657 = vmatpush1.msra.mxu0 %v2264
  %2658 = vmatprep.subr.mxu0 %v2269
  %2659 = vmatpush1.msra.mxu0 %v2268
  %2660 = vmatprep.subr.mxu0 %v2273
  %2661 = vmatpush1.msra.mxu0 %v2272
  %2662 = vmatprep.subr.mxu0 0.0
  %2663 = vmatpush1.msra.mxu0 0.0
  %2664 = vmatprep.subr.mxu0 0.0
  %2665 = vmatpush1.msra.mxu0 0.0
  %2666 = vmatprep.subr.mxu0 0.0
  %2667 = vmatpush1.msra.mxu0 0.0
  %2668 = vmatprep.subr.mxu0 0.0
  %2669 = vmatpush1.msra.mxu0 0.0
  %2670 = vmatprep.subr.mxu0 0.0
  %2671 = vmatpush1.msra.mxu0 0.0
  %2672 = vmatprep.subr.mxu0 0.0
  %2673 = vmatpush1.msra.mxu0 0.0
  %2674 = vmatprep.subr.mxu0 0.0
  %2675 = vmatpush1.msra.mxu0 0.0
  %2676 = vmatprep.subr.mxu0 0.0
  %2677 = vmatpush1.msra.mxu0 0.0
  %2678 = vmatprep.subr.mxu0 0.0
  %2679 = vmatpush1.msra.mxu0 0.0
  %2680 = vmatprep.subr.mxu0 0.0
  %2681 = vmatpush1.msra.mxu0 0.0
  %2682 = vmatprep.subr.mxu0 0.0
  %2683 = vmatpush1.msra.mxu0 0.0
  %2684 = vmatprep.subr.mxu0 0.0
  %2685 = vmatpush1.msra.mxu0 0.0
  %2686 = vmatprep.subr.mxu0 0.0
  %2687 = vmatpush1.msra.mxu0 0.0
  %2688 = vmatprep.subr.mxu0 0.0
  %2689 = vmatpush1.msra.mxu0 0.0
  %2690 = vmatprep.subr.mxu0 0.0
  %2691 = vmatpush1.msra.mxu0 0.0
  %2692 = vmatprep.subr.mxu0 0.0
  %2693 = vmatpush1.msra.mxu0 0.0
  %2694 = vmatprep.mubr.f32.mxu0 0.0
  %2695 = vmatmul.mubr.f32.gmra.mrb[0].mxu0 %v2625
  %v2696 = vpop.f32.mrb[0].mxu0
  %v2697 = vadd.f32 0.0, %v2696
  %v2698 = vpop.f32.mrb[0].mxu0
  %v2699 = vadd.f32 0.0, %v2698
  %2700 = vdwg.mxu0
  %2701 = vmatprep.subr.mxu0 %v2215
  %2702 = vmatpush1.msra.mxu0 %v2214
  %2703 = vmatprep.subr.mxu0 %v2219
  %2704 = vmatpush1.msra.mxu0 %v2218
  %2705 = vmatprep.subr.mxu0 %v2223
  %2706 = vmatpush1.msra.mxu0 %v2222
  %2707 = vmatprep.subr.mxu0 %v2227
  %2708 = vmatpush1.msra.mxu0 %v2226
  %2709 = vmatprep.subr.mxu0 %v2231
  %2710 = vmatpush1.msra.mxu0 %v2230
  %2711 = vmatprep.subr.mxu0 %v2235
  %2712 = vmatpush1.msra.mxu0 %v2234
  %2713 = vmatprep.subr.mxu0 %v2239
  %2714 = vmatpush1.msra.mxu0 %v2238
  %2715 = vmatprep.subr.mxu0 %v2243
  %2716 = vmatpush1.msra.mxu0 %v2242
  %2717 = vmatprep.subr.mxu0 %v2247
  %2718 = vmatpush1.msra.mxu0 %v2246
  %2719 = vmatprep.subr.mxu0 %v2251
  %2720 = vmatpush1.msra.mxu0 %v2250
  %2721 = vmatprep.subr.mxu0 %v2255
  %2722 = vmatpush1.msra.mxu0 %v2254
  %2723 = vmatprep.subr.mxu0 %v2259
  %2724 = vmatpush1.msra.mxu0 %v2258
  %2725 = vmatprep.subr.mxu0 %v2263
  %2726 = vmatpush1.msra.mxu0 %v2262
  %2727 = vmatprep.subr.mxu0 %v2267
  %2728 = vmatpush1.msra.mxu0 %v2266
  %2729 = vmatprep.subr.mxu0 %v2271
  %2730 = vmatpush1.msra.mxu0 %v2270
  %2731 = vmatprep.subr.mxu0 %v2275
  %2732 = vmatpush1.msra.mxu0 %v2274
  %2733 = vmatprep.subr.mxu0 0.0
  %2734 = vmatpush1.msra.mxu0 0.0
  %2735 = vmatprep.subr.mxu0 0.0
  %2736 = vmatpush1.msra.mxu0 0.0
  %2737 = vmatprep.subr.mxu0 0.0
  %2738 = vmatpush1.msra.mxu0 0.0
  %2739 = vmatprep.subr.mxu0 0.0
  %2740 = vmatpush1.msra.mxu0 0.0
  %2741 = vmatprep.subr.mxu0 0.0
  %2742 = vmatpush1.msra.mxu0 0.0
  %2743 = vmatprep.subr.mxu0 0.0
  %2744 = vmatpush1.msra.mxu0 0.0
  %2745 = vmatprep.subr.mxu0 0.0
  %2746 = vmatpush1.msra.mxu0 0.0
  %2747 = vmatprep.subr.mxu0 0.0
  %2748 = vmatpush1.msra.mxu0 0.0
  %2749 = vmatprep.subr.mxu0 0.0
  %2750 = vmatpush1.msra.mxu0 0.0
  %2751 = vmatprep.subr.mxu0 0.0
  %2752 = vmatpush1.msra.mxu0 0.0
  %2753 = vmatprep.subr.mxu0 0.0
  %2754 = vmatpush1.msra.mxu0 0.0
  %2755 = vmatprep.subr.mxu0 0.0
  %2756 = vmatpush1.msra.mxu0 0.0
  %2757 = vmatprep.subr.mxu0 0.0
  %2758 = vmatpush1.msra.mxu0 0.0
  %2759 = vmatprep.subr.mxu0 0.0
  %2760 = vmatpush1.msra.mxu0 0.0
  %2761 = vmatprep.subr.mxu0 0.0
  %2762 = vmatpush1.msra.mxu0 0.0
  %2763 = vmatprep.subr.mxu0 0.0
  %2764 = vmatpush1.msra.mxu0 0.0
  %2765 = vmatprep.mubr.f32.mxu0 0.0
  %2766 = vmatmul.mubr.f32.gmra.mrb[0].mxu0 %v2625
  %v2767 = vpop.f32.mrb[0].mxu0
  %v2768 = vadd.f32 0.0, %v2767
  %v2769 = vpop.f32.mrb[0].mxu0
  %v2770 = vadd.f32 0.0, %v2769
  %2771 = vdwg.mxu0
  %v2772 = vadd.f32 %v2626, %v2697
  %v2773 = vadd.f32 %v2627, %v2699
  %v2774 = vadd.f32 %v2628, %v2768
  %v2775 = vadd.f32 %v2629, %v2770
  %v2776 = vxor.u32 %v2772, 2147483648
  %v2777 = vxor.u32 %v2773, 2147483648
  %v2778 = vxor.u32 %v2774, 2147483648
  %v2779 = vmul.f32 %v2776, 1.442695
  %v2780 = vpow.pop %v2779
  %v2781 = vmul.f32 %v2777, 1.442695
  %v2782 = vpow.pop %v2781
  %v2783 = vmul.f32 %v2778, 1.442695
  %v2784 = vpow.pop %v2783
  %v2785 = vadd.f32 %v2780, 1.0
  %v2786 = vadd.f32 %v2782, 1.0
  %v2787 = vadd.f32 %v2784, 1.0
  %v2788 = vrcp.pop %v2785
  %v2789 = vmul.f32 1.0, %v2788
  %v2790 = vrcp.pop %v2786
  %v2791 = vmul.f32 1.0, %v2790
  %v2792 = vrcp.pop %v2787
  %v2793 = vmul.f32 1.0, %v2792
  %v2794 = vtanh.pop %v2775
  %v2795 = vmul.f32 %v2791, %v2623
  %v2796 = vmul.f32 %v2789, %v2794
  %v2797 = vadd.f32 %v2795, %v2796
  %v2798 = vtanh.pop %v2797
  %v2799 = vmul.f32 %v2793, %v2798
  %v2800 = vld [vmem:[%s965] sm:$0xff]
  %v2801 = vld [vmem:[%s965 + $0x8] sm:$0xff]
  %v2802 = vld [vmem:[%s965 + $0x10] sm:$0xff]
  %v2803 = vld [vmem:[%s965 + $0x18] sm:$0xff]
  %2804 = vmatprep.subr.mxu0 %v2213
  %2805 = vmatpush1.msra.mxu0 %v2212
  %2806 = vmatprep.subr.mxu0 %v2217
  %2807 = vmatpush1.msra.mxu0 %v2216
  %2808 = vmatprep.subr.mxu0 %v2221
  %2809 = vmatpush1.msra.mxu0 %v2220
  %2810 = vmatprep.subr.mxu0 %v2225
  %2811 = vmatpush1.msra.mxu0 %v2224
  %2812 = vmatprep.subr.mxu0 %v2229
  %2813 = vmatpush1.msra.mxu0 %v2228
  %2814 = vmatprep.subr.mxu0 %v2233
  %2815 = vmatpush1.msra.mxu0 %v2232
  %2816 = vmatprep.subr.mxu0 %v2237
  %2817 = vmatpush1.msra.mxu0 %v2236
  %2818 = vmatprep.subr.mxu0 %v2241
  %2819 = vmatpush1.msra.mxu0 %v2240
  %2820 = vmatprep.subr.mxu0 %v2245
  %2821 = vmatpush1.msra.mxu0 %v2244
  %2822 = vmatprep.subr.mxu0 %v2249
  %2823 = vmatpush1.msra.mxu0 %v2248
  %2824 = vmatprep.subr.mxu0 %v2253
  %2825 = vmatpush1.msra.mxu0 %v2252
  %2826 = vmatprep.subr.mxu0 %v2257
  %2827 = vmatpush1.msra.mxu0 %v2256
  %2828 = vmatprep.subr.mxu0 %v2261
  %2829 = vmatpush1.msra.mxu0 %v2260
  %2830 = vmatprep.subr.mxu0 %v2265
  %2831 = vmatpush1.msra.mxu0 %v2264
  %2832 = vmatprep.subr.mxu0 %v2269
  %2833 = vmatpush1.msra.mxu0 %v2268
  %2834 = vmatprep.subr.mxu0 %v2273
  %2835 = vmatpush1.msra.mxu0 %v2272
  %2836 = vmatprep.subr.mxu0 0.0
  %2837 = vmatpush1.msra.mxu0 0.0
  %2838 = vmatprep.subr.mxu0 0.0
  %2839 = vmatpush1.msra.mxu0 0.0
  %2840 = vmatprep.subr.mxu0 0.0
  %2841 = vmatpush1.msra.mxu0 0.0
  %2842 = vmatprep.subr.mxu0 0.0
  %2843 = vmatpush1.msra.mxu0 0.0
  %2844 = vmatprep.subr.mxu0 0.0
  %2845 = vmatpush1.msra.mxu0 0.0
  %2846 = vmatprep.subr.mxu0 0.0
  %2847 = vmatpush1.msra.mxu0 0.0
  %2848 = vmatprep.subr.mxu0 0.0
  %2849 = vmatpush1.msra.mxu0 0.0
  %2850 = vmatprep.subr.mxu0 0.0
  %2851 = vmatpush1.msra.mxu0 0.0
  %2852 = vmatprep.subr.mxu0 0.0
  %2853 = vmatpush1.msra.mxu0 0.0
  %2854 = vmatprep.subr.mxu0 0.0
  %2855 = vmatpush1.msra.mxu0 0.0
  %2856 = vmatprep.subr.mxu0 0.0
  %2857 = vmatpush1.msra.mxu0 0.0
  %2858 = vmatprep.subr.mxu0 0.0
  %2859 = vmatpush1.msra.mxu0 0.0
  %2860 = vmatprep.subr.mxu0 0.0
  %2861 = vmatpush1.msra.mxu0 0.0
  %2862 = vmatprep.subr.mxu0 0.0
  %2863 = vmatpush1.msra.mxu0 0.0
  %2864 = vmatprep.subr.mxu0 0.0
  %2865 = vmatpush1.msra.mxu0 0.0
  %2866 = vmatprep.subr.mxu0 0.0
  %2867 = vmatpush1.msra.mxu0 0.0
  %2868 = vmatprep.mubr.f32.mxu0 0.0
  %2869 = vmatmul.mubr.f32.gmra.mrb[0].mxu0 %v2799
  %v2870 = vpop.f32.mrb[0].mxu0
  %v2871 = vadd.f32 0.0, %v2870
  %v2872 = vpop.f32.mrb[0].mxu0
  %v2873 = vadd.f32 0.0, %v2872
  %2874 = vdwg.mxu0
  %2875 = vmatprep.subr.mxu0 %v2215
  %2876 = vmatpush1.msra.mxu0 %v2214
  %2877 = vmatprep.subr.mxu0 %v2219
  %2878 = vmatpush1.msra.mxu0 %v2218
  %2879 = vmatprep.subr.mxu0 %v2223
  %2880 = vmatpush1.msra.mxu0 %v2222
  %2881 = vmatprep.subr.mxu0 %v2227
  %2882 = vmatpush1.msra.mxu0 %v2226
  %2883 = vmatprep.subr.mxu0 %v2231
  %2884 = vmatpush1.msra.mxu0 %v2230
  %2885 = vmatprep.subr.mxu0 %v2235
  %2886 = vmatpush1.msra.mxu0 %v2234
  %2887 = vmatprep.subr.mxu0 %v2239
  %2888 = vmatpush1.msra.mxu0 %v2238
  %2889 = vmatprep.subr.mxu0 %v2243
  %2890 = vmatpush1.msra.mxu0 %v2242
  %2891 = vmatprep.subr.mxu0 %v2247
  %2892 = vmatpush1.msra.mxu0 %v2246
  %2893 = vmatprep.subr.mxu0 %v2251
  %2894 = vmatpush1.msra.mxu0 %v2250
  %2895 = vmatprep.subr.mxu0 %v2255
  %2896 = vmatpush1.msra.mxu0 %v2254
  %2897 = vmatprep.subr.mxu0 %v2259
  %2898 = vmatpush1.msra.mxu0 %v2258
  %2899 = vmatprep.subr.mxu0 %v2263
  %2900 = vmatpush1.msra.mxu0 %v2262
  %2901 = vmatprep.subr.mxu0 %v2267
  %2902 = vmatpush1.msra.mxu0 %v2266
  %2903 = vmatprep.subr.mxu0 %v2271
  %2904 = vmatpush1.msra.mxu0 %v2270
  %2905 = vmatprep.subr.mxu0 %v2275
  %2906 = vmatpush1.msra.mxu0 %v2274
  %2907 = vmatprep.subr.mxu0 0.0
  %2908 = vmatpush1.msra.mxu0 0.0
  %2909 = vmatprep.subr.mxu0 0.0
  %2910 = vmatpush1.msra.mxu0 0.0
  %2911 = vmatprep.subr.mxu0 0.0
  %2912 = vmatpush1.msra.mxu0 0.0
  %2913 = vmatprep.subr.mxu0 0.0
  %2914 = vmatpush1.msra.mxu0 0.0
  %2915 = vmatprep.subr.mxu0 0.0
  %2916 = vmatpush1.msra.mxu0 0.0
  %2917 = vmatprep.subr.mxu0 0.0
  %2918 = vmatpush1.msra.mxu0 0.0
  %2919 = vmatprep.subr.mxu0 0.0
  %2920 = vmatpush1.msra.mxu0 0.0
  %2921 = vmatprep.subr.mxu0 0.0
  %2922 = vmatpush1.msra.mxu0 0.0
  %2923 = vmatprep.subr.mxu0 0.0
  %2924 = vmatpush1.msra.mxu0 0.0
  %2925 = vmatprep.subr.mxu0 0.0
  %2926 = vmatpush1.msra.mxu0 0.0
  %2927 = vmatprep.subr.mxu0 0.0
  %2928 = vmatpush1.msra.mxu0 0.0
  %2929 = vmatprep.subr.mxu0 0.0
  %2930 = vmatpush1.msra.mxu0 0.0
  %2931 = vmatprep.subr.mxu0 0.0
  %2932 = vmatpush1.msra.mxu0 0.0
  %2933 = vmatprep.subr.mxu0 0.0
  %2934 = vmatpush1.msra.mxu0 0.0
  %2935 = vmatprep.subr.mxu0 0.0
  %2936 = vmatpush1.msra.mxu0 0.0
  %2937 = vmatprep.subr.mxu0 0.0
  %2938 = vmatpush1.msra.mxu0 0.0
  %2939 = vmatprep.mubr.f32.mxu0 0.0
  %2940 = vmatmul.mubr.f32.gmra.mrb[0].mxu0 %v2799
  %v2941 = vpop.f32.mrb[0].mxu0
  %v2942 = vadd.f32 0.0, %v2941
  %v2943 = vpop.f32.mrb[0].mxu0
  %v2944 = vadd.f32 0.0, %v2943
  %2945 = vdwg.mxu0
  %v2946 = vadd.f32 %v2800, %v2871
  %v2947 = vadd.f32 %v2801, %v2873
  %v2948 = vadd.f32 %v2802, %v2942
  %v2949 = vadd.f32 %v2803, %v2944
  %v2950 = vxor.u32 %v2946, 2147483648
  %v2951 = vxor.u32 %v2947, 2147483648
  %v2952 = vxor.u32 %v2948, 2147483648
  %v2953 = vmul.f32 %v2950, 1.442695
  %v2954 = vpow.pop %v2953
  %v2955 = vmul.f32 %v2951, 1.442695
  %v2956 = vpow.pop %v2955
  %v2957 = vmul.f32 %v2952, 1.442695
  %v2958 = vpow.pop %v2957
  %v2959 = vadd.f32 %v2954, 1.0
  %v2960 = vadd.f32 %v2956, 1.0
  %v2961 = vadd.f32 %v2958, 1.0
  %v2962 = vrcp.pop %v2959
  %v2963 = vmul.f32 1.0, %v2962
  %v2964 = vrcp.pop %v2960
  %v2965 = vmul.f32 1.0, %v2964
  %v2966 = vrcp.pop %v2961
  %v2967 = vmul.f32 1.0, %v2966
  %v2968 = vtanh.pop %v2949
  %v2969 = vmul.f32 %v2965, %v2797
  %v2970 = vmul.f32 %v2963, %v2968
  %v2971 = vadd.f32 %v2969, %v2970
  %v2972 = vtanh.pop %v2971
  %v2973 = vmul.f32 %v2967, %v2972
  %v2974 = vld [vmem:[%s1144] sm:$0xff]
  %v2975 = vld [vmem:[%s1144 + $0x8] sm:$0xff]
  %v2976 = vld [vmem:[%s1144 + $0x10] sm:$0xff]
  %v2977 = vld [vmem:[%s1144 + $0x18] sm:$0xff]
  %2978 = vmatprep.subr.mxu0 %v2213
  %2979 = vmatpush1.msra.mxu0 %v2212
  %2980 = vmatprep.subr.mxu0 %v2217
  %2981 = vmatpush1.msra.mxu0 %v2216
  %2982 = vmatprep.subr.mxu0 %v2221
  %2983 = vmatpush1.msra.mxu0 %v2220
  %2984 = vmatprep.subr.mxu0 %v2225
  %2985 = vmatpush1.msra.mxu0 %v2224
  %2986 = vmatprep.subr.mxu0 %v2229
  %2987 = vmatpush1.msra.mxu0 %v2228
  %2988 = vmatprep.subr.mxu0 %v2233
  %2989 = vmatpush1.msra.mxu0 %v2232
  %2990 = vmatprep.subr.mxu0 %v2237
  %2991 = vmatpush1.msra.mxu0 %v2236
  %2992 = vmatprep.subr.mxu0 %v2241
  %2993 = vmatpush1.msra.mxu0 %v2240
  %2994 = vmatprep.subr.mxu0 %v2245
  %2995 = vmatpush1.msra.mxu0 %v2244
  %2996 = vmatprep.subr.mxu0 %v2249
  %2997 = vmatpush1.msra.mxu0 %v2248
  %2998 = vmatprep.subr.mxu0 %v2253
  %2999 = vmatpush1.msra.mxu0 %v2252
  %3000 = vmatprep.subr.mxu0 %v2257
  %3001 = vmatpush1.msra.mxu0 %v2256
  %3002 = vmatprep.subr.mxu0 %v2261
  %3003 = vmatpush1.msra.mxu0 %v2260
  %3004 = vmatprep.subr.mxu0 %v2265
  %3005 = vmatpush1.msra.mxu0 %v2264
  %3006 = vmatprep.subr.mxu0 %v2269
  %3007 = vmatpush1.msra.mxu0 %v2268
  %3008 = vmatprep.subr.mxu0 %v2273
  %3009 = vmatpush1.msra.mxu0 %v2272
  %3010 = vmatprep.subr.mxu0 0.0
  %3011 = vmatpush1.msra.mxu0 0.0
  %3012 = vmatprep.subr.mxu0 0.0
  %3013 = vmatpush1.msra.mxu0 0.0
  %3014 = vmatprep.subr.mxu0 0.0
  %3015 = vmatpush1.msra.mxu0 0.0
  %3016 = vmatprep.subr.mxu0 0.0
  %3017 = vmatpush1.msra.mxu0 0.0
  %3018 = vmatprep.subr.mxu0 0.0
  %3019 = vmatpush1.msra.mxu0 0.0
  %3020 = vmatprep.subr.mxu0 0.0
  %3021 = vmatpush1.msra.mxu0 0.0
  %3022 = vmatprep.subr.mxu0 0.0
  %3023 = vmatpush1.msra.mxu0 0.0
  %3024 = vmatprep.subr.mxu0 0.0
  %3025 = vmatpush1.msra.mxu0 0.0
  %3026 = vmatprep.subr.mxu0 0.0
  %3027 = vmatpush1.msra.mxu0 0.0
  %3028 = vmatprep.subr.mxu0 0.0
  %3029 = vmatpush1.msra.mxu0 0.0
  %3030 = vmatprep.subr.mxu0 0.0
  %3031 = vmatpush1.msra.mxu0 0.0
  %3032 = vmatprep.subr.mxu0 0.0
  %3033 = vmatpush1.msra.mxu0 0.0
  %3034 = vmatprep.subr.mxu0 0.0
  %3035 = vmatpush1.msra.mxu0 0.0
  %3036 = vmatprep.subr.mxu0 0.0
  %3037 = vmatpush1.msra.mxu0 0.0
  %3038 = vmatprep.subr.mxu0 0.0
  %3039 = vmatpush1.msra.mxu0 0.0
  %3040 = vmatprep.subr.mxu0 0.0
  %3041 = vmatpush1.msra.mxu0 0.0
  %3042 = vmatprep.mubr.f32.mxu0 0.0
  %3043 = vmatmul.mubr.f32.gmra.mrb[0].mxu0 %v2973
  %v3044 = vpop.f32.mrb[0].mxu0
  %v3045 = vadd.f32 0.0, %v3044
  %v3046 = vpop.f32.mrb[0].mxu0
  %v3047 = vadd.f32 0.0, %v3046
  %3048 = vdwg.mxu0
  %3049 = vmatprep.subr.mxu0 %v2215
  %3050 = vmatpush1.msra.mxu0 %v2214
  %3051 = vmatprep.subr.mxu0 %v2219
  %3052 = vmatpush1.msra.mxu0 %v2218
  %3053 = vmatprep.subr.mxu0 %v2223
  %3054 = vmatpush1.msra.mxu0 %v2222
  %3055 = vmatprep.subr.mxu0 %v2227
  %3056 = vmatpush1.msra.mxu0 %v2226
  %3057 = vmatprep.subr.mxu0 %v2231
  %3058 = vmatpush1.msra.mxu0 %v2230
  %3059 = vmatprep.subr.mxu0 %v2235
  %3060 = vmatpush1.msra.mxu0 %v2234
  %3061 = vmatprep.subr.mxu0 %v2239
  %3062 = vmatpush1.msra.mxu0 %v2238
  %3063 = vmatprep.subr.mxu0 %v2243
  %3064 = vmatpush1.msra.mxu0 %v2242
  %3065 = vmatprep.subr.mxu0 %v2247
  %3066 = vmatpush1.msra.mxu0 %v2246
  %3067 = vmatprep.subr.mxu0 %v2251
  %3068 = vmatpush1.msra.mxu0 %v2250
  %3069 = vmatprep.subr.mxu0 %v2255
  %3070 = vmatpush1.msra.mxu0 %v2254
  %3071 = vmatprep.subr.mxu0 %v2259
  %3072 = vmatpush1.msra.mxu0 %v2258
  %3073 = vmatprep.subr.mxu0 %v2263
  %3074 = vmatpush1.msra.mxu0 %v2262
  %3075 = vmatprep.subr.mxu0 %v2267
  %3076 = vmatpush1.msra.mxu0 %v2266
  %3077 = vmatprep.subr.mxu0 %v2271
  %3078 = vmatpush1.msra.mxu0 %v2270
  %3079 = vmatprep.subr.mxu0 %v2275
  %3080 = vmatpush1.msra.mxu0 %v2274
  %3081 = vmatprep.subr.mxu0 0.0
  %3082 = vmatpush1.msra.mxu0 0.0
  %3083 = vmatprep.subr.mxu0 0.0
  %3084 = vmatpush1.msra.mxu0 0.0
  %3085 = vmatprep.subr.mxu0 0.0
  %3086 = vmatpush1.msra.mxu0 0.0
  %3087 = vmatprep.subr.mxu0 0.0
  %3088 = vmatpush1.msra.mxu0 0.0
  %3089 = vmatprep.subr.mxu0 0.0
  %3090 = vmatpush1.msra.mxu0 0.0
  %3091 = vmatprep.subr.mxu0 0.0
  %3092 = vmatpush1.msra.mxu0 0.0
  %3093 = vmatprep.subr.mxu0 0.0
  %3094 = vmatpush1.msra.mxu0 0.0
  %3095 = vmatprep.subr.mxu0 0.0
  %3096 = vmatpush1.msra.mxu0 0.0
  %3097 = vmatprep.subr.mxu0 0.0
  %3098 = vmatpush1.msra.mxu0 0.0
  %3099 = vmatprep.subr.mxu0 0.0
  %3100 = vmatpush1.msra.mxu0 0.0
  %3101 = vmatprep.subr.mxu0 0.0
  %3102 = vmatpush1.msra.mxu0 0.0
  %3103 = vmatprep.subr.mxu0 0.0
  %3104 = vmatpush1.msra.mxu0 0.0
  %3105 = vmatprep.subr.mxu0 0.0
  %3106 = vmatpush1.msra.mxu0 0.0
  %3107 = vmatprep.subr.mxu0 0.0
  %3108 = vmatpush1.msra.mxu0 0.0
  %3109 = vmatprep.subr.mxu0 0.0
  %3110 = vmatpush1.msra.mxu0 0.0
  %3111 = vmatprep.subr.mxu0 0.0
  %3112 = vmatpush1.msra.mxu0 0.0
  %3113 = vmatprep.mubr.f32.mxu0 0.0
  %3114 = vmatmul.mubr.f32.gmra.mrb[0].mxu0 %v2973
  %v3115 = vpop.f32.mrb[0].mxu0
  %v3116 = vadd.f32 0.0, %v3115
  %v3117 = vpop.f32.mrb[0].mxu0
  %v3118 = vadd.f32 0.0, %v3117
  %3119 = vdwg.mxu0
  %v3120 = vadd.f32 %v2974, %v3045
  %v3121 = vadd.f32 %v2975, %v3047
  %v3122 = vadd.f32 %v2976, %v3116
  %v3123 = vadd.f32 %v2977, %v3118
  %v3124 = vxor.u32 %v3120, 2147483648
  %v3125 = vxor.u32 %v3121, 2147483648
  %v3126 = vxor.u32 %v3122, 2147483648
  %v3127 = vmul.f32 %v3124, 1.442695
  %v3128 = vpow.pop %v3127
  %v3129 = vmul.f32 %v3125, 1.442695
  %v3130 = vpow.pop %v3129
  %v3131 = vmul.f32 %v3126, 1.442695
  %v3132 = vpow.pop %v3131
  %v3133 = vadd.f32 %v3128, 1.0
  %v3134 = vadd.f32 %v3130, 1.0
  %v3135 = vadd.f32 %v3132, 1.0
  %v3136 = vrcp.pop %v3133
  %v3137 = vmul.f32 1.0, %v3136
  %v3138 = vrcp.pop %v3134
  %v3139 = vmul.f32 1.0, %v3138
  %v3140 = vrcp.pop %v3135
  %v3141 = vmul.f32 1.0, %v3140
  %v3142 = vtanh.pop %v3123
  %v3143 = vmul.f32 %v3139, %v2971
  %v3144 = vmul.f32 %v3137, %v3142
  %v3145 = vadd.f32 %v3143, %v3144
  %v3146 = vtanh.pop %v3145
  %v3147 = vmul.f32 %v3141, %v3146
  %v3148 = vld [vmem:[%s1323] sm:$0xff]
  %v3149 = vld [vmem:[%s1323 + $0x8] sm:$0xff]
  %v3150 = vld [vmem:[%s1323 + $0x10] sm:$0xff]
  %v3151 = vld [vmem:[%s1323 + $0x18] sm:$0xff]
  %3152 = vmatprep.subr.mxu0 %v2213
  %3153 = vmatpush1.msra.mxu0 %v2212
  %3154 = vmatprep.subr.mxu0 %v2217
  %3155 = vmatpush1.msra.mxu0 %v2216
  %3156 = vmatprep.subr.mxu0 %v2221
  %3157 = vmatpush1.msra.mxu0 %v2220
  %3158 = vmatprep.subr.mxu0 %v2225
  %3159 = vmatpush1.msra.mxu0 %v2224
  %3160 = vmatprep.subr.mxu0 %v2229
  %3161 = vmatpush1.msra.mxu0 %v2228
  %3162 = vmatprep.subr.mxu0 %v2233
  %3163 = vmatpush1.msra.mxu0 %v2232
  %3164 = vmatprep.subr.mxu0 %v2237
  %3165 = vmatpush1.msra.mxu0 %v2236
  %3166 = vmatprep.subr.mxu0 %v2241
  %3167 = vmatpush1.msra.mxu0 %v2240
  %3168 = vmatprep.subr.mxu0 %v2245
  %3169 = vmatpush1.msra.mxu0 %v2244
  %3170 = vmatprep.subr.mxu0 %v2249
  %3171 = vmatpush1.msra.mxu0 %v2248
  %3172 = vmatprep.subr.mxu0 %v2253
  %3173 = vmatpush1.msra.mxu0 %v2252
  %3174 = vmatprep.subr.mxu0 %v2257
  %3175 = vmatpush1.msra.mxu0 %v2256
  %3176 = vmatprep.subr.mxu0 %v2261
  %3177 = vmatpush1.msra.mxu0 %v2260
  %3178 = vmatprep.subr.mxu0 %v2265
  %3179 = vmatpush1.msra.mxu0 %v2264
  %3180 = vmatprep.subr.mxu0 %v2269
  %3181 = vmatpush1.msra.mxu0 %v2268
  %3182 = vmatprep.subr.mxu0 %v2273
  %3183 = vmatpush1.msra.mxu0 %v2272
  %3184 = vmatprep.subr.mxu0 0.0
  %3185 = vmatpush1.msra.mxu0 0.0
  %3186 = vmatprep.subr.mxu0 0.0
  %3187 = vmatpush1.msra.mxu0 0.0
  %3188 = vmatprep.subr.mxu0 0.0
  %3189 = vmatpush1.msra.mxu0 0.0
  %3190 = vmatprep.subr.mxu0 0.0
  %3191 = vmatpush1.msra.mxu0 0.0
  %3192 = vmatprep.subr.mxu0 0.0
  %3193 = vmatpush1.msra.mxu0 0.0
  %3194 = vmatprep.subr.mxu0 0.0
  %3195 = vmatpush1.msra.mxu0 0.0
  %3196 = vmatprep.subr.mxu0 0.0
  %3197 = vmatpush1.msra.mxu0 0.0
  %3198 = vmatprep.subr.mxu0 0.0
  %3199 = vmatpush1.msra.mxu0 0.0
  %3200 = vmatprep.subr.mxu0 0.0
  %3201 = vmatpush1.msra.mxu0 0.0
  %3202 = vmatprep.subr.mxu0 0.0
  %3203 = vmatpush1.msra.mxu0 0.0
  %3204 = vmatprep.subr.mxu0 0.0
  %3205 = vmatpush1.msra.mxu0 0.0
  %3206 = vmatprep.subr.mxu0 0.0
  %3207 = vmatpush1.msra.mxu0 0.0
  %3208 = vmatprep.subr.mxu0 0.0
  %3209 = vmatpush1.msra.mxu0 0.0
  %3210 = vmatprep.subr.mxu0 0.0
  %3211 = vmatpush1.msra.mxu0 0.0
  %3212 = vmatprep.subr.mxu0 0.0
  %3213 = vmatpush1.msra.mxu0 0.0
  %3214 = vmatprep.subr.mxu0 0.0
  %3215 = vmatpush1.msra.mxu0 0.0
  %3216 = vmatprep.mubr.f32.mxu0 0.0
  %3217 = vmatmul.mubr.f32.gmra.mrb[0].mxu0 %v3147
  %v3218 = vpop.f32.mrb[0].mxu0
  %v3219 = vadd.f32 0.0, %v3218
  %v3220 = vpop.f32.mrb[0].mxu0
  %v3221 = vadd.f32 0.0, %v3220
  %3222 = vdwg.mxu0
  %3223 = vmatprep.subr.mxu0 %v2215
  %3224 = vmatpush1.msra.mxu0 %v2214
  %3225 = vmatprep.subr.mxu0 %v2219
  %3226 = vmatpush1.msra.mxu0 %v2218
  %3227 = vmatprep.subr.mxu0 %v2223
  %3228 = vmatpush1.msra.mxu0 %v2222
  %3229 = vmatprep.subr.mxu0 %v2227
  %3230 = vmatpush1.msra.mxu0 %v2226
  %3231 = vmatprep.subr.mxu0 %v2231
  %3232 = vmatpush1.msra.mxu0 %v2230
  %3233 = vmatprep.subr.mxu0 %v2235
  %3234 = vmatpush1.msra.mxu0 %v2234
  %3235 = vmatprep.subr.mxu0 %v2239
  %3236 = vmatpush1.msra.mxu0 %v2238
  %3237 = vmatprep.subr.mxu0 %v2243
  %3238 = vmatpush1.msra.mxu0 %v2242
  %3239 = vmatprep.subr.mxu0 %v2247
  %3240 = vmatpush1.msra.mxu0 %v2246
  %3241 = vmatprep.subr.mxu0 %v2251
  %3242 = vmatpush1.msra.mxu0 %v2250
  %3243 = vmatprep.subr.mxu0 %v2255
  %3244 = vmatpush1.msra.mxu0 %v2254
  %3245 = vmatprep.subr.mxu0 %v2259
  %3246 = vmatpush1.msra.mxu0 %v2258
  %3247 = vmatprep.subr.mxu0 %v2263
  %3248 = vmatpush1.msra.mxu0 %v2262
  %3249 = vmatprep.subr.mxu0 %v2267
  %3250 = vmatpush1.msra.mxu0 %v2266
  %3251 = vmatprep.subr.mxu0 %v2271
  %3252 = vmatpush1.msra.mxu0 %v2270
  %3253 = vmatprep.subr.mxu0 %v2275
  %3254 = vmatpush1.msra.mxu0 %v2274
  %3255 = vmatprep.subr.mxu0 0.0
  %3256 = vmatpush1.msra.mxu0 0.0
  %3257 = vmatprep.subr.mxu0 0.0
  %3258 = vmatpush1.msra.mxu0 0.0
  %3259 = vmatprep.subr.mxu0 0.0
  %3260 = vmatpush1.msra.mxu0 0.0
  %3261 = vmatprep.subr.mxu0 0.0
  %3262 = vmatpush1.msra.mxu0 0.0
  %3263 = vmatprep.subr.mxu0 0.0
  %3264 = vmatpush1.msra.mxu0 0.0
  %3265 = vmatprep.subr.mxu0 0.0
  %3266 = vmatpush1.msra.mxu0 0.0
  %3267 = vmatprep.subr.mxu0 0.0
  %3268 = vmatpush1.msra.mxu0 0.0
  %3269 = vmatprep.subr.mxu0 0.0
  %3270 = vmatpush1.msra.mxu0 0.0
  %3271 = vmatprep.subr.mxu0 0.0
  %3272 = vmatpush1.msra.mxu0 0.0
  %3273 = vmatprep.subr.mxu0 0.0
  %3274 = vmatpush1.msra.mxu0 0.0
  %3275 = vmatprep.subr.mxu0 0.0
  %3276 = vmatpush1.msra.mxu0 0.0
  %3277 = vmatprep.subr.mxu0 0.0
  %3278 = vmatpush1.msra.mxu0 0.0
  %3279 = vmatprep.subr.mxu0 0.0
  %3280 = vmatpush1.msra.mxu0 0.0
  %3281 = vmatprep.subr.mxu0 0.0
  %3282 = vmatpush1.msra.mxu0 0.0
  %3283 = vmatprep.subr.mxu0 0.0
  %3284 = vmatpush1.msra.mxu0 0.0
  %3285 = vmatprep.subr.mxu0 0.0
  %3286 = vmatpush1.msra.mxu0 0.0
  %3287 = vmatprep.mubr.f32.mxu0 0.0
  %3288 = vmatmul.mubr.f32.gmra.mrb[0].mxu0 %v3147
  %v3289 = vpop.f32.mrb[0].mxu0
  %v3290 = vadd.f32 0.0, %v3289
  %v3291 = vpop.f32.mrb[0].mxu0
  %v3292 = vadd.f32 0.0, %v3291
  %3293 = vdwg.mxu0
  %v3294 = vadd.f32 %v3148, %v3219
  %v3295 = vadd.f32 %v3149, %v3221
  %v3296 = vadd.f32 %v3150, %v3290
  %v3297 = vadd.f32 %v3151, %v3292
  %v3298 = vxor.u32 %v3294, 2147483648
  %v3299 = vxor.u32 %v3295, 2147483648
  %v3300 = vxor.u32 %v3296, 2147483648
  %v3301 = vmul.f32 %v3298, 1.442695
  %v3302 = vpow.pop %v3301
  %v3303 = vmul.f32 %v3299, 1.442695
  %v3304 = vpow.pop %v3303
  %v3305 = vmul.f32 %v3300, 1.442695
  %v3306 = vpow.pop %v3305
  %v3307 = vadd.f32 %v3302, 1.0
  %v3308 = vadd.f32 %v3304, 1.0
  %v3309 = vadd.f32 %v3306, 1.0
  %v3310 = vrcp.pop %v3307
  %v3311 = vmul.f32 1.0, %v3310
  %v3312 = vrcp.pop %v3308
  %v3313 = vmul.f32 1.0, %v3312
  %v3314 = vrcp.pop %v3309
  %v3315 = vmul.f32 1.0, %v3314
  %v3316 = vtanh.pop %v3297
  %v3317 = vmul.f32 %v3313, %v3145
  %v3318 = vmul.f32 %v3311, %v3316
  %v3319 = vadd.f32 %v3317, %v3318
  %v3320 = vtanh.pop %v3319
  %v3321 = vmul.f32 %v3315, %v3320
  %v3322 = vld [vmem:[%s1502] sm:$0xff]
  %v3323 = vld [vmem:[%s1502 + $0x8] sm:$0xff]
  %v3324 = vld [vmem:[%s1502 + $0x10] sm:$0xff]
  %v3325 = vld [vmem:[%s1502 + $0x18] sm:$0xff]
  %3326 = vmatprep.subr.mxu0 %v2213
  %3327 = vmatpush1.msra.mxu0 %v2212
  %3328 = vmatprep.subr.mxu0 %v2217
  %3329 = vmatpush1.msra.mxu0 %v2216
  %3330 = vmatprep.subr.mxu0 %v2221
  %3331 = vmatpush1.msra.mxu0 %v2220
  %3332 = vmatprep.subr.mxu0 %v2225
  %3333 = vmatpush1.msra.mxu0 %v2224
  %3334 = vmatprep.subr.mxu0 %v2229
  %3335 = vmatpush1.msra.mxu0 %v2228
  %3336 = vmatprep.subr.mxu0 %v2233
  %3337 = vmatpush1.msra.mxu0 %v2232
  %3338 = vmatprep.subr.mxu0 %v2237
  %3339 = vmatpush1.msra.mxu0 %v2236
  %3340 = vmatprep.subr.mxu0 %v2241
  %3341 = vmatpush1.msra.mxu0 %v2240
  %3342 = vmatprep.subr.mxu0 %v2245
  %3343 = vmatpush1.msra.mxu0 %v2244
  %3344 = vmatprep.subr.mxu0 %v2249
  %3345 = vmatpush1.msra.mxu0 %v2248
  %3346 = vmatprep.subr.mxu0 %v2253
  %3347 = vmatpush1.msra.mxu0 %v2252
  %3348 = vmatprep.subr.mxu0 %v2257
  %3349 = vmatpush1.msra.mxu0 %v2256
  %3350 = vmatprep.subr.mxu0 %v2261
  %3351 = vmatpush1.msra.mxu0 %v2260
  %3352 = vmatprep.subr.mxu0 %v2265
  %3353 = vmatpush1.msra.mxu0 %v2264
  %3354 = vmatprep.subr.mxu0 %v2269
  %3355 = vmatpush1.msra.mxu0 %v2268
  %3356 = vmatprep.subr.mxu0 %v2273
  %3357 = vmatpush1.msra.mxu0 %v2272
  %3358 = vmatprep.subr.mxu0 0.0
  %3359 = vmatpush1.msra.mxu0 0.0
  %3360 = vmatprep.subr.mxu0 0.0
  %3361 = vmatpush1.msra.mxu0 0.0
  %3362 = vmatprep.subr.mxu0 0.0
  %3363 = vmatpush1.msra.mxu0 0.0
  %3364 = vmatprep.subr.mxu0 0.0
  %3365 = vmatpush1.msra.mxu0 0.0
  %3366 = vmatprep.subr.mxu0 0.0
  %3367 = vmatpush1.msra.mxu0 0.0
  %3368 = vmatprep.subr.mxu0 0.0
  %3369 = vmatpush1.msra.mxu0 0.0
  %3370 = vmatprep.subr.mxu0 0.0
  %3371 = vmatpush1.msra.mxu0 0.0
  %3372 = vmatprep.subr.mxu0 0.0
  %3373 = vmatpush1.msra.mxu0 0.0
  %3374 = vmatprep.subr.mxu0 0.0
  %3375 = vmatpush1.msra.mxu0 0.0
  %3376 = vmatprep.subr.mxu0 0.0
  %3377 = vmatpush1.msra.mxu0 0.0
  %3378 = vmatprep.subr.mxu0 0.0
  %3379 = vmatpush1.msra.mxu0 0.0
  %3380 = vmatprep.subr.mxu0 0.0
  %3381 = vmatpush1.msra.mxu0 0.0
  %3382 = vmatprep.subr.mxu0 0.0
  %3383 = vmatpush1.msra.mxu0 0.0
  %3384 = vmatprep.subr.mxu0 0.0
  %3385 = vmatpush1.msra.mxu0 0.0
  %3386 = vmatprep.subr.mxu0 0.0
  %3387 = vmatpush1.msra.mxu0 0.0
  %3388 = vmatprep.subr.mxu0 0.0
  %3389 = vmatpush1.msra.mxu0 0.0
  %3390 = vmatprep.mubr.f32.mxu0 0.0
  %3391 = vmatmul.mubr.f32.gmra.mrb[0].mxu0 %v3321
  %v3392 = vpop.f32.mrb[0].mxu0
  %v3393 = vadd.f32 0.0, %v3392
  %v3394 = vpop.f32.mrb[0].mxu0
  %v3395 = vadd.f32 0.0, %v3394
  %3396 = vdwg.mxu0
  %3397 = vmatprep.subr.mxu0 %v2215
  %3398 = vmatpush1.msra.mxu0 %v2214
  %3399 = vmatprep.subr.mxu0 %v2219
  %3400 = vmatpush1.msra.mxu0 %v2218
  %3401 = vmatprep.subr.mxu0 %v2223
  %3402 = vmatpush1.msra.mxu0 %v2222
  %3403 = vmatprep.subr.mxu0 %v2227
  %3404 = vmatpush1.msra.mxu0 %v2226
  %3405 = vmatprep.subr.mxu0 %v2231
  %3406 = vmatpush1.msra.mxu0 %v2230
  %3407 = vmatprep.subr.mxu0 %v2235
  %3408 = vmatpush1.msra.mxu0 %v2234
  %3409 = vmatprep.subr.mxu0 %v2239
  %3410 = vmatpush1.msra.mxu0 %v2238
  %3411 = vmatprep.subr.mxu0 %v2243
  %3412 = vmatpush1.msra.mxu0 %v2242
  %3413 = vmatprep.subr.mxu0 %v2247
  %3414 = vmatpush1.msra.mxu0 %v2246
  %3415 = vmatprep.subr.mxu0 %v2251
  %3416 = vmatpush1.msra.mxu0 %v2250
  %3417 = vmatprep.subr.mxu0 %v2255
  %3418 = vmatpush1.msra.mxu0 %v2254
  %3419 = vmatprep.subr.mxu0 %v2259
  %3420 = vmatpush1.msra.mxu0 %v2258
  %3421 = vmatprep.subr.mxu0 %v2263
  %3422 = vmatpush1.msra.mxu0 %v2262
  %3423 = vmatprep.subr.mxu0 %v2267
  %3424 = vmatpush1.msra.mxu0 %v2266
  %3425 = vmatprep.subr.mxu0 %v2271
  %3426 = vmatpush1.msra.mxu0 %v2270
  %3427 = vmatprep.subr.mxu0 %v2275
  %3428 = vmatpush1.msra.mxu0 %v2274
  %3429 = vmatprep.subr.mxu0 0.0
  %3430 = vmatpush1.msra.mxu0 0.0
  %3431 = vmatprep.subr.mxu0 0.0
  %3432 = vmatpush1.msra.mxu0 0.0
  %3433 = vmatprep.subr.mxu0 0.0
  %3434 = vmatpush1.msra.mxu0 0.0
  %3435 = vmatprep.subr.mxu0 0.0
  %3436 = vmatpush1.msra.mxu0 0.0
  %3437 = vmatprep.subr.mxu0 0.0
  %3438 = vmatpush1.msra.mxu0 0.0
  %3439 = vmatprep.subr.mxu0 0.0
  %3440 = vmatpush1.msra.mxu0 0.0
  %3441 = vmatprep.subr.mxu0 0.0
  %3442 = vmatpush1.msra.mxu0 0.0
  %3443 = vmatprep.subr.mxu0 0.0
  %3444 = vmatpush1.msra.mxu0 0.0
  %3445 = vmatprep.subr.mxu0 0.0
  %3446 = vmatpush1.msra.mxu0 0.0
  %3447 = vmatprep.subr.mxu0 0.0
  %3448 = vmatpush1.msra.mxu0 0.0
  %3449 = vmatprep.subr.mxu0 0.0
  %3450 = vmatpush1.msra.mxu0 0.0
  %3451 = vmatprep.subr.mxu0 0.0
  %3452 = vmatpush1.msra.mxu0 0.0
  %3453 = vmatprep.subr.mxu0 0.0
  %3454 = vmatpush1.msra.mxu0 0.0
  %3455 = vmatprep.subr.mxu0 0.0
  %3456 = vmatpush1.msra.mxu0 0.0
  %3457 = vmatprep.subr.mxu0 0.0
  %3458 = vmatpush1.msra.mxu0 0.0
  %3459 = vmatprep.subr.mxu0 0.0
  %3460 = vmatpush1.msra.mxu0 0.0
  %3461 = vmatprep.mubr.f32.mxu0 0.0
  %3462 = vmatmul.mubr.f32.gmra.mrb[0].mxu0 %v3321
  %v3463 = vpop.f32.mrb[0].mxu0
  %v3464 = vadd.f32 0.0, %v3463
  %v3465 = vpop.f32.mrb[0].mxu0
  %v3466 = vadd.f32 0.0, %v3465
  %3467 = vdwg.mxu0
  %v3468 = vadd.f32 %v3322, %v3393
  %v3469 = vadd.f32 %v3323, %v3395
  %v3470 = vadd.f32 %v3324, %v3464
  %v3471 = vadd.f32 %v3325, %v3466
  %v3472 = vxor.u32 %v3468, 2147483648
  %v3473 = vxor.u32 %v3469, 2147483648
  %v3474 = vxor.u32 %v3470, 2147483648
  %v3475 = vmul.f32 %v3472, 1.442695
  %v3476 = vpow.pop %v3475
  %v3477 = vmul.f32 %v3473, 1.442695
  %v3478 = vpow.pop %v3477
  %v3479 = vmul.f32 %v3474, 1.442695
  %v3480 = vpow.pop %v3479
  %v3481 = vadd.f32 %v3476, 1.0
  %v3482 = vadd.f32 %v3478, 1.0
  %v3483 = vadd.f32 %v3480, 1.0
  %v3484 = vrcp.pop %v3481
  %v3485 = vmul.f32 1.0, %v3484
  %v3486 = vrcp.pop %v3482
  %v3487 = vmul.f32 1.0, %v3486
  %v3488 = vrcp.pop %v3483
  %v3489 = vmul.f32 1.0, %v3488
  %v3490 = vtanh.pop %v3471
  %v3491 = vmul.f32 %v3487, %v3319
  %v3492 = vmul.f32 %v3485, %v3490
  %v3493 = vadd.f32 %v3491, %v3492
  %v3494 = vtanh.pop %v3493
  %v3495 = vmul.f32 %v3489, %v3494
  %v3496 = vld [vmem:[%s1681] sm:$0xff]
  %v3497 = vld [vmem:[%s1681 + $0x8] sm:$0xff]
  %v3498 = vld [vmem:[%s1681 + $0x10] sm:$0xff]
  %v3499 = vld [vmem:[%s1681 + $0x18] sm:$0xff]
  %3500 = vmatprep.subr.mxu0 %v2213
  %3501 = vmatpush1.msra.mxu0 %v2212
  %3502 = vmatprep.subr.mxu0 %v2217
  %3503 = vmatpush1.msra.mxu0 %v2216
  %3504 = vmatprep.subr.mxu0 %v2221
  %3505 = vmatpush1.msra.mxu0 %v2220
  %3506 = vmatprep.subr.mxu0 %v2225
  %3507 = vmatpush1.msra.mxu0 %v2224
  %3508 = vmatprep.subr.mxu0 %v2229
  %3509 = vmatpush1.msra.mxu0 %v2228
  %3510 = vmatprep.subr.mxu0 %v2233
  %3511 = vmatpush1.msra.mxu0 %v2232
  %3512 = vmatprep.subr.mxu0 %v2237
  %3513 = vmatpush1.msra.mxu0 %v2236
  %3514 = vmatprep.subr.mxu0 %v2241
  %3515 = vmatpush1.msra.mxu0 %v2240
  %3516 = vmatprep.subr.mxu0 %v2245
  %3517 = vmatpush1.msra.mxu0 %v2244
  %3518 = vmatprep.subr.mxu0 %v2249
  %3519 = vmatpush1.msra.mxu0 %v2248
  %3520 = vmatprep.subr.mxu0 %v2253
  %3521 = vmatpush1.msra.mxu0 %v2252
  %3522 = vmatprep.subr.mxu0 %v2257
  %3523 = vmatpush1.msra.mxu0 %v2256
  %3524 = vmatprep.subr.mxu0 %v2261
  %3525 = vmatpush1.msra.mxu0 %v2260
  %3526 = vmatprep.subr.mxu0 %v2265
  %3527 = vmatpush1.msra.mxu0 %v2264
  %3528 = vmatprep.subr.mxu0 %v2269
  %3529 = vmatpush1.msra.mxu0 %v2268
  %3530 = vmatprep.subr.mxu0 %v2273
  %3531 = vmatpush1.msra.mxu0 %v2272
  %3532 = vmatprep.subr.mxu0 0.0
  %3533 = vmatpush1.msra.mxu0 0.0
  %3534 = vmatprep.subr.mxu0 0.0
  %3535 = vmatpush1.msra.mxu0 0.0
  %3536 = vmatprep.subr.mxu0 0.0
  %3537 = vmatpush1.msra.mxu0 0.0
  %3538 = vmatprep.subr.mxu0 0.0
  %3539 = vmatpush1.msra.mxu0 0.0
  %3540 = vmatprep.subr.mxu0 0.0
  %3541 = vmatpush1.msra.mxu0 0.0
  %3542 = vmatprep.subr.mxu0 0.0
  %3543 = vmatpush1.msra.mxu0 0.0
  %3544 = vmatprep.subr.mxu0 0.0
  %3545 = vmatpush1.msra.mxu0 0.0
  %3546 = vmatprep.subr.mxu0 0.0
  %3547 = vmatpush1.msra.mxu0 0.0
  %3548 = vmatprep.subr.mxu0 0.0
  %3549 = vmatpush1.msra.mxu0 0.0
  %3550 = vmatprep.subr.mxu0 0.0
  %3551 = vmatpush1.msra.mxu0 0.0
  %3552 = vmatprep.subr.mxu0 0.0
  %3553 = vmatpush1.msra.mxu0 0.0
  %3554 = vmatprep.subr.mxu0 0.0
  %3555 = vmatpush1.msra.mxu0 0.0
  %3556 = vmatprep.subr.mxu0 0.0
  %3557 = vmatpush1.msra.mxu0 0.0
  %3558 = vmatprep.subr.mxu0 0.0
  %3559 = vmatpush1.msra.mxu0 0.0
  %3560 = vmatprep.subr.mxu0 0.0
  %3561 = vmatpush1.msra.mxu0 0.0
  %3562 = vmatprep.subr.mxu0 0.0
  %3563 = vmatpush1.msra.mxu0 0.0
  %3564 = vmatprep.mubr.f32.mxu0 0.0
  %3565 = vmatmul.mubr.f32.gmra.mrb[0].mxu0 %v3495
  %v3566 = vpop.f32.mrb[0].mxu0
  %v3567 = vadd.f32 0.0, %v3566
  %v3568 = vpop.f32.mrb[0].mxu0
  %v3569 = vadd.f32 0.0, %v3568
  %3570 = vdwg.mxu0
  %3571 = vmatprep.subr.mxu0 %v2215
  %3572 = vmatpush1.msra.mxu0 %v2214
  %3573 = vmatprep.subr.mxu0 %v2219
  %3574 = vmatpush1.msra.mxu0 %v2218
  %3575 = vmatprep.subr.mxu0 %v2223
  %3576 = vmatpush1.msra.mxu0 %v2222
  %3577 = vmatprep.subr.mxu0 %v2227
  %3578 = vmatpush1.msra.mxu0 %v2226
  %3579 = vmatprep.subr.mxu0 %v2231
  %3580 = vmatpush1.msra.mxu0 %v2230
  %3581 = vmatprep.subr.mxu0 %v2235
  %3582 = vmatpush1.msra.mxu0 %v2234
  %3583 = vmatprep.subr.mxu0 %v2239
  %3584 = vmatpush1.msra.mxu0 %v2238
  %3585 = vmatprep.subr.mxu0 %v2243
  %3586 = vmatpush1.msra.mxu0 %v2242
  %3587 = vmatprep.subr.mxu0 %v2247
  %3588 = vmatpush1.msra.mxu0 %v2246
  %3589 = vmatprep.subr.mxu0 %v2251
  %3590 = vmatpush1.msra.mxu0 %v2250
  %3591 = vmatprep.subr.mxu0 %v2255
  %3592 = vmatpush1.msra.mxu0 %v2254
  %3593 = vmatprep.subr.mxu0 %v2259
  %3594 = vmatpush1.msra.mxu0 %v2258
  %3595 = vmatprep.subr.mxu0 %v2263
  %3596 = vmatpush1.msra.mxu0 %v2262
  %3597 = vmatprep.subr.mxu0 %v2267
  %3598 = vmatpush1.msra.mxu0 %v2266
  %3599 = vmatprep.subr.mxu0 %v2271
  %3600 = vmatpush1.msra.mxu0 %v2270
  %3601 = vmatprep.subr.mxu0 %v2275
  %3602 = vmatpush1.msra.mxu0 %v2274
  %3603 = vmatprep.subr.mxu0 0.0
  %3604 = vmatpush1.msra.mxu0 0.0
  %3605 = vmatprep.subr.mxu0 0.0
  %3606 = vmatpush1.msra.mxu0 0.0
  %3607 = vmatprep.subr.mxu0 0.0
  %3608 = vmatpush1.msra.mxu0 0.0
  %3609 = vmatprep.subr.mxu0 0.0
  %3610 = vmatpush1.msra.mxu0 0.0
  %3611 = vmatprep.subr.mxu0 0.0
  %3612 = vmatpush1.msra.mxu0 0.0
  %3613 = vmatprep.subr.mxu0 0.0
  %3614 = vmatpush1.msra.mxu0 0.0
  %3615 = vmatprep.subr.mxu0 0.0
  %3616 = vmatpush1.msra.mxu0 0.0
  %3617 = vmatprep.subr.mxu0 0.0
  %3618 = vmatpush1.msra.mxu0 0.0
  %3619 = vmatprep.subr.mxu0 0.0
  %3620 = vmatpush1.msra.mxu0 0.0
  %3621 = vmatprep.subr.mxu0 0.0
  %3622 = vmatpush1.msra.mxu0 0.0
  %3623 = vmatprep.subr.mxu0 0.0
  %3624 = vmatpush1.msra.mxu0 0.0
  %3625 = vmatprep.subr.mxu0 0.0
  %3626 = vmatpush1.msra.mxu0 0.0
  %3627 = vmatprep.subr.mxu0 0.0
  %3628 = vmatpush1.msra.mxu0 0.0
  %3629 = vmatprep.subr.mxu0 0.0
  %3630 = vmatpush1.msra.mxu0 0.0
  %3631 = vmatprep.subr.mxu0 0.0
  %3632 = vmatpush1.msra.mxu0 0.0
  %3633 = vmatprep.subr.mxu0 0.0
  %3634 = vmatpush1.msra.mxu0 0.0
  %3635 = vmatprep.mubr.f32.mxu0 0.0
  %3636 = vmatmul.mubr.f32.gmra.mrb[0].mxu0 %v3495
  %v3637 = vpop.f32.mrb[0].mxu0
  %v3638 = vadd.f32 0.0, %v3637
  %v3639 = vpop.f32.mrb[0].mxu0
  %v3640 = vadd.f32 0.0, %v3639
  %3641 = vdwg.mxu0
  %v3642 = vadd.f32 %v3496, %v3567
  %v3643 = vadd.f32 %v3497, %v3569
  %v3644 = vadd.f32 %v3498, %v3638
  %v3645 = vadd.f32 %v3499, %v3640
  %v3646 = vxor.u32 %v3642, 2147483648
  %v3647 = vxor.u32 %v3643, 2147483648
  %v3648 = vxor.u32 %v3644, 2147483648
  %v3649 = vmul.f32 %v3646, 1.442695
  %v3650 = vpow.pop %v3649
  %v3651 = vmul.f32 %v3647, 1.442695
  %v3652 = vpow.pop %v3651
  %v3653 = vmul.f32 %v3648, 1.442695
  %v3654 = vpow.pop %v3653
  %v3655 = vadd.f32 %v3650, 1.0
  %v3656 = vadd.f32 %v3652, 1.0
  %v3657 = vadd.f32 %v3654, 1.0
  %v3658 = vrcp.pop %v3655
  %v3659 = vmul.f32 1.0, %v3658
  %v3660 = vrcp.pop %v3656
  %v3661 = vmul.f32 1.0, %v3660
  %v3662 = vrcp.pop %v3657
  %v3663 = vmul.f32 1.0, %v3662
  %v3664 = vtanh.pop %v3645
  %v3665 = vmul.f32 %v3661, %v3493
  %v3666 = vmul.f32 %v3659, %v3664
  %v3667 = vadd.f32 %v3665, %v3666
  %v3668 = vtanh.pop %v3667
  %v3669 = vmul.f32 %v3663, %v3668
  %3670 = vst [vmem:[#allocation6] sm:$0xff] %v3669
  %3671 = vst [vmem:[#allocation7] sm:$0xff] %v3667
  // Predicated region
  $region42: #{music_rnn_forward.1} parent=0 // pred_check
    %p3672 = pneg %p32
  $region43: #{music_rnn_forward.1} parent=0 // pred_check_branch
    %3674 = sbr.rel (%p3672) target = $region45
  $region44: #{music_rnn_forward.1} parent=0 // pred_region
    %v3675 = vld [vmem:[#allocation6] sm:$0xff]
    %v3676 = vld [vmem:[%s7] sm:$0xff]
    %v3677 = vld [vmem:[%s7 + $0x8] sm:$0xff]
    %v3678 = vld [vmem:[%s7 + $0x10] sm:$0xff]
    %v3679 = vld [vmem:[%s7 + $0x18] sm:$0xff]
    %v3680 = vld [vmem:[%s7 + $0x20] sm:$0xff]
    %v3681 = vld [vmem:[%s7 + $0x28] sm:$0xff]
    %v3682 = vld [vmem:[%s7 + $0x30] sm:$0xff]
    %v3683 = vld [vmem:[%s7 + $0x38] sm:$0xff]
    %v3684 = vld [vmem:[%s7 + $0x40] sm:$0xff]
    %v3685 = vld [vmem:[%s7 + $0x48] sm:$0xff]
    %v3686 = vld [vmem:[%s7 + $0x50] sm:$0xff]
    %v3687 = vld [vmem:[%s7 + $0x58] sm:$0xff]
    %v3688 = vld [vmem:[%s7 + $0x60] sm:$0xff]
    %v3689 = vld [vmem:[%s7 + $0x68] sm:$0xff]
    %v3690 = vld [vmem:[%s7 + $0x70] sm:$0xff]
    %v3691 = vld [vmem:[%s7 + $0x78] sm:$0xff]
    %v3692 = vld [vmem:[%s8] sm:$0x1]
    %v3694 = vlaneseq
    %v3695 = vshrl.u32 %v3694, 7
    %v3696 = vsub.s32 0, %v3695
    %v3697 = vrot.slane %v3692, %v3696
    %3699 = vmatprep.subr.mxu0 0.0
    %3700 = vmatpush1.msra.mxu0 %v3676
    %3701 = vmatprep.subr.mxu0 0.0
    %3702 = vmatpush1.msra.mxu0 %v3677
    %3703 = vmatprep.subr.mxu0 0.0
    %3704 = vmatpush1.msra.mxu0 %v3678
    %3705 = vmatprep.subr.mxu0 0.0
    %3706 = vmatpush1.msra.mxu0 %v3679
    %3707 = vmatprep.subr.mxu0 0.0
    %3708 = vmatpush1.msra.mxu0 %v3680
    %3709 = vmatprep.subr.mxu0 0.0
    %3710 = vmatpush1.msra.mxu0 %v3681
    %3711 = vmatprep.subr.mxu0 0.0
    %3712 = vmatpush1.msra.mxu0 %v3682
    %3713 = vmatprep.subr.mxu0 0.0
    %3714 = vmatpush1.msra.mxu0 %v3683
    %3715 = vmatprep.subr.mxu0 0.0
    %3716 = vmatpush1.msra.mxu0 %v3684
    %3717 = vmatprep.subr.mxu0 0.0
    %3718 = vmatpush1.msra.mxu0 %v3685
    %3719 = vmatprep.subr.mxu0 0.0
    %3720 = vmatpush1.msra.mxu0 %v3686
    %3721 = vmatprep.subr.mxu0 0.0
    %3722 = vmatpush1.msra.mxu0 %v3687
    %3723 = vmatprep.subr.mxu0 0.0
    %3724 = vmatpush1.msra.mxu0 %v3688
    %3725 = vmatprep.subr.mxu0 0.0
    %3726 = vmatpush1.msra.mxu0 %v3689
    %3727 = vmatprep.subr.mxu0 0.0
    %3728 = vmatpush1.msra.mxu0 %v3690
    %3729 = vmatprep.subr.mxu0 0.0
    %3730 = vmatpush1.msra.mxu0 %v3691
    %3731 = vmatprep.subr.mxu0 0.0
    %3732 = vmatpush1.msra.mxu0 0.0
    %3733 = vmatprep.subr.mxu0 0.0
    %3734 = vmatpush1.msra.mxu0 0.0
    %3735 = vmatprep.subr.mxu0 0.0
    %3736 = vmatpush1.msra.mxu0 0.0
    %3737 = vmatprep.subr.mxu0 0.0
    %3738 = vmatpush1.msra.mxu0 0.0
    %3739 = vmatprep.subr.mxu0 0.0
    %3740 = vmatpush1.msra.mxu0 0.0
    %3741 = vmatprep.subr.mxu0 0.0
    %3742 = vmatpush1.msra.mxu0 0.0
    %3743 = vmatprep.subr.mxu0 0.0
    %3744 = vmatpush1.msra.mxu0 0.0
    %3745 = vmatprep.subr.mxu0 0.0
    %3746 = vmatpush1.msra.mxu0 0.0
    %3747 = vmatprep.subr.mxu0 0.0
    %3748 = vmatpush1.msra.mxu0 0.0
    %3749 = vmatprep.subr.mxu0 0.0
    %3750 = vmatpush1.msra.mxu0 0.0
    %3751 = vmatprep.subr.mxu0 0.0
    %3752 = vmatpush1.msra.mxu0 0.0
    %3753 = vmatprep.subr.mxu0 0.0
    %3754 = vmatpush1.msra.mxu0 0.0
    %3755 = vmatprep.subr.mxu0 0.0
    %3756 = vmatpush1.msra.mxu0 0.0
    %3757 = vmatprep.subr.mxu0 0.0
    %3758 = vmatpush1.msra.mxu0 0.0
    %3759 = vmatprep.subr.mxu0 0.0
    %3760 = vmatpush1.msra.mxu0 0.0
    %3761 = vmatprep.subr.mxu0 0.0
    %3762 = vmatpush1.msra.mxu0 0.0
    %3763 = vmatprep.mubr.f32.mxu0 0.0
    %3764 = vmatmul.mubr.f32.gmra.mrb[0].mxu0 %v3675
    %v3765 = vpop.f32.mrb[0].mxu0
    %v3766 = vadd.f32 %v3697, %v3765
    %v3767 = vpop.f32.mrb[0].mxu0
    %3768 = vdwg.mxu0
    %3769 = vst [vmem:[%s9] sm:$0xff] %v3766
  $region45: #{music_rnn_forward.1} parent=0 // pred_fallthru
    _
  // Predicated region
  $region46: #{music_rnn_forward.1} parent=0 // pred_check
    _
  $region47: #{music_rnn_forward.1} parent=0 // pred_check_branch
    %3771 = sbr.rel (0) target = $region49
  $region48: #{music_rnn_forward.1} parent=0 // pred_region
    _
  $region49: #{music_rnn_forward.1} parent=0 // pred_fallthru
    _
  // Predicated region
  $region50: #{music_rnn_forward.1} parent=0 // pred_check
    _
  $region51: #{music_rnn_forward.1} parent=0 // pred_check_branch
    %3773 = sbr.rel (0) target = $region53
  $region52: #{music_rnn_forward.1} parent=0 // pred_region
    _
  $region53: #{music_rnn_forward.1} parent=0 // pred_fallthru
    _

</llo_original>
